<compile_context>
chip_gen: v7x
topology: tpu7x:2x2x1
jax: 0.10.0
libtpu: 0.0.40
codegen_flags: <defaults>
</compile_context>

<pallas_src>
import numpy as np
import jax
import jax.numpy as jnp
from jax.experimental import pallas as pl
from jax.experimental.pallas import tpu as pltpu


def roi_align_pallas(feature, bboxes, output_size, spatial_scale,
                     sampling_ratio=2, aligned=False, rois_per_step=8,
                     force_slab_path=False):
    """feature: (N, C, H, W); bboxes: (K, 5) = [batch_idx, x1, y1, x2, y2]."""
    N, C, H, W = (int(d) for d in feature.shape)
    K = int(bboxes.shape[0])
    if isinstance(output_size, (tuple, list)):
        out_h, out_w = int(output_size[0]), int(output_size[1])
    else:
        out_h = out_w = int(output_size)
    gh = gw = int(sampling_ratio)            # sampling_ratio > 0 path (module uses 2)
    offset = 0.5 if aligned else 0.0
    CW = C * W
    P = C * out_h                            # fused (c, oh) row dim of the result

    # bf16 operands on the MXU when the input is bf16, else f32 (accumulate f32).
    compute_dtype = jnp.bfloat16 if feature.dtype == jnp.bfloat16 else jnp.float32

    # NCHW -> (N, H, C*W): layout plumbing done once in the wrapper, not in-kernel.
    feat2d = jnp.transpose(feature, (0, 2, 1, 3)).reshape(N, H, CW)

    # Scalars as 1-D SMEM arrays (minimal SMEM padding); clamp batch index (safety).
    bidx = jnp.clip(bboxes[:, 0].astype(jnp.int32), 0, N - 1)
    x1s = bboxes[:, 1].astype(jnp.float32)
    y1s = bboxes[:, 2].astype(jnp.float32)
    x2s = bboxes[:, 3].astype(jnp.float32)
    y2s = bboxes[:, 4].astype(jnp.float32)

    def interp_matrix(start, bin_size, n_bins, n_samples, size):
        # Dense (n_bins, size) matrix of bilinear weights, averaged over the
        # n_samples sample points per bin (folds in the 1/count factor).
        # NOTE: the float equality against an iota is exact because both sides
        # are integer-valued floats (< 2^24), fine for any realistic H/W.
        p = jax.lax.broadcasted_iota(jnp.int32, (n_bins, size), 0).astype(jnp.float32)
        idx = jax.lax.broadcasted_iota(jnp.int32, (n_bins, size), 1).astype(jnp.float32)
        acc = jnp.zeros((n_bins, size), jnp.float32)
        for g in range(n_samples):
            coord = start + (p + (g + 0.5) / n_samples) * bin_size
            valid = (coord >= -1.0) & (coord <= size)            # out-of-range -> 0
            c0 = jnp.maximum(coord, 0.0)
            low = jnp.floor(c0)
            at_edge = low >= (size - 1)
            low = jnp.where(at_edge, float(size - 1), low)
            high = jnp.where(at_edge, low, low + 1.0)
            ceff = jnp.where(at_edge, low, c0)
            lo_frac = ceff - low
            hi_frac = 1.0 - lo_frac
            w = (hi_frac * (idx == low).astype(jnp.float32)
                 + lo_frac * (idx == high).astype(jnp.float32))
            acc = acc + jnp.where(valid, w, 0.0)
        return acc / n_samples

    def roi_pool(feat_img, bx1, by1, bx2, by2, t_scr, t2_scr):
        # feat_img: (H, C*W) -> pooled ROI as (out_w, C*out_h) float32.
        scale = jnp.float32(spatial_scale)
        x1 = bx1 * scale - offset
        y1 = by1 * scale - offset
        x2 = bx2 * scale - offset
        y2 = by2 * scale - offset
        roi_w = x2 - x1
        roi_h = y2 - y1
        if not aligned:                       # legacy behaviour: min ROI size of 1
            roi_w = jnp.maximum(roi_w, 1.0)
            roi_h = jnp.maximum(roi_h, 1.0)
        bin_h = roi_h / out_h
        bin_w = roi_w / out_w
        ay = interp_matrix(y1, bin_h, out_h, gh, H).astype(compute_dtype)   # (out_h, H)
        ax = interp_matrix(x1, bin_w, out_w, gw, W).astype(compute_dtype)   # (out_w, W)

        # Channel-fused matmul #1: (out_h, H) @ (H, C*W) -> (out_h, C*W).
        t = jnp.dot(ay, feat_img.astype(compute_dtype),
                    preferred_element_type=jnp.float32)
        # Regroup (out_h, C*W) -> (C*out_h, W) through VMEM scratch (explicit
        # materialization of the row-major reshape; pure data movement).
        # TODO(synk): switch to a single jnp.reshape once general minor-dim
        # reshapes are relied upon.
        t_scr[...] = t
        for c in range(C):
            t2_scr[c * out_h:(c + 1) * out_h, :] = t_scr[:, c * W:(c + 1) * W]
        t2 = t2_scr[...].astype(compute_dtype)
        # Channel-fused matmul #2 (contract W): (out_w, W) x (C*out_h, W)^T
        # -> (out_w, C*out_h); lane dim is C*out_h (dense for realistic C).
        r = jax.lax.dot_general(ax, t2, (((1,), (1,)), ((), ())),
                                preferred_element_type=jnp.float32)
        return r

    smem = pl.BlockSpec(memory_space=pltpu.MemorySpace.SMEM)
    scratch = [pltpu.VMEM((out_h, CW), jnp.float32),
               pltpu.VMEM((P, W), jnp.float32)]
    itemsize = jnp.dtype(feature.dtype).itemsize
    feat_bytes = N * H * CW * itemsize

    TK = max(1, int(rois_per_step))
    K_pad = ((K + TK - 1) // TK) * TK
    pad = K_pad - K
    out_block_bytes = TK * out_w * P * itemsize
    # Feature stays resident only if the (double-buffered) blocks comfortably
    # fit v7x's 64 MiB physical VMEM.
    resident = (not force_slab_path) and \
        (2 * feat_bytes + 2 * out_block_bytes) <= (40 << 20)

    if resident:
        if pad:
            bidx_p = jnp.pad(bidx, (0, pad))
            x1_p = jnp.pad(x1s, (0, pad))
            y1_p = jnp.pad(y1s, (0, pad))
            x2_p = jnp.pad(x2s, (0, pad))
            y2_p = jnp.pad(y2s, (0, pad))
        else:
            bidx_p, x1_p, y1_p, x2_p, y2_p = bidx, x1s, y1s, x2s, y2s

        def kernel(bidx_ref, x1_ref, y1_ref, x2_ref, y2_ref, feat_ref, out_ref,
                   t_scr, t2_scr):
            base = pl.program_id(0) * TK
            for t in range(TK):              # static unroll: per-ROI work is tiny
                k = base + t
                b = bidx_ref[k]
                r = roi_pool(feat_ref[b], x1_ref[k], y1_ref[k],
                             x2_ref[k], y2_ref[k], t_scr, t2_scr)
                out_ref[t] = r.astype(out_ref.dtype)

        vmem_limit = int(min(max(2 * feat_bytes + 2 * out_block_bytes + (4 << 20),
                                 32 << 20), 100 << 20))
        flat = pl.pallas_call(
            kernel,
            grid=(K_pad // TK,),
            in_specs=[smem, smem, smem, smem, smem,
                      # full feature resident: constant block index -> loaded once.
                      pl.BlockSpec((N, H, CW), lambda g: (0, 0, 0))],
            out_specs=pl.BlockSpec((TK, out_w, P), lambda g: (g, 0, 0)),
            out_shape=jax.ShapeDtypeStruct((K_pad, out_w, P), feature.dtype),
            scratch_shapes=scratch,
            compiler_params=pltpu.CompilerParams(
                dimension_semantics=("parallel",),      # ROIs independent -> 2 TCs on v7x
                vmem_limit_bytes=vmem_limit),
        )(bidx_p, x1_p, y1_p, x2_p, y2_p, feat2d)
        flat = flat[:K]
    else:
        # Fallback: per-ROI image slab DMA driven by scalar-prefetched batch
        # index; ROIs sorted by batch index so consecutive grid steps hit the
        # same block and the pipeline skips the re-copy.
        order = jnp.argsort(bidx)
        inv = jnp.argsort(order)
        bidx_s = bidx[order]
        x1_s, y1_s = x1s[order], y1s[order]
        x2_s, y2_s = x2s[order], y2s[order]

        def kernel(bidx_ref, x1_ref, y1_ref, x2_ref, y2_ref, feat_ref, out_ref,
                   t_scr, t2_scr):
            k = pl.program_id(0)
            r = roi_pool(feat_ref[0], x1_ref[k], y1_ref[k],
                         x2_ref[k], y2_ref[k], t_scr, t2_scr)
            out_ref[0] = r.astype(out_ref.dtype)

        vmem_limit = int(min(max(3 * H * CW * itemsize + (8 << 20), 32 << 20),
                             100 << 20))
        gs = pltpu.PrefetchScalarGridSpec(
            num_scalar_prefetch=1,            # batch index -> SMEM, drives index_map
            grid=(K,),
            in_specs=[smem, smem, smem, smem,
                      pl.BlockSpec((1, H, CW), lambda k, b: (b[k], 0, 0))],
            out_specs=pl.BlockSpec((1, out_w, P), lambda k, b: (k, 0, 0)),
            scratch_shapes=scratch,
        )
        flat_s = pl.pallas_call(
            kernel,
            grid_spec=gs,
            out_shape=jax.ShapeDtypeStruct((K, out_w, P), feature.dtype),
            compiler_params=pltpu.CompilerParams(
                dimension_semantics=("arbitrary",),   # keep sorted slab-reuse ordering
                vmem_limit_bytes=vmem_limit),
        )(bidx_s, x1_s, y1_s, x2_s, y2_s, feat2d)
        flat = flat_s[inv]

    # (K, out_w, C*out_h) -> (K, C, out_h, out_w); layout plumbing in the wrapper.
    return flat.reshape(K, out_w, C, out_h).transpose(0, 2, 3, 1)


class ROIAlign:
    """JAX/Pallas analogue of seal.models.utils.ROIAlign (no learnable parameters)."""

    def __init__(self, spatial_scale, output_size, aligned: bool = False) -> None:
        self.spatial_scale = spatial_scale
        self.output_size = output_size
        self.aligned = aligned

    def __call__(self, feature, bboxes):
        return roi_align_pallas(feature, bboxes, output_size=self.output_size,
                                spatial_scale=self.spatial_scale,
                                sampling_ratio=2, aligned=self.aligned)


# ---------------- pure-python reference (mirrors the CUDA roi_align) ----------------
def _bilinear_ref(feat_c, y, x, H, W):
    if y < -1.0 or y > H or x < -1.0 or x > W:
        return np.zeros(feat_c.shape[0], np.float32)
    y = max(y, 0.0)
    x = max(x, 0.0)
    y_low, x_low = int(y), int(x)
    if y_low >= H - 1:
        y_high = y_low = H - 1
        y = float(y_low)
    else:
        y_high = y_low + 1
    if x_low >= W - 1:
        x_high = x_low = W - 1
        x = float(x_low)
    else:
        x_high = x_low + 1
    ly, lx = y - y_low, x - x_low
    hy, hx = 1.0 - ly, 1.0 - lx
    return (hy * hx * feat_c[:, y_low, x_low] + hy * lx * feat_c[:, y_low, x_high]
            + ly * hx * feat_c[:, y_high, x_low] + ly * lx * feat_c[:, y_high, x_high])


def roi_align_ref(feature, boxes, output_size, spatial_scale, sampling_ratio, aligned):
    feature = np.asarray(feature, np.float32)
    boxes = np.asarray(boxes, np.float32)
    N, C, H, W = feature.shape
    K = boxes.shape[0]
    oh, ow = output_size
    out = np.zeros((K, C, oh, ow), np.float32)
    off = 0.5 if aligned else 0.0
    g = sampling_ratio
    count = g * g
    for k in range(K):
        b = int(boxes[k, 0])
        x1, y1, x2, y2 = boxes[k, 1:] * spatial_scale - off
        rw, rh = x2 - x1, y2 - y1
        if not aligned:
            rw, rh = max(rw, 1.0), max(rh, 1.0)
        bh, bw = rh / oh, rw / ow
        for ph in range(oh):
            for pw in range(ow):
                acc = np.zeros(C, np.float32)
                for iy in range(g):
                    y = y1 + ph * bh + (iy + 0.5) * bh / g
                    for ix in range(g):
                        x = x1 + pw * bw + (ix + 0.5) * bw / g
                        acc += _bilinear_ref(feature[b], y, x, H, W)
                out[k, :, ph, pw] = acc / count
    return out


if __name__ == "__main__":
    key = jax.random.PRNGKey(0)
    feature = jax.random.normal(key, (2, 4, 16, 16), dtype=jnp.float32)
    # boxes in "image" coords (spatial_scale=0.5 maps them onto the 16x16 feature map);
    # last box extends past the feature map to exercise the out-of-range / clamp paths.
    bboxes = jnp.array([
        [0.0,  2.0,  2.0, 20.0, 24.0],
        [0.0,  0.0,  0.0, 31.0, 31.0],
        [1.0,  7.0,  5.0, 18.0, 28.0],
        [1.0, 10.0, 12.0, 40.0, 44.0],
    ], dtype=jnp.float32)

    spatial_scale = 0.5
    output_size = (7, 7)

    # Resident-feature (fast) path.
    for aligned in (False, True):
        mod = ROIAlign(spatial_scale=spatial_scale, output_size=output_size, aligned=aligned)
        out = jax.block_until_ready(mod(feature, bboxes))
        ref = roi_align_ref(feature, bboxes, output_size, spatial_scale, 2, aligned)
        np.testing.assert_allclose(np.asarray(out), ref, rtol=1e-2, atol=1e-2)

    # Per-ROI slab fallback path (used when the feature does not fit VMEM).
    out_slab = jax.block_until_ready(
        roi_align_pallas(feature, bboxes, output_size, spatial_scale,
                         sampling_ratio=2, aligned=False, force_slab_path=True))
    ref = roi_align_ref(feature, bboxes, output_size, spatial_scale, 2, False)
    np.testing.assert_allclose(np.asarray(out_slab), ref, rtol=1e-2, atol=1e-2)

    print("KERNEL_OK")
</pallas_src>

<mosaic_0001>
module attributes {stable_mosaic.version = 11 : i64} {
  func.func @kernel(%arg0: i32, %arg1: memref<8xi32, #tpu.memory_space<smem>>, %arg2: memref<8xf32, #tpu.memory_space<smem>>, %arg3: memref<8xf32, #tpu.memory_space<smem>>, %arg4: memref<8xf32, #tpu.memory_space<smem>>, %arg5: memref<8xf32, #tpu.memory_space<smem>>, %arg6: memref<2x16x64xf32, #tpu.memory_space<vmem>>, %arg7: memref<8x7x28xf32, #tpu.memory_space<vmem>>, %arg8: memref<7x64xf32, #tpu.memory_space<vmem>>, %arg9: memref<28x16xf32, #tpu.memory_space<vmem>>) attributes {dimension_semantics = [#tpu.dimension_semantics<parallel>], iteration_bounds = array<i64: 1>, scalar_prefetch = 0 : i64, scratch_operands = 2 : i64, tpu.core_type = #tpu.core_type<tc>, window_params = [{transform_indices = @transform_0, window_bounds = array<i64: 8>}, {transform_indices = @transform_1, window_bounds = array<i64: 8>}, {transform_indices = @transform_2, window_bounds = array<i64: 8>}, {transform_indices = @transform_3, window_bounds = array<i64: 8>}, {transform_indices = @transform_4, window_bounds = array<i64: 8>}, {pipeline_mode = #tpu.pipeline_mode<synchronous>, transform_indices = @transform_5, window_bounds = array<i64: 2, 16, 64>}, {transform_indices = @transform_6, window_bounds = array<i64: 8, 7, 28>}]} {
    %c8_i32 = arith.constant 8 : i32
    %0 = arith.muli %arg0, %c8_i32 : i32
    %c0_i32 = arith.constant 0 : i32
    %1 = arith.addi %0, %c0_i32 : i32
    %2 = arith.index_cast %1 : i32 to index
    %3 = memref.load %arg1[%2] : memref<8xi32, #tpu.memory_space<smem>>
    %4 = arith.index_cast %3 : i32 to index
    %c0 = arith.constant 0 : index
    %c0_0 = arith.constant 0 : index
    %5 = vector.load %arg6[%4, %c0, %c0_0] : memref<2x16x64xf32, #tpu.memory_space<vmem>>, vector<1x16x64xf32>
    %6 = vector.shape_cast %5 : vector<1x16x64xf32> to vector<16x64xf32>
    %7 = arith.index_cast %1 : i32 to index
    %8 = memref.load %arg2[%7] : memref<8xf32, #tpu.memory_space<smem>>
    %9 = arith.index_cast %1 : i32 to index
    %10 = memref.load %arg3[%9] : memref<8xf32, #tpu.memory_space<smem>>
    %11 = arith.index_cast %1 : i32 to index
    %12 = memref.load %arg4[%11] : memref<8xf32, #tpu.memory_space<smem>>
    %13 = arith.index_cast %1 : i32 to index
    %14 = memref.load %arg5[%13] : memref<8xf32, #tpu.memory_space<smem>>
    %cst = arith.constant 5.000000e-01 : f32
    %15 = arith.mulf %8, %cst : f32
    %cst_1 = arith.constant 0.000000e+00 : f32
    %16 = arith.subf %15, %cst_1 : f32
    %cst_2 = arith.constant 5.000000e-01 : f32
    %17 = arith.mulf %10, %cst_2 : f32
    %cst_3 = arith.constant 0.000000e+00 : f32
    %18 = arith.subf %17, %cst_3 : f32
    %cst_4 = arith.constant 5.000000e-01 : f32
    %19 = arith.mulf %12, %cst_4 : f32
    %cst_5 = arith.constant 0.000000e+00 : f32
    %20 = arith.subf %19, %cst_5 : f32
    %cst_6 = arith.constant 5.000000e-01 : f32
    %21 = arith.mulf %14, %cst_6 : f32
    %cst_7 = arith.constant 0.000000e+00 : f32
    %22 = arith.subf %21, %cst_7 : f32
    %23 = arith.subf %20, %16 : f32
    %24 = arith.subf %22, %18 : f32
    %cst_8 = arith.constant 1.000000e+00 : f32
    %25 = arith.maximumf %23, %cst_8 : f32
    %cst_9 = arith.constant 1.000000e+00 : f32
    %26 = arith.maximumf %24, %cst_9 : f32
    %cst_10 = arith.constant 7.000000e+00 : f32
    %27 = arith.divf %26, %cst_10 : f32
    %cst_11 = arith.constant 7.000000e+00 : f32
    %28 = arith.divf %25, %cst_11 : f32
    %29 = tpu.iota {dimensions = array<i32: 0>} : vector<7x16xi32>
    %30 = arith.sitofp %29 : vector<7x16xi32> to vector<7x16xf32>
    %31 = tpu.iota {dimensions = array<i32: 1>} : vector<7x16xi32>
    %32 = arith.sitofp %31 : vector<7x16xi32> to vector<7x16xf32>
    %cst_12 = arith.constant 0.000000e+00 : f32
    %33 = vector.broadcast %cst_12 : f32 to vector<7x16xf32>
    %cst_13 = arith.constant 2.500000e-01 : f32
    %34 = vector.broadcast %cst_13 : f32 to vector<7x16xf32>
    %35 = arith.addf %30, %34 : vector<7x16xf32>
    %36 = vector.broadcast %27 : f32 to vector<7x16xf32>
    %37 = arith.mulf %35, %36 : vector<7x16xf32>
    %38 = vector.broadcast %18 : f32 to vector<7x16xf32>
    %39 = arith.addf %38, %37 : vector<7x16xf32>
    %cst_14 = arith.constant -1.000000e+00 : f32
    %40 = vector.broadcast %cst_14 : f32 to vector<7x16xf32>
    %41 = arith.cmpf oge, %39, %40 : vector<7x16xf32>
    %cst_15 = arith.constant 1.600000e+01 : f32
    %42 = vector.broadcast %cst_15 : f32 to vector<7x16xf32>
    %43 = arith.cmpf ole, %39, %42 : vector<7x16xf32>
    %44 = arith.andi %41, %43 : vector<7x16xi1>
    %cst_16 = arith.constant 0.000000e+00 : f32
    %45 = vector.broadcast %cst_16 : f32 to vector<7x16xf32>
    %46 = arith.maximumf %39, %45 : vector<7x16xf32>
    %47 = math.floor %46 : vector<7x16xf32>
    %cst_17 = arith.constant 1.500000e+01 : f32
    %48 = vector.broadcast %cst_17 : f32 to vector<7x16xf32>
    %49 = arith.cmpf oge, %47, %48 : vector<7x16xf32>
    %cst_18 = arith.constant 1.500000e+01 : f32
    %50 = vector.broadcast %cst_18 : f32 to vector<7x16xf32>
    %51 = arith.select %49, %50, %47 : vector<7x16xi1>, vector<7x16xf32>
    %cst_19 = arith.constant 1.000000e+00 : f32
    %52 = vector.broadcast %cst_19 : f32 to vector<7x16xf32>
    %53 = arith.addf %51, %52 : vector<7x16xf32>
    %54 = arith.select %49, %51, %53 : vector<7x16xi1>, vector<7x16xf32>
    %55 = arith.select %49, %51, %46 : vector<7x16xi1>, vector<7x16xf32>
    %56 = arith.subf %55, %51 : vector<7x16xf32>
    %cst_20 = arith.constant 1.000000e+00 : f32
    %57 = vector.broadcast %cst_20 : f32 to vector<7x16xf32>
    %58 = arith.subf %57, %56 : vector<7x16xf32>
    %59 = arith.cmpf oeq, %32, %51 : vector<7x16xf32>
    %60 = arith.extui %59 : vector<7x16xi1> to vector<7x16xi32>
    %61 = arith.sitofp %60 : vector<7x16xi32> to vector<7x16xf32>
    %62 = arith.mulf %58, %61 : vector<7x16xf32>
    %63 = arith.cmpf oeq, %32, %54 : vector<7x16xf32>
    %64 = arith.extui %63 : vector<7x16xi1> to vector<7x16xi32>
    %65 = arith.sitofp %64 : vector<7x16xi32> to vector<7x16xf32>
    %66 = arith.mulf %56, %65 : vector<7x16xf32>
    %67 = arith.addf %62, %66 : vector<7x16xf32>
    %cst_21 = arith.constant 0.000000e+00 : f32
    %68 = vector.broadcast %cst_21 : f32 to vector<7x16xf32>
    %69 = arith.select %44, %67, %68 : vector<7x16xi1>, vector<7x16xf32>
    %70 = arith.addf %33, %69 : vector<7x16xf32>
    %cst_22 = arith.constant 7.500000e-01 : f32
    %71 = vector.broadcast %cst_22 : f32 to vector<7x16xf32>
    %72 = arith.addf %30, %71 : vector<7x16xf32>
    %73 = vector.broadcast %27 : f32 to vector<7x16xf32>
    %74 = arith.mulf %72, %73 : vector<7x16xf32>
    %75 = vector.broadcast %18 : f32 to vector<7x16xf32>
    %76 = arith.addf %75, %74 : vector<7x16xf32>
    %cst_23 = arith.constant -1.000000e+00 : f32
    %77 = vector.broadcast %cst_23 : f32 to vector<7x16xf32>
    %78 = arith.cmpf oge, %76, %77 : vector<7x16xf32>
    %cst_24 = arith.constant 1.600000e+01 : f32
    %79 = vector.broadcast %cst_24 : f32 to vector<7x16xf32>
    %80 = arith.cmpf ole, %76, %79 : vector<7x16xf32>
    %81 = arith.andi %78, %80 : vector<7x16xi1>
    %cst_25 = arith.constant 0.000000e+00 : f32
    %82 = vector.broadcast %cst_25 : f32 to vector<7x16xf32>
    %83 = arith.maximumf %76, %82 : vector<7x16xf32>
    %84 = math.floor %83 : vector<7x16xf32>
    %cst_26 = arith.constant 1.500000e+01 : f32
    %85 = vector.broadcast %cst_26 : f32 to vector<7x16xf32>
    %86 = arith.cmpf oge, %84, %85 : vector<7x16xf32>
    %cst_27 = arith.constant 1.500000e+01 : f32
    %87 = vector.broadcast %cst_27 : f32 to vector<7x16xf32>
    %88 = arith.select %86, %87, %84 : vector<7x16xi1>, vector<7x16xf32>
    %cst_28 = arith.constant 1.000000e+00 : f32
    %89 = vector.broadcast %cst_28 : f32 to vector<7x16xf32>
    %90 = arith.addf %88, %89 : vector<7x16xf32>
    %91 = arith.select %86, %88, %90 : vector<7x16xi1>, vector<7x16xf32>
    %92 = arith.select %86, %88, %83 : vector<7x16xi1>, vector<7x16xf32>
    %93 = arith.subf %92, %88 : vector<7x16xf32>
    %cst_29 = arith.constant 1.000000e+00 : f32
    %94 = vector.broadcast %cst_29 : f32 to vector<7x16xf32>
    %95 = arith.subf %94, %93 : vector<7x16xf32>
    %96 = arith.cmpf oeq, %32, %88 : vector<7x16xf32>
    %97 = arith.extui %96 : vector<7x16xi1> to vector<7x16xi32>
    %98 = arith.sitofp %97 : vector<7x16xi32> to vector<7x16xf32>
    %99 = arith.mulf %95, %98 : vector<7x16xf32>
    %100 = arith.cmpf oeq, %32, %91 : vector<7x16xf32>
    %101 = arith.extui %100 : vector<7x16xi1> to vector<7x16xi32>
    %102 = arith.sitofp %101 : vector<7x16xi32> to vector<7x16xf32>
    %103 = arith.mulf %93, %102 : vector<7x16xf32>
    %104 = arith.addf %99, %103 : vector<7x16xf32>
    %cst_30 = arith.constant 0.000000e+00 : f32
    %105 = vector.broadcast %cst_30 : f32 to vector<7x16xf32>
    %106 = arith.select %81, %104, %105 : vector<7x16xi1>, vector<7x16xf32>
    %107 = arith.addf %70, %106 : vector<7x16xf32>
    %cst_31 = arith.constant 2.000000e+00 : f32
    %108 = vector.broadcast %cst_31 : f32 to vector<7x16xf32>
    %109 = arith.divf %107, %108 : vector<7x16xf32>
    %110 = tpu.iota {dimensions = array<i32: 0>} : vector<7x16xi32>
    %111 = arith.sitofp %110 : vector<7x16xi32> to vector<7x16xf32>
    %112 = tpu.iota {dimensions = array<i32: 1>} : vector<7x16xi32>
    %113 = arith.sitofp %112 : vector<7x16xi32> to vector<7x16xf32>
    %cst_32 = arith.constant 0.000000e+00 : f32
    %114 = vector.broadcast %cst_32 : f32 to vector<7x16xf32>
    %cst_33 = arith.constant 2.500000e-01 : f32
    %115 = vector.broadcast %cst_33 : f32 to vector<7x16xf32>
    %116 = arith.addf %111, %115 : vector<7x16xf32>
    %117 = vector.broadcast %28 : f32 to vector<7x16xf32>
    %118 = arith.mulf %116, %117 : vector<7x16xf32>
    %119 = vector.broadcast %16 : f32 to vector<7x16xf32>
    %120 = arith.addf %119, %118 : vector<7x16xf32>
    %cst_34 = arith.constant -1.000000e+00 : f32
    %121 = vector.broadcast %cst_34 : f32 to vector<7x16xf32>
    %122 = arith.cmpf oge, %120, %121 : vector<7x16xf32>
    %cst_35 = arith.constant 1.600000e+01 : f32
    %123 = vector.broadcast %cst_35 : f32 to vector<7x16xf32>
    %124 = arith.cmpf ole, %120, %123 : vector<7x16xf32>
    %125 = arith.andi %122, %124 : vector<7x16xi1>
    %cst_36 = arith.constant 0.000000e+00 : f32
    %126 = vector.broadcast %cst_36 : f32 to vector<7x16xf32>
    %127 = arith.maximumf %120, %126 : vector<7x16xf32>
    %128 = math.floor %127 : vector<7x16xf32>
    %cst_37 = arith.constant 1.500000e+01 : f32
    %129 = vector.broadcast %cst_37 : f32 to vector<7x16xf32>
    %130 = arith.cmpf oge, %128, %129 : vector<7x16xf32>
    %cst_38 = arith.constant 1.500000e+01 : f32
    %131 = vector.broadcast %cst_38 : f32 to vector<7x16xf32>
    %132 = arith.select %130, %131, %128 : vector<7x16xi1>, vector<7x16xf32>
    %cst_39 = arith.constant 1.000000e+00 : f32
    %133 = vector.broadcast %cst_39 : f32 to vector<7x16xf32>
    %134 = arith.addf %132, %133 : vector<7x16xf32>
    %135 = arith.select %130, %132, %134 : vector<7x16xi1>, vector<7x16xf32>
    %136 = arith.select %130, %132, %127 : vector<7x16xi1>, vector<7x16xf32>
    %137 = arith.subf %136, %132 : vector<7x16xf32>
    %cst_40 = arith.constant 1.000000e+00 : f32
    %138 = vector.broadcast %cst_40 : f32 to vector<7x16xf32>
    %139 = arith.subf %138, %137 : vector<7x16xf32>
    %140 = arith.cmpf oeq, %113, %132 : vector<7x16xf32>
    %141 = arith.extui %140 : vector<7x16xi1> to vector<7x16xi32>
    %142 = arith.sitofp %141 : vector<7x16xi32> to vector<7x16xf32>
    %143 = arith.mulf %139, %142 : vector<7x16xf32>
    %144 = arith.cmpf oeq, %113, %135 : vector<7x16xf32>
    %145 = arith.extui %144 : vector<7x16xi1> to vector<7x16xi32>
    %146 = arith.sitofp %145 : vector<7x16xi32> to vector<7x16xf32>
    %147 = arith.mulf %137, %146 : vector<7x16xf32>
    %148 = arith.addf %143, %147 : vector<7x16xf32>
    %cst_41 = arith.constant 0.000000e+00 : f32
    %149 = vector.broadcast %cst_41 : f32 to vector<7x16xf32>
    %150 = arith.select %125, %148, %149 : vector<7x16xi1>, vector<7x16xf32>
    %151 = arith.addf %114, %150 : vector<7x16xf32>
    %cst_42 = arith.constant 7.500000e-01 : f32
    %152 = vector.broadcast %cst_42 : f32 to vector<7x16xf32>
    %153 = arith.addf %111, %152 : vector<7x16xf32>
    %154 = vector.broadcast %28 : f32 to vector<7x16xf32>
    %155 = arith.mulf %153, %154 : vector<7x16xf32>
    %156 = vector.broadcast %16 : f32 to vector<7x16xf32>
    %157 = arith.addf %156, %155 : vector<7x16xf32>
    %cst_43 = arith.constant -1.000000e+00 : f32
    %158 = vector.broadcast %cst_43 : f32 to vector<7x16xf32>
    %159 = arith.cmpf oge, %157, %158 : vector<7x16xf32>
    %cst_44 = arith.constant 1.600000e+01 : f32
    %160 = vector.broadcast %cst_44 : f32 to vector<7x16xf32>
    %161 = arith.cmpf ole, %157, %160 : vector<7x16xf32>
    %162 = arith.andi %159, %161 : vector<7x16xi1>
    %cst_45 = arith.constant 0.000000e+00 : f32
    %163 = vector.broadcast %cst_45 : f32 to vector<7x16xf32>
    %164 = arith.maximumf %157, %163 : vector<7x16xf32>
    %165 = math.floor %164 : vector<7x16xf32>
    %cst_46 = arith.constant 1.500000e+01 : f32
    %166 = vector.broadcast %cst_46 : f32 to vector<7x16xf32>
    %167 = arith.cmpf oge, %165, %166 : vector<7x16xf32>
    %cst_47 = arith.constant 1.500000e+01 : f32
    %168 = vector.broadcast %cst_47 : f32 to vector<7x16xf32>
    %169 = arith.select %167, %168, %165 : vector<7x16xi1>, vector<7x16xf32>
    %cst_48 = arith.constant 1.000000e+00 : f32
    %170 = vector.broadcast %cst_48 : f32 to vector<7x16xf32>
    %171 = arith.addf %169, %170 : vector<7x16xf32>
    %172 = arith.select %167, %169, %171 : vector<7x16xi1>, vector<7x16xf32>
    %173 = arith.select %167, %169, %164 : vector<7x16xi1>, vector<7x16xf32>
    %174 = arith.subf %173, %169 : vector<7x16xf32>
    %cst_49 = arith.constant 1.000000e+00 : f32
    %175 = vector.broadcast %cst_49 : f32 to vector<7x16xf32>
    %176 = arith.subf %175, %174 : vector<7x16xf32>
    %177 = arith.cmpf oeq, %113, %169 : vector<7x16xf32>
    %178 = arith.extui %177 : vector<7x16xi1> to vector<7x16xi32>
    %179 = arith.sitofp %178 : vector<7x16xi32> to vector<7x16xf32>
    %180 = arith.mulf %176, %179 : vector<7x16xf32>
    %181 = arith.cmpf oeq, %113, %172 : vector<7x16xf32>
    %182 = arith.extui %181 : vector<7x16xi1> to vector<7x16xi32>
    %183 = arith.sitofp %182 : vector<7x16xi32> to vector<7x16xf32>
    %184 = arith.mulf %174, %183 : vector<7x16xf32>
    %185 = arith.addf %180, %184 : vector<7x16xf32>
    %cst_50 = arith.constant 0.000000e+00 : f32
    %186 = vector.broadcast %cst_50 : f32 to vector<7x16xf32>
    %187 = arith.select %162, %185, %186 : vector<7x16xi1>, vector<7x16xf32>
    %188 = arith.addf %151, %187 : vector<7x16xf32>
    %cst_51 = arith.constant 2.000000e+00 : f32
    %189 = vector.broadcast %cst_51 : f32 to vector<7x16xf32>
    %190 = arith.divf %188, %189 : vector<7x16xf32>
    %cst_52 = arith.constant dense<0.000000e+00> : vector<7x64xf32>
    %191 = tpu.matmul %109, %6, %cst_52 {dimension_numbers = #tpu.dot_dimension_numbers<[1], [0], [0], [1], [0, 0, 1, 1], [], []>} : vector<7x16xf32>, vector<16x64xf32>, vector<7x64xf32> -> vector<7x64xf32>
    %c0_53 = arith.constant 0 : index
    %c0_54 = arith.constant 0 : index
    %192 = vector.load %arg8[%c0_53, %c0_54] : memref<7x64xf32, #tpu.memory_space<vmem>>, vector<7x64xf32>
    tpu.vector_store %arg8[%c0_53, %c0_54], %191 {strides = array<i32>} : memref<7x64xf32, #tpu.memory_space<vmem>>, vector<7x64xf32>,
    %c0_55 = arith.constant 0 : index
    %c0_56 = arith.constant 0 : index
    %193 = vector.load %arg8[%c0_55, %c0_56] : memref<7x64xf32, #tpu.memory_space<vmem>>, vector<7x16xf32>
    %c0_57 = arith.constant 0 : index
    %c0_58 = arith.constant 0 : index
    %194 = vector.load %arg9[%c0_57, %c0_58] : memref<28x16xf32, #tpu.memory_space<vmem>>, vector<7x16xf32>
    tpu.vector_store %arg9[%c0_57, %c0_58], %193 {strides = array<i32>} : memref<28x16xf32, #tpu.memory_space<vmem>>, vector<7x16xf32>,
    %c0_59 = arith.constant 0 : index
    %c16 = arith.constant 16 : index
    %195 = vector.load %arg8[%c0_59, %c16] : memref<7x64xf32, #tpu.memory_space<vmem>>, vector<7x16xf32>
    %c7 = arith.constant 7 : index
    %c0_60 = arith.constant 0 : index
    %196 = vector.load %arg9[%c7, %c0_60] : memref<28x16xf32, #tpu.memory_space<vmem>>, vector<7x16xf32>
    tpu.vector_store %arg9[%c7, %c0_60], %195 {strides = array<i32>} : memref<28x16xf32, #tpu.memory_space<vmem>>, vector<7x16xf32>,
    %c0_61 = arith.constant 0 : index
    %c32 = arith.constant 32 : index
    %197 = vector.load %arg8[%c0_61, %c32] : memref<7x64xf32, #tpu.memory_space<vmem>>, vector<7x16xf32>
    %c14 = arith.constant 14 : index
    %c0_62 = arith.constant 0 : index
    %198 = vector.load %arg9[%c14, %c0_62] : memref<28x16xf32, #tpu.memory_space<vmem>>, vector<7x16xf32>
    tpu.vector_store %arg9[%c14, %c0_62], %197 {strides = array<i32>} : memref<28x16xf32, #tpu.memory_space<vmem>>, vector<7x16xf32>,
    %c0_63 = arith.constant 0 : index
    %c48 = arith.constant 48 : index
    %199 = vector.load %arg8[%c0_63, %c48] : memref<7x64xf32, #tpu.memory_space<vmem>>, vector<7x16xf32>
    %c21 = arith.constant 21 : index
    %c0_64 = arith.constant 0 : index
    %200 = vector.load %arg9[%c21, %c0_64] : memref<28x16xf32, #tpu.memory_space<vmem>>, vector<7x16xf32>
    tpu.vector_store %arg9[%c21, %c0_64], %199 {strides = array<i32>} : memref<28x16xf32, #tpu.memory_space<vmem>>, vector<7x16xf32>,
    %c0_65 = arith.constant 0 : index
    %c0_66 = arith.constant 0 : index
    %201 = vector.load %arg9[%c0_65, %c0_66] : memref<28x16xf32, #tpu.memory_space<vmem>>, vector<28x16xf32>
    %cst_67 = arith.constant dense<0.000000e+00> : vector<7x28xf32>
    %202 = tpu.matmul %190, %201, %cst_67 {dimension_numbers = #tpu.dot_dimension_numbers<[1], [1], [0], [0], [0, 0, 1, 0], [], []>} : vector<7x16xf32>, vector<28x16xf32>, vector<7x28xf32> -> vector<7x28xf32>
    %c0_68 = arith.constant 0 : index
    %c0_69 = arith.constant 0 : index
    %c0_70 = arith.constant 0 : index
    %203 = vector.load %arg7[%c0_68, %c0_69, %c0_70] : memref<8x7x28xf32, #tpu.memory_space<vmem>>, vector<1x7x28xf32>
    %204 = vector.shape_cast %203 : vector<1x7x28xf32> to vector<7x28xf32>
    %205 = vector.shape_cast %202 : vector<7x28xf32> to vector<1x7x28xf32>
    tpu.vector_store %arg7[%c0_68, %c0_69, %c0_70], %205 {strides = array<i32>} : memref<8x7x28xf32, #tpu.memory_space<vmem>>, vector<1x7x28xf32>,
    %c1_i32 = arith.constant 1 : i32
    %206 = arith.addi %0, %c1_i32 : i32
    %207 = arith.index_cast %206 : i32 to index
    %208 = memref.load %arg1[%207] : memref<8xi32, #tpu.memory_space<smem>>
    %209 = arith.index_cast %208 : i32 to index
    %c0_71 = arith.constant 0 : index
    %c0_72 = arith.constant 0 : index
    %210 = vector.load %arg6[%209, %c0_71, %c0_72] : memref<2x16x64xf32, #tpu.memory_space<vmem>>, vector<1x16x64xf32>
    %211 = vector.shape_cast %210 : vector<1x16x64xf32> to vector<16x64xf32>
    %212 = arith.index_cast %206 : i32 to index
    %213 = memref.load %arg2[%212] : memref<8xf32, #tpu.memory_space<smem>>
    %214 = arith.index_cast %206 : i32 to index
    %215 = memref.load %arg3[%214] : memref<8xf32, #tpu.memory_space<smem>>
    %216 = arith.index_cast %206 : i32 to index
    %217 = memref.load %arg4[%216] : memref<8xf32, #tpu.memory_space<smem>>
    %218 = arith.index_cast %206 : i32 to index
    %219 = memref.load %arg5[%218] : memref<8xf32, #tpu.memory_space<smem>>
    %cst_73 = arith.constant 5.000000e-01 : f32
    %220 = arith.mulf %213, %cst_73 : f32
    %cst_74 = arith.constant 0.000000e+00 : f32
    %221 = arith.subf %220, %cst_74 : f32
    %cst_75 = arith.constant 5.000000e-01 : f32
    %222 = arith.mulf %215, %cst_75 : f32
    %cst_76 = arith.constant 0.000000e+00 : f32
    %223 = arith.subf %222, %cst_76 : f32
    %cst_77 = arith.constant 5.000000e-01 : f32
    %224 = arith.mulf %217, %cst_77 : f32
    %cst_78 = arith.constant 0.000000e+00 : f32
    %225 = arith.subf %224, %cst_78 : f32
    %cst_79 = arith.constant 5.000000e-01 : f32
    %226 = arith.mulf %219, %cst_79 : f32
    %cst_80 = arith.constant 0.000000e+00 : f32
    %227 = arith.subf %226, %cst_80 : f32
    %228 = arith.subf %225, %221 : f32
    %229 = arith.subf %227, %223 : f32
    %cst_81 = arith.constant 1.000000e+00 : f32
    %230 = arith.maximumf %228, %cst_81 : f32
    %cst_82 = arith.constant 1.000000e+00 : f32
    %231 = arith.maximumf %229, %cst_82 : f32
    %cst_83 = arith.constant 7.000000e+00 : f32
    %232 = arith.divf %231, %cst_83 : f32
    %cst_84 = arith.constant 7.000000e+00 : f32
    %233 = arith.divf %230, %cst_84 : f32
    %234 = tpu.iota {dimensions = array<i32: 0>} : vector<7x16xi32>
    %235 = arith.sitofp %234 : vector<7x16xi32> to vector<7x16xf32>
    %236 = tpu.iota {dimensions = array<i32: 1>} : vector<7x16xi32>
    %237 = arith.sitofp %236 : vector<7x16xi32> to vector<7x16xf32>
    %cst_85 = arith.constant 0.000000e+00 : f32
    %238 = vector.broadcast %cst_85 : f32 to vector<7x16xf32>
    %cst_86 = arith.constant 2.500000e-01 : f32
    %239 = vector.broadcast %cst_86 : f32 to vector<7x16xf32>
    %240 = arith.addf %235, %239 : vector<7x16xf32>
    %241 = vector.broadcast %232 : f32 to vector<7x16xf32>
    %242 = arith.mulf %240, %241 : vector<7x16xf32>
    %243 = vector.broadcast %223 : f32 to vector<7x16xf32>
    %244 = arith.addf %243, %242 : vector<7x16xf32>
    %cst_87 = arith.constant -1.000000e+00 : f32
    %245 = vector.broadcast %cst_87 : f32 to vector<7x16xf32>
    %246 = arith.cmpf oge, %244, %245 : vector<7x16xf32>
    %cst_88 = arith.constant 1.600000e+01 : f32
    %247 = vector.broadcast %cst_88 : f32 to vector<7x16xf32>
    %248 = arith.cmpf ole, %244, %247 : vector<7x16xf32>
    %249 = arith.andi %246, %248 : vector<7x16xi1>
    %cst_89 = arith.constant 0.000000e+00 : f32
    %250 = vector.broadcast %cst_89 : f32 to vector<7x16xf32>
    %251 = arith.maximumf %244, %250 : vector<7x16xf32>
    %252 = math.floor %251 : vector<7x16xf32>
    %cst_90 = arith.constant 1.500000e+01 : f32
    %253 = vector.broadcast %cst_90 : f32 to vector<7x16xf32>
    %254 = arith.cmpf oge, %252, %253 : vector<7x16xf32>
    %cst_91 = arith.constant 1.500000e+01 : f32
    %255 = vector.broadcast %cst_91 : f32 to vector<7x16xf32>
    %256 = arith.select %254, %255, %252 : vector<7x16xi1>, vector<7x16xf32>
    %cst_92 = arith.constant 1.000000e+00 : f32
    %257 = vector.broadcast %cst_92 : f32 to vector<7x16xf32>
    %258 = arith.addf %256, %257 : vector<7x16xf32>
    %259 = arith.select %254, %256, %258 : vector<7x16xi1>, vector<7x16xf32>
    %260 = arith.select %254, %256, %251 : vector<7x16xi1>, vector<7x16xf32>
    %261 = arith.subf %260, %256 : vector<7x16xf32>
    %cst_93 = arith.constant 1.000000e+00 : f32
    %262 = vector.broadcast %cst_93 : f32 to vector<7x16xf32>
    %263 = arith.subf %262, %261 : vector<7x16xf32>
    %264 = arith.cmpf oeq, %237, %256 : vector<7x16xf32>
    %265 = arith.extui %264 : vector<7x16xi1> to vector<7x16xi32>
    %266 = arith.sitofp %265 : vector<7x16xi32> to vector<7x16xf32>
    %267 = arith.mulf %263, %266 : vector<7x16xf32>
    %268 = arith.cmpf oeq, %237, %259 : vector<7x16xf32>
    %269 = arith.extui %268 : vector<7x16xi1> to vector<7x16xi32>
    %270 = arith.sitofp %269 : vector<7x16xi32> to vector<7x16xf32>
    %271 = arith.mulf %261, %270 : vector<7x16xf32>
    %272 = arith.addf %267, %271 : vector<7x16xf32>
    %cst_94 = arith.constant 0.000000e+00 : f32
    %273 = vector.broadcast %cst_94 : f32 to vector<7x16xf32>
    %274 = arith.select %249, %272, %273 : vector<7x16xi1>, vector<7x16xf32>
    %275 = arith.addf %238, %274 : vector<7x16xf32>
    %cst_95 = arith.constant 7.500000e-01 : f32
    %276 = vector.broadcast %cst_95 : f32 to vector<7x16xf32>
    %277 = arith.addf %235, %276 : vector<7x16xf32>
    %278 = vector.broadcast %232 : f32 to vector<7x16xf32>
    %279 = arith.mulf %277, %278 : vector<7x16xf32>
    %280 = vector.broadcast %223 : f32 to vector<7x16xf32>
    %281 = arith.addf %280, %279 : vector<7x16xf32>
    %cst_96 = arith.constant -1.000000e+00 : f32
    %282 = vector.broadcast %cst_96 : f32 to vector<7x16xf32>
    %283 = arith.cmpf oge, %281, %282 : vector<7x16xf32>
    %cst_97 = arith.constant 1.600000e+01 : f32
    %284 = vector.broadcast %cst_97 : f32 to vector<7x16xf32>
    %285 = arith.cmpf ole, %281, %284 : vector<7x16xf32>
    %286 = arith.andi %283, %285 : vector<7x16xi1>
    %cst_98 = arith.constant 0.000000e+00 : f32
    %287 = vector.broadcast %cst_98 : f32 to vector<7x16xf32>
    %288 = arith.maximumf %281, %287 : vector<7x16xf32>
    %289 = math.floor %288 : vector<7x16xf32>
    %cst_99 = arith.constant 1.500000e+01 : f32
    %290 = vector.broadcast %cst_99 : f32 to vector<7x16xf32>
    %291 = arith.cmpf oge, %289, %290 : vector<7x16xf32>
    %cst_100 = arith.constant 1.500000e+01 : f32
    %292 = vector.broadcast %cst_100 : f32 to vector<7x16xf32>
    %293 = arith.select %291, %292, %289 : vector<7x16xi1>, vector<7x16xf32>
    %cst_101 = arith.constant 1.000000e+00 : f32
    %294 = vector.broadcast %cst_101 : f32 to vector<7x16xf32>
    %295 = arith.addf %293, %294 : vector<7x16xf32>
    %296 = arith.select %291, %293, %295 : vector<7x16xi1>, vector<7x16xf32>
    %297 = arith.select %291, %293, %288 : vector<7x16xi1>, vector<7x16xf32>
    %298 = arith.subf %297, %293 : vector<7x16xf32>
    %cst_102 = arith.constant 1.000000e+00 : f32
    %299 = vector.broadcast %cst_102 : f32 to vector<7x16xf32>
    %300 = arith.subf %299, %298 : vector<7x16xf32>
    %301 = arith.cmpf oeq, %237, %293 : vector<7x16xf32>
    %302 = arith.extui %301 : vector<7x16xi1> to vector<7x16xi32>
    %303 = arith.sitofp %302 : vector<7x16xi32> to vector<7x16xf32>
    %304 = arith.mulf %300, %303 : vector<7x16xf32>
    %305 = arith.cmpf oeq, %237, %296 : vector<7x16xf32>
    %306 = arith.extui %305 : vector<7x16xi1> to vector<7x16xi32>
    %307 = arith.sitofp %306 : vector<7x16xi32> to vector<7x16xf32>
    %308 = arith.mulf %298, %307 : vector<7x16xf32>
    %309 = arith.addf %304, %308 : vector<7x16xf32>
    %cst_103 = arith.constant 0.000000e+00 : f32
    %310 = vector.broadcast %cst_103 : f32 to vector<7x16xf32>
    %311 = arith.select %286, %309, %310 : vector<7x16xi1>, vector<7x16xf32>
    %312 = arith.addf %275, %311 : vector<7x16xf32>
    %cst_104 = arith.constant 2.000000e+00 : f32
    %313 = vector.broadcast %cst_104 : f32 to vector<7x16xf32>
    %314 = arith.divf %312, %313 : vector<7x16xf32>
    %315 = tpu.iota {dimensions = array<i32: 0>} : vector<7x16xi32>
    %316 = arith.sitofp %315 : vector<7x16xi32> to vector<7x16xf32>
    %317 = tpu.iota {dimensions = array<i32: 1>} : vector<7x16xi32>
    %318 = arith.sitofp %317 : vector<7x16xi32> to vector<7x16xf32>
    %cst_105 = arith.constant 0.000000e+00 : f32
    %319 = vector.broadcast %cst_105 : f32 to vector<7x16xf32>
    %cst_106 = arith.constant 2.500000e-01 : f32
    %320 = vector.broadcast %cst_106 : f32 to vector<7x16xf32>
    %321 = arith.addf %316, %320 : vector<7x16xf32>
    %322 = vector.broadcast %233 : f32 to vector<7x16xf32>
    %323 = arith.mulf %321, %322 : vector<7x16xf32>
    %324 = vector.broadcast %221 : f32 to vector<7x16xf32>
    %325 = arith.addf %324, %323 : vector<7x16xf32>
    %cst_107 = arith.constant -1.000000e+00 : f32
    %326 = vector.broadcast %cst_107 : f32 to vector<7x16xf32>
    %327 = arith.cmpf oge, %325, %326 : vector<7x16xf32>
    %cst_108 = arith.constant 1.600000e+01 : f32
    %328 = vector.broadcast %cst_108 : f32 to vector<7x16xf32>
    %329 = arith.cmpf ole, %325, %328 : vector<7x16xf32>
    %330 = arith.andi %327, %329 : vector<7x16xi1>
    %cst_109 = arith.constant 0.000000e+00 : f32
    %331 = vector.broadcast %cst_109 : f32 to vector<7x16xf32>
    %332 = arith.maximumf %325, %331 : vector<7x16xf32>
    %333 = math.floor %332 : vector<7x16xf32>
    %cst_110 = arith.constant 1.500000e+01 : f32
    %334 = vector.broadcast %cst_110 : f32 to vector<7x16xf32>
    %335 = arith.cmpf oge, %333, %334 : vector<7x16xf32>
    %cst_111 = arith.constant 1.500000e+01 : f32
    %336 = vector.broadcast %cst_111 : f32 to vector<7x16xf32>
    %337 = arith.select %335, %336, %333 : vector<7x16xi1>, vector<7x16xf32>
    %cst_112 = arith.constant 1.000000e+00 : f32
    %338 = vector.broadcast %cst_112 : f32 to vector<7x16xf32>
    %339 = arith.addf %337, %338 : vector<7x16xf32>
    %340 = arith.select %335, %337, %339 : vector<7x16xi1>, vector<7x16xf32>
    %341 = arith.select %335, %337, %332 : vector<7x16xi1>, vector<7x16xf32>
    %342 = arith.subf %341, %337 : vector<7x16xf32>
    %cst_113 = arith.constant 1.000000e+00 : f32
    %343 = vector.broadcast %cst_113 : f32 to vector<7x16xf32>
    %344 = arith.subf %343, %342 : vector<7x16xf32>
    %345 = arith.cmpf oeq, %318, %337 : vector<7x16xf32>
    %346 = arith.extui %345 : vector<7x16xi1> to vector<7x16xi32>
    %347 = arith.sitofp %346 : vector<7x16xi32> to vector<7x16xf32>
    %348 = arith.mulf %344, %347 : vector<7x16xf32>
    %349 = arith.cmpf oeq, %318, %340 : vector<7x16xf32>
    %350 = arith.extui %349 : vector<7x16xi1> to vector<7x16xi32>
    %351 = arith.sitofp %350 : vector<7x16xi32> to vector<7x16xf32>
    %352 = arith.mulf %342, %351 : vector<7x16xf32>
    %353 = arith.addf %348, %352 : vector<7x16xf32>
    %cst_114 = arith.constant 0.000000e+00 : f32
    %354 = vector.broadcast %cst_114 : f32 to vector<7x16xf32>
    %355 = arith.select %330, %353, %354 : vector<7x16xi1>, vector<7x16xf32>
    %356 = arith.addf %319, %355 : vector<7x16xf32>
    %cst_115 = arith.constant 7.500000e-01 : f32
    %357 = vector.broadcast %cst_115 : f32 to vector<7x16xf32>
    %358 = arith.addf %316, %357 : vector<7x16xf32>
    %359 = vector.broadcast %233 : f32 to vector<7x16xf32>
    %360 = arith.mulf %358, %359 : vector<7x16xf32>
    %361 = vector.broadcast %221 : f32 to vector<7x16xf32>
    %362 = arith.addf %361, %360 : vector<7x16xf32>
    %cst_116 = arith.constant -1.000000e+00 : f32
    %363 = vector.broadcast %cst_116 : f32 to vector<7x16xf32>
    %364 = arith.cmpf oge, %362, %363 : vector<7x16xf32>
    %cst_117 = arith.constant 1.600000e+01 : f32
    %365 = vector.broadcast %cst_117 : f32 to vector<7x16xf32>
    %366 = arith.cmpf ole, %362, %365 : vector<7x16xf32>
    %367 = arith.andi %364, %366 : vector<7x16xi1>
    %cst_118 = arith.constant 0.000000e+00 : f32
    %368 = vector.broadcast %cst_118 : f32 to vector<7x16xf32>
    %369 = arith.maximumf %362, %368 : vector<7x16xf32>
    %370 = math.floor %369 : vector<7x16xf32>
    %cst_119 = arith.constant 1.500000e+01 : f32
    %371 = vector.broadcast %cst_119 : f32 to vector<7x16xf32>
    %372 = arith.cmpf oge, %370, %371 : vector<7x16xf32>
    %cst_120 = arith.constant 1.500000e+01 : f32
    %373 = vector.broadcast %cst_120 : f32 to vector<7x16xf32>
    %374 = arith.select %372, %373, %370 : vector<7x16xi1>, vector<7x16xf32>
    %cst_121 = arith.constant 1.000000e+00 : f32
    %375 = vector.broadcast %cst_121 : f32 to vector<7x16xf32>
    %376 = arith.addf %374, %375 : vector<7x16xf32>
    %377 = arith.select %372, %374, %376 : vector<7x16xi1>, vector<7x16xf32>
    %378 = arith.select %372, %374, %369 : vector<7x16xi1>, vector<7x16xf32>
    %379 = arith.subf %378, %374 : vector<7x16xf32>
    %cst_122 = arith.constant 1.000000e+00 : f32
    %380 = vector.broadcast %cst_122 : f32 to vector<7x16xf32>
    %381 = arith.subf %380, %379 : vector<7x16xf32>
    %382 = arith.cmpf oeq, %318, %374 : vector<7x16xf32>
    %383 = arith.extui %382 : vector<7x16xi1> to vector<7x16xi32>
    %384 = arith.sitofp %383 : vector<7x16xi32> to vector<7x16xf32>
    %385 = arith.mulf %381, %384 : vector<7x16xf32>
    %386 = arith.cmpf oeq, %318, %377 : vector<7x16xf32>
    %387 = arith.extui %386 : vector<7x16xi1> to vector<7x16xi32>
    %388 = arith.sitofp %387 : vector<7x16xi32> to vector<7x16xf32>
    %389 = arith.mulf %379, %388 : vector<7x16xf32>
    %390 = arith.addf %385, %389 : vector<7x16xf32>
    %cst_123 = arith.constant 0.000000e+00 : f32
    %391 = vector.broadcast %cst_123 : f32 to vector<7x16xf32>
    %392 = arith.select %367, %390, %391 : vector<7x16xi1>, vector<7x16xf32>
    %393 = arith.addf %356, %392 : vector<7x16xf32>
    %cst_124 = arith.constant 2.000000e+00 : f32
    %394 = vector.broadcast %cst_124 : f32 to vector<7x16xf32>
    %395 = arith.divf %393, %394 : vector<7x16xf32>
    %cst_125 = arith.constant dense<0.000000e+00> : vector<7x64xf32>
    %396 = tpu.matmul %314, %211, %cst_125 {dimension_numbers = #tpu.dot_dimension_numbers<[1], [0], [0], [1], [0, 0, 1, 1], [], []>} : vector<7x16xf32>, vector<16x64xf32>, vector<7x64xf32> -> vector<7x64xf32>
    %c0_126 = arith.constant 0 : index
    %c0_127 = arith.constant 0 : index
    %397 = vector.load %arg8[%c0_126, %c0_127] : memref<7x64xf32, #tpu.memory_space<vmem>>, vector<7x64xf32>
    tpu.vector_store %arg8[%c0_126, %c0_127], %396 {strides = array<i32>} : memref<7x64xf32, #tpu.memory_space<vmem>>, vector<7x64xf32>,
    %c0_128 = arith.constant 0 : index
    %c0_129 = arith.constant 0 : index
    %398 = vector.load %arg8[%c0_128, %c0_129] : memref<7x64xf32, #tpu.memory_space<vmem>>, vector<7x16xf32>
    %c0_130 = arith.constant 0 : index
    %c0_131 = arith.constant 0 : index
    %399 = vector.load %arg9[%c0_130, %c0_131] : memref<28x16xf32, #tpu.memory_space<vmem>>, vector<7x16xf32>
    tpu.vector_store %arg9[%c0_130, %c0_131], %398 {strides = array<i32>} : memref<28x16xf32, #tpu.memory_space<vmem>>, vector<7x16xf32>,
    %c0_132 = arith.constant 0 : index
    %c16_133 = arith.constant 16 : index
    %400 = vector.load %arg8[%c0_132, %c16_133] : memref<7x64xf32, #tpu.memory_space<vmem>>, vector<7x16xf32>
    %c7_134 = arith.constant 7 : index
    %c0_135 = arith.constant 0 : index
    %401 = vector.load %arg9[%c7_134, %c0_135] : memref<28x16xf32, #tpu.memory_space<vmem>>, vector<7x16xf32>
    tpu.vector_store %arg9[%c7_134, %c0_135], %400 {strides = array<i32>} : memref<28x16xf32, #tpu.memory_space<vmem>>, vector<7x16xf32>,
    %c0_136 = arith.constant 0 : index
    %c32_137 = arith.constant 32 : index
    %402 = vector.load %arg8[%c0_136, %c32_137] : memref<7x64xf32, #tpu.memory_space<vmem>>, vector<7x16xf32>
    %c14_138 = arith.constant 14 : index
    %c0_139 = arith.constant 0 : index
    %403 = vector.load %arg9[%c14_138, %c0_139] : memref<28x16xf32, #tpu.memory_space<vmem>>, vector<7x16xf32>
    tpu.vector_store %arg9[%c14_138, %c0_139], %402 {strides = array<i32>} : memref<28x16xf32, #tpu.memory_space<vmem>>, vector<7x16xf32>,
    %c0_140 = arith.constant 0 : index
    %c48_141 = arith.constant 48 : index
    %404 = vector.load %arg8[%c0_140, %c48_141] : memref<7x64xf32, #tpu.memory_space<vmem>>, vector<7x16xf32>
    %c21_142 = arith.constant 21 : index
    %c0_143 = arith.constant 0 : index
    %405 = vector.load %arg9[%c21_142, %c0_143] : memref<28x16xf32, #tpu.memory_space<vmem>>, vector<7x16xf32>
    tpu.vector_store %arg9[%c21_142, %c0_143], %404 {strides = array<i32>} : memref<28x16xf32, #tpu.memory_space<vmem>>, vector<7x16xf32>,
    %c0_144 = arith.constant 0 : index
    %c0_145 = arith.constant 0 : index
    %406 = vector.load %arg9[%c0_144, %c0_145] : memref<28x16xf32, #tpu.memory_space<vmem>>, vector<28x16xf32>
    %cst_146 = arith.constant dense<0.000000e+00> : vector<7x28xf32>
    %407 = tpu.matmul %395, %406, %cst_146 {dimension_numbers = #tpu.dot_dimension_numbers<[1], [1], [0], [0], [0, 0, 1, 0], [], []>} : vector<7x16xf32>, vector<28x16xf32>, vector<7x28xf32> -> vector<7x28xf32>
    %c1 = arith.constant 1 : index
    %c0_147 = arith.constant 0 : index
    %c0_148 = arith.constant 0 : index
    %408 = vector.load %arg7[%c1, %c0_147, %c0_148] : memref<8x7x28xf32, #tpu.memory_space<vmem>>, vector<1x7x28xf32>
    %409 = vector.shape_cast %408 : vector<1x7x28xf32> to vector<7x28xf32>
    %410 = vector.shape_cast %407 : vector<7x28xf32> to vector<1x7x28xf32>
    tpu.vector_store %arg7[%c1, %c0_147, %c0_148], %410 {strides = array<i32>} : memref<8x7x28xf32, #tpu.memory_space<vmem>>, vector<1x7x28xf32>,
    %c2_i32 = arith.constant 2 : i32
    %411 = arith.addi %0, %c2_i32 : i32
    %412 = arith.index_cast %411 : i32 to index
    %413 = memref.load %arg1[%412] : memref<8xi32, #tpu.memory_space<smem>>
    %414 = arith.index_cast %413 : i32 to index
    %c0_149 = arith.constant 0 : index
    %c0_150 = arith.constant 0 : index
    %415 = vector.load %arg6[%414, %c0_149, %c0_150] : memref<2x16x64xf32, #tpu.memory_space<vmem>>, vector<1x16x64xf32>
    %416 = vector.shape_cast %415 : vector<1x16x64xf32> to vector<16x64xf32>
    %417 = arith.index_cast %411 : i32 to index
    %418 = memref.load %arg2[%417] : memref<8xf32, #tpu.memory_space<smem>>
    %419 = arith.index_cast %411 : i32 to index
    %420 = memref.load %arg3[%419] : memref<8xf32, #tpu.memory_space<smem>>
    %421 = arith.index_cast %411 : i32 to index
    %422 = memref.load %arg4[%421] : memref<8xf32, #tpu.memory_space<smem>>
    %423 = arith.index_cast %411 : i32 to index
    %424 = memref.load %arg5[%423] : memref<8xf32, #tpu.memory_space<smem>>
    %cst_151 = arith.constant 5.000000e-01 : f32
    %425 = arith.mulf %418, %cst_151 : f32
    %cst_152 = arith.constant 0.000000e+00 : f32
    %426 = arith.subf %425, %cst_152 : f32
    %cst_153 = arith.constant 5.000000e-01 : f32
    %427 = arith.mulf %420, %cst_153 : f32
    %cst_154 = arith.constant 0.000000e+00 : f32
    %428 = arith.subf %427, %cst_154 : f32
    %cst_155 = arith.constant 5.000000e-01 : f32
    %429 = arith.mulf %422, %cst_155 : f32
    %cst_156 = arith.constant 0.000000e+00 : f32
    %430 = arith.subf %429, %cst_156 : f32
    %cst_157 = arith.constant 5.000000e-01 : f32
    %431 = arith.mulf %424, %cst_157 : f32
    %cst_158 = arith.constant 0.000000e+00 : f32
    %432 = arith.subf %431, %cst_158 : f32
    %433 = arith.subf %430, %426 : f32
    %434 = arith.subf %432, %428 : f32
    %cst_159 = arith.constant 1.000000e+00 : f32
    %435 = arith.maximumf %433, %cst_159 : f32
    %cst_160 = arith.constant 1.000000e+00 : f32
    %436 = arith.maximumf %434, %cst_160 : f32
    %cst_161 = arith.constant 7.000000e+00 : f32
    %437 = arith.divf %436, %cst_161 : f32
    %cst_162 = arith.constant 7.000000e+00 : f32
    %438 = arith.divf %435, %cst_162 : f32
    %439 = tpu.iota {dimensions = array<i32: 0>} : vector<7x16xi32>
    %440 = arith.sitofp %439 : vector<7x16xi32> to vector<7x16xf32>
    %441 = tpu.iota {dimensions = array<i32: 1>} : vector<7x16xi32>
    %442 = arith.sitofp %441 : vector<7x16xi32> to vector<7x16xf32>
    %cst_163 = arith.constant 0.000000e+00 : f32
    %443 = vector.broadcast %cst_163 : f32 to vector<7x16xf32>
    %cst_164 = arith.constant 2.500000e-01 : f32
    %444 = vector.broadcast %cst_164 : f32 to vector<7x16xf32>
    %445 = arith.addf %440, %444 : vector<7x16xf32>
    %446 = vector.broadcast %437 : f32 to vector<7x16xf32>
    %447 = arith.mulf %445, %446 : vector<7x16xf32>
    %448 = vector.broadcast %428 : f32 to vector<7x16xf32>
    %449 = arith.addf %448, %447 : vector<7x16xf32>
    %cst_165 = arith.constant -1.000000e+00 : f32
    %450 = vector.broadcast %cst_165 : f32 to vector<7x16xf32>
    %451 = arith.cmpf oge, %449, %450 : vector<7x16xf32>
    %cst_166 = arith.constant 1.600000e+01 : f32
    %452 = vector.broadcast %cst_166 : f32 to vector<7x16xf32>
    %453 = arith.cmpf ole, %449, %452 : vector<7x16xf32>
    %454 = arith.andi %451, %453 : vector<7x16xi1>
    %cst_167 = arith.constant 0.000000e+00 : f32
    %455 = vector.broadcast %cst_167 : f32 to vector<7x16xf32>
    %456 = arith.maximumf %449, %455 : vector<7x16xf32>
    %457 = math.floor %456 : vector<7x16xf32>
    %cst_168 = arith.constant 1.500000e+01 : f32
    %458 = vector.broadcast %cst_168 : f32 to vector<7x16xf32>
    %459 = arith.cmpf oge, %457, %458 : vector<7x16xf32>
    %cst_169 = arith.constant 1.500000e+01 : f32
    %460 = vector.broadcast %cst_169 : f32 to vector<7x16xf32>
    %461 = arith.select %459, %460, %457 : vector<7x16xi1>, vector<7x16xf32>
    %cst_170 = arith.constant 1.000000e+00 : f32
    %462 = vector.broadcast %cst_170 : f32 to vector<7x16xf32>
    %463 = arith.addf %461, %462 : vector<7x16xf32>
    %464 = arith.select %459, %461, %463 : vector<7x16xi1>, vector<7x16xf32>
    %465 = arith.select %459, %461, %456 : vector<7x16xi1>, vector<7x16xf32>
    %466 = arith.subf %465, %461 : vector<7x16xf32>
    %cst_171 = arith.constant 1.000000e+00 : f32
    %467 = vector.broadcast %cst_171 : f32 to vector<7x16xf32>
    %468 = arith.subf %467, %466 : vector<7x16xf32>
    %469 = arith.cmpf oeq, %442, %461 : vector<7x16xf32>
    %470 = arith.extui %469 : vector<7x16xi1> to vector<7x16xi32>
    %471 = arith.sitofp %470 : vector<7x16xi32> to vector<7x16xf32>
    %472 = arith.mulf %468, %471 : vector<7x16xf32>
    %473 = arith.cmpf oeq, %442, %464 : vector<7x16xf32>
    %474 = arith.extui %473 : vector<7x16xi1> to vector<7x16xi32>
    %475 = arith.sitofp %474 : vector<7x16xi32> to vector<7x16xf32>
    %476 = arith.mulf %466, %475 : vector<7x16xf32>
    %477 = arith.addf %472, %476 : vector<7x16xf32>
    %cst_172 = arith.constant 0.000000e+00 : f32
    %478 = vector.broadcast %cst_172 : f32 to vector<7x16xf32>
    %479 = arith.select %454, %477, %478 : vector<7x16xi1>, vector<7x16xf32>
    %480 = arith.addf %443, %479 : vector<7x16xf32>
    %cst_173 = arith.constant 7.500000e-01 : f32
    %481 = vector.broadcast %cst_173 : f32 to vector<7x16xf32>
    %482 = arith.addf %440, %481 : vector<7x16xf32>
    %483 = vector.broadcast %437 : f32 to vector<7x16xf32>
    %484 = arith.mulf %482, %483 : vector<7x16xf32>
    %485 = vector.broadcast %428 : f32 to vector<7x16xf32>
    %486 = arith.addf %485, %484 : vector<7x16xf32>
    %cst_174 = arith.constant -1.000000e+00 : f32
    %487 = vector.broadcast %cst_174 : f32 to vector<7x16xf32>
    %488 = arith.cmpf oge, %486, %487 : vector<7x16xf32>
    %cst_175 = arith.constant 1.600000e+01 : f32
    %489 = vector.broadcast %cst_175 : f32 to vector<7x16xf32>
    %490 = arith.cmpf ole, %486, %489 : vector<7x16xf32>
    %491 = arith.andi %488, %490 : vector<7x16xi1>
    %cst_176 = arith.constant 0.000000e+00 : f32
    %492 = vector.broadcast %cst_176 : f32 to vector<7x16xf32>
    %493 = arith.maximumf %486, %492 : vector<7x16xf32>
    %494 = math.floor %493 : vector<7x16xf32>
    %cst_177 = arith.constant 1.500000e+01 : f32
    %495 = vector.broadcast %cst_177 : f32 to vector<7x16xf32>
    %496 = arith.cmpf oge, %494, %495 : vector<7x16xf32>
    %cst_178 = arith.constant 1.500000e+01 : f32
    %497 = vector.broadcast %cst_178 : f32 to vector<7x16xf32>
    %498 = arith.select %496, %497, %494 : vector<7x16xi1>, vector<7x16xf32>
    %cst_179 = arith.constant 1.000000e+00 : f32
    %499 = vector.broadcast %cst_179 : f32 to vector<7x16xf32>
    %500 = arith.addf %498, %499 : vector<7x16xf32>
    %501 = arith.select %496, %498, %500 : vector<7x16xi1>, vector<7x16xf32>
    %502 = arith.select %496, %498, %493 : vector<7x16xi1>, vector<7x16xf32>
    %503 = arith.subf %502, %498 : vector<7x16xf32>
    %cst_180 = arith.constant 1.000000e+00 : f32
    %504 = vector.broadcast %cst_180 : f32 to vector<7x16xf32>
    %505 = arith.subf %504, %503 : vector<7x16xf32>
    %506 = arith.cmpf oeq, %442, %498 : vector<7x16xf32>
    %507 = arith.extui %506 : vector<7x16xi1> to vector<7x16xi32>
    %508 = arith.sitofp %507 : vector<7x16xi32> to vector<7x16xf32>
    %509 = arith.mulf %505, %508 : vector<7x16xf32>
    %510 = arith.cmpf oeq, %442, %501 : vector<7x16xf32>
    %511 = arith.extui %510 : vector<7x16xi1> to vector<7x16xi32>
    %512 = arith.sitofp %511 : vector<7x16xi32> to vector<7x16xf32>
    %513 = arith.mulf %503, %512 : vector<7x16xf32>
    %514 = arith.addf %509, %513 : vector<7x16xf32>
    %cst_181 = arith.constant 0.000000e+00 : f32
    %515 = vector.broadcast %cst_181 : f32 to vector<7x16xf32>
    %516 = arith.select %491, %514, %515 : vector<7x16xi1>, vector<7x16xf32>
    %517 = arith.addf %480, %516 : vector<7x16xf32>
    %cst_182 = arith.constant 2.000000e+00 : f32
    %518 = vector.broadcast %cst_182 : f32 to vector<7x16xf32>
    %519 = arith.divf %517, %518 : vector<7x16xf32>
    %520 = tpu.iota {dimensions = array<i32: 0>} : vector<7x16xi32>
    %521 = arith.sitofp %520 : vector<7x16xi32> to vector<7x16xf32>
    %522 = tpu.iota {dimensions = array<i32: 1>} : vector<7x16xi32>
    %523 = arith.sitofp %522 : vector<7x16xi32> to vector<7x16xf32>
    %cst_183 = arith.constant 0.000000e+00 : f32
    %524 = vector.broadcast %cst_183 : f32 to vector<7x16xf32>
    %cst_184 = arith.constant 2.500000e-01 : f32
    %525 = vector.broadcast %cst_184 : f32 to vector<7x16xf32>
    %526 = arith.addf %521, %525 : vector<7x16xf32>
    %527 = vector.broadcast %438 : f32 to vector<7x16xf32>
    %528 = arith.mulf %526, %527 : vector<7x16xf32>
    %529 = vector.broadcast %426 : f32 to vector<7x16xf32>
    %530 = arith.addf %529, %528 : vector<7x16xf32>
    %cst_185 = arith.constant -1.000000e+00 : f32
    %531 = vector.broadcast %cst_185 : f32 to vector<7x16xf32>
    %532 = arith.cmpf oge, %530, %531 : vector<7x16xf32>
    %cst_186 = arith.constant 1.600000e+01 : f32
    %533 = vector.broadcast %cst_186 : f32 to vector<7x16xf32>
    %534 = arith.cmpf ole, %530, %533 : vector<7x16xf32>
    %535 = arith.andi %532, %534 : vector<7x16xi1>
    %cst_187 = arith.constant 0.000000e+00 : f32
    %536 = vector.broadcast %cst_187 : f32 to vector<7x16xf32>
    %537 = arith.maximumf %530, %536 : vector<7x16xf32>
    %538 = math.floor %537 : vector<7x16xf32>
    %cst_188 = arith.constant 1.500000e+01 : f32
    %539 = vector.broadcast %cst_188 : f32 to vector<7x16xf32>
    %540 = arith.cmpf oge, %538, %539 : vector<7x16xf32>
    %cst_189 = arith.constant 1.500000e+01 : f32
    %541 = vector.broadcast %cst_189 : f32 to vector<7x16xf32>
    %542 = arith.select %540, %541, %538 : vector<7x16xi1>, vector<7x16xf32>
    %cst_190 = arith.constant 1.000000e+00 : f32
    %543 = vector.broadcast %cst_190 : f32 to vector<7x16xf32>
    %544 = arith.addf %542, %543 : vector<7x16xf32>
    %545 = arith.select %540, %542, %544 : vector<7x16xi1>, vector<7x16xf32>
    %546 = arith.select %540, %542, %537 : vector<7x16xi1>, vector<7x16xf32>
    %547 = arith.subf %546, %542 : vector<7x16xf32>
    %cst_191 = arith.constant 1.000000e+00 : f32
    %548 = vector.broadcast %cst_191 : f32 to vector<7x16xf32>
    %549 = arith.subf %548, %547 : vector<7x16xf32>
    %550 = arith.cmpf oeq, %523, %542 : vector<7x16xf32>
    %551 = arith.extui %550 : vector<7x16xi1> to vector<7x16xi32>
    %552 = arith.sitofp %551 : vector<7x16xi32> to vector<7x16xf32>
    %553 = arith.mulf %549, %552 : vector<7x16xf32>
    %554 = arith.cmpf oeq, %523, %545 : vector<7x16xf32>
    %555 = arith.extui %554 : vector<7x16xi1> to vector<7x16xi32>
    %556 = arith.sitofp %555 : vector<7x16xi32> to vector<7x16xf32>
    %557 = arith.mulf %547, %556 : vector<7x16xf32>
    %558 = arith.addf %553, %557 : vector<7x16xf32>
    %cst_192 = arith.constant 0.000000e+00 : f32
    %559 = vector.broadcast %cst_192 : f32 to vector<7x16xf32>
    %560 = arith.select %535, %558, %559 : vector<7x16xi1>, vector<7x16xf32>
    %561 = arith.addf %524, %560 : vector<7x16xf32>
    %cst_193 = arith.constant 7.500000e-01 : f32
    %562 = vector.broadcast %cst_193 : f32 to vector<7x16xf32>
    %563 = arith.addf %521, %562 : vector<7x16xf32>
    %564 = vector.broadcast %438 : f32 to vector<7x16xf32>
    %565 = arith.mulf %563, %564 : vector<7x16xf32>
    %566 = vector.broadcast %426 : f32 to vector<7x16xf32>
    %567 = arith.addf %566, %565 : vector<7x16xf32>
    %cst_194 = arith.constant -1.000000e+00 : f32
    %568 = vector.broadcast %cst_194 : f32 to vector<7x16xf32>
    %569 = arith.cmpf oge, %567, %568 : vector<7x16xf32>
    %cst_195 = arith.constant 1.600000e+01 : f32
    %570 = vector.broadcast %cst_195 : f32 to vector<7x16xf32>
    %571 = arith.cmpf ole, %567, %570 : vector<7x16xf32>
    %572 = arith.andi %569, %571 : vector<7x16xi1>
    %cst_196 = arith.constant 0.000000e+00 : f32
    %573 = vector.broadcast %cst_196 : f32 to vector<7x16xf32>
    %574 = arith.maximumf %567, %573 : vector<7x16xf32>
    %575 = math.floor %574 : vector<7x16xf32>
    %cst_197 = arith.constant 1.500000e+01 : f32
    %576 = vector.broadcast %cst_197 : f32 to vector<7x16xf32>
    %577 = arith.cmpf oge, %575, %576 : vector<7x16xf32>
    %cst_198 = arith.constant 1.500000e+01 : f32
    %578 = vector.broadcast %cst_198 : f32 to vector<7x16xf32>
    %579 = arith.select %577, %578, %575 : vector<7x16xi1>, vector<7x16xf32>
    %cst_199 = arith.constant 1.000000e+00 : f32
    %580 = vector.broadcast %cst_199 : f32 to vector<7x16xf32>
    %581 = arith.addf %579, %580 : vector<7x16xf32>
    %582 = arith.select %577, %579, %581 : vector<7x16xi1>, vector<7x16xf32>
    %583 = arith.select %577, %579, %574 : vector<7x16xi1>, vector<7x16xf32>
    %584 = arith.subf %583, %579 : vector<7x16xf32>
    %cst_200 = arith.constant 1.000000e+00 : f32
    %585 = vector.broadcast %cst_200 : f32 to vector<7x16xf32>
    %586 = arith.subf %585, %584 : vector<7x16xf32>
    %587 = arith.cmpf oeq, %523, %579 : vector<7x16xf32>
    %588 = arith.extui %587 : vector<7x16xi1> to vector<7x16xi32>
    %589 = arith.sitofp %588 : vector<7x16xi32> to vector<7x16xf32>
    %590 = arith.mulf %586, %589 : vector<7x16xf32>
    %591 = arith.cmpf oeq, %523, %582 : vector<7x16xf32>
    %592 = arith.extui %591 : vector<7x16xi1> to vector<7x16xi32>
    %593 = arith.sitofp %592 : vector<7x16xi32> to vector<7x16xf32>
    %594 = arith.mulf %584, %593 : vector<7x16xf32>
    %595 = arith.addf %590, %594 : vector<7x16xf32>
    %cst_201 = arith.constant 0.000000e+00 : f32
    %596 = vector.broadcast %cst_201 : f32 to vector<7x16xf32>
    %597 = arith.select %572, %595, %596 : vector<7x16xi1>, vector<7x16xf32>
    %598 = arith.addf %561, %597 : vector<7x16xf32>
    %cst_202 = arith.constant 2.000000e+00 : f32
    %599 = vector.broadcast %cst_202 : f32 to vector<7x16xf32>
    %600 = arith.divf %598, %599 : vector<7x16xf32>
    %cst_203 = arith.constant dense<0.000000e+00> : vector<7x64xf32>
    %601 = tpu.matmul %519, %416, %cst_203 {dimension_numbers = #tpu.dot_dimension_numbers<[1], [0], [0], [1], [0, 0, 1, 1], [], []>} : vector<7x16xf32>, vector<16x64xf32>, vector<7x64xf32> -> vector<7x64xf32>
    %c0_204 = arith.constant 0 : index
    %c0_205 = arith.constant 0 : index
    %602 = vector.load %arg8[%c0_204, %c0_205] : memref<7x64xf32, #tpu.memory_space<vmem>>, vector<7x64xf32>
    tpu.vector_store %arg8[%c0_204, %c0_205], %601 {strides = array<i32>} : memref<7x64xf32, #tpu.memory_space<vmem>>, vector<7x64xf32>,
    %c0_206 = arith.constant 0 : index
    %c0_207 = arith.constant 0 : index
    %603 = vector.load %arg8[%c0_206, %c0_207] : memref<7x64xf32, #tpu.memory_space<vmem>>, vector<7x16xf32>
    %c0_208 = arith.constant 0 : index
    %c0_209 = arith.constant 0 : index
    %604 = vector.load %arg9[%c0_208, %c0_209] : memref<28x16xf32, #tpu.memory_space<vmem>>, vector<7x16xf32>
    tpu.vector_store %arg9[%c0_208, %c0_209], %603 {strides = array<i32>} : memref<28x16xf32, #tpu.memory_space<vmem>>, vector<7x16xf32>,
    %c0_210 = arith.constant 0 : index
    %c16_211 = arith.constant 16 : index
    %605 = vector.load %arg8[%c0_210, %c16_211] : memref<7x64xf32, #tpu.memory_space<vmem>>, vector<7x16xf32>
    %c7_212 = arith.constant 7 : index
    %c0_213 = arith.constant 0 : index
    %606 = vector.load %arg9[%c7_212, %c0_213] : memref<28x16xf32, #tpu.memory_space<vmem>>, vector<7x16xf32>
    tpu.vector_store %arg9[%c7_212, %c0_213], %605 {strides = array<i32>} : memref<28x16xf32, #tpu.memory_space<vmem>>, vector<7x16xf32>,
    %c0_214 = arith.constant 0 : index
    %c32_215 = arith.constant 32 : index
    %607 = vector.load %arg8[%c0_214, %c32_215] : memref<7x64xf32, #tpu.memory_space<vmem>>, vector<7x16xf32>
    %c14_216 = arith.constant 14 : index
    %c0_217 = arith.constant 0 : index
    %608 = vector.load %arg9[%c14_216, %c0_217] : memref<28x16xf32, #tpu.memory_space<vmem>>, vector<7x16xf32>
    tpu.vector_store %arg9[%c14_216, %c0_217], %607 {strides = array<i32>} : memref<28x16xf32, #tpu.memory_space<vmem>>, vector<7x16xf32>,
    %c0_218 = arith.constant 0 : index
    %c48_219 = arith.constant 48 : index
    %609 = vector.load %arg8[%c0_218, %c48_219] : memref<7x64xf32, #tpu.memory_space<vmem>>, vector<7x16xf32>
    %c21_220 = arith.constant 21 : index
    %c0_221 = arith.constant 0 : index
    %610 = vector.load %arg9[%c21_220, %c0_221] : memref<28x16xf32, #tpu.memory_space<vmem>>, vector<7x16xf32>
    tpu.vector_store %arg9[%c21_220, %c0_221], %609 {strides = array<i32>} : memref<28x16xf32, #tpu.memory_space<vmem>>, vector<7x16xf32>,
    %c0_222 = arith.constant 0 : index
    %c0_223 = arith.constant 0 : index
    %611 = vector.load %arg9[%c0_222, %c0_223] : memref<28x16xf32, #tpu.memory_space<vmem>>, vector<28x16xf32>
    %cst_224 = arith.constant dense<0.000000e+00> : vector<7x28xf32>
    %612 = tpu.matmul %600, %611, %cst_224 {dimension_numbers = #tpu.dot_dimension_numbers<[1], [1], [0], [0], [0, 0, 1, 0], [], []>} : vector<7x16xf32>, vector<28x16xf32>, vector<7x28xf32> -> vector<7x28xf32>
    %c2 = arith.constant 2 : index
    %c0_225 = arith.constant 0 : index
    %c0_226 = arith.constant 0 : index
    %613 = vector.load %arg7[%c2, %c0_225, %c0_226] : memref<8x7x28xf32, #tpu.memory_space<vmem>>, vector<1x7x28xf32>
    %614 = vector.shape_cast %613 : vector<1x7x28xf32> to vector<7x28xf32>
    %615 = vector.shape_cast %612 : vector<7x28xf32> to vector<1x7x28xf32>
    tpu.vector_store %arg7[%c2, %c0_225, %c0_226], %615 {strides = array<i32>} : memref<8x7x28xf32, #tpu.memory_space<vmem>>, vector<1x7x28xf32>,
    %c3_i32 = arith.constant 3 : i32
    %616 = arith.addi %0, %c3_i32 : i32
    %617 = arith.index_cast %616 : i32 to index
    %618 = memref.load %arg1[%617] : memref<8xi32, #tpu.memory_space<smem>>
    %619 = arith.index_cast %618 : i32 to index
    %c0_227 = arith.constant 0 : index
    %c0_228 = arith.constant 0 : index
    %620 = vector.load %arg6[%619, %c0_227, %c0_228] : memref<2x16x64xf32, #tpu.memory_space<vmem>>, vector<1x16x64xf32>
    %621 = vector.shape_cast %620 : vector<1x16x64xf32> to vector<16x64xf32>
    %622 = arith.index_cast %616 : i32 to index
    %623 = memref.load %arg2[%622] : memref<8xf32, #tpu.memory_space<smem>>
    %624 = arith.index_cast %616 : i32 to index
    %625 = memref.load %arg3[%624] : memref<8xf32, #tpu.memory_space<smem>>
    %626 = arith.index_cast %616 : i32 to index
    %627 = memref.load %arg4[%626] : memref<8xf32, #tpu.memory_space<smem>>
    %628 = arith.index_cast %616 : i32 to index
    %629 = memref.load %arg5[%628] : memref<8xf32, #tpu.memory_space<smem>>
    %cst_229 = arith.constant 5.000000e-01 : f32
    %630 = arith.mulf %623, %cst_229 : f32
    %cst_230 = arith.constant 0.000000e+00 : f32
    %631 = arith.subf %630, %cst_230 : f32
    %cst_231 = arith.constant 5.000000e-01 : f32
    %632 = arith.mulf %625, %cst_231 : f32
    %cst_232 = arith.constant 0.000000e+00 : f32
    %633 = arith.subf %632, %cst_232 : f32
    %cst_233 = arith.constant 5.000000e-01 : f32
    %634 = arith.mulf %627, %cst_233 : f32
    %cst_234 = arith.constant 0.000000e+00 : f32
    %635 = arith.subf %634, %cst_234 : f32
    %cst_235 = arith.constant 5.000000e-01 : f32
    %636 = arith.mulf %629, %cst_235 : f32
    %cst_236 = arith.constant 0.000000e+00 : f32
    %637 = arith.subf %636, %cst_236 : f32
    %638 = arith.subf %635, %631 : f32
    %639 = arith.subf %637, %633 : f32
    %cst_237 = arith.constant 1.000000e+00 : f32
    %640 = arith.maximumf %638, %cst_237 : f32
    %cst_238 = arith.constant 1.000000e+00 : f32
    %641 = arith.maximumf %639, %cst_238 : f32
    %cst_239 = arith.constant 7.000000e+00 : f32
    %642 = arith.divf %641, %cst_239 : f32
    %cst_240 = arith.constant 7.000000e+00 : f32
    %643 = arith.divf %640, %cst_240 : f32
    %644 = tpu.iota {dimensions = array<i32: 0>} : vector<7x16xi32>
    %645 = arith.sitofp %644 : vector<7x16xi32> to vector<7x16xf32>
    %646 = tpu.iota {dimensions = array<i32: 1>} : vector<7x16xi32>
    %647 = arith.sitofp %646 : vector<7x16xi32> to vector<7x16xf32>
    %cst_241 = arith.constant 0.000000e+00 : f32
    %648 = vector.broadcast %cst_241 : f32 to vector<7x16xf32>
    %cst_242 = arith.constant 2.500000e-01 : f32
    %649 = vector.broadcast %cst_242 : f32 to vector<7x16xf32>
    %650 = arith.addf %645, %649 : vector<7x16xf32>
    %651 = vector.broadcast %642 : f32 to vector<7x16xf32>
    %652 = arith.mulf %650, %651 : vector<7x16xf32>
    %653 = vector.broadcast %633 : f32 to vector<7x16xf32>
    %654 = arith.addf %653, %652 : vector<7x16xf32>
    %cst_243 = arith.constant -1.000000e+00 : f32
    %655 = vector.broadcast %cst_243 : f32 to vector<7x16xf32>
    %656 = arith.cmpf oge, %654, %655 : vector<7x16xf32>
    %cst_244 = arith.constant 1.600000e+01 : f32
    %657 = vector.broadcast %cst_244 : f32 to vector<7x16xf32>
    %658 = arith.cmpf ole, %654, %657 : vector<7x16xf32>
    %659 = arith.andi %656, %658 : vector<7x16xi1>
    %cst_245 = arith.constant 0.000000e+00 : f32
    %660 = vector.broadcast %cst_245 : f32 to vector<7x16xf32>
    %661 = arith.maximumf %654, %660 : vector<7x16xf32>
    %662 = math.floor %661 : vector<7x16xf32>
    %cst_246 = arith.constant 1.500000e+01 : f32
    %663 = vector.broadcast %cst_246 : f32 to vector<7x16xf32>
    %664 = arith.cmpf oge, %662, %663 : vector<7x16xf32>
    %cst_247 = arith.constant 1.500000e+01 : f32
    %665 = vector.broadcast %cst_247 : f32 to vector<7x16xf32>
    %666 = arith.select %664, %665, %662 : vector<7x16xi1>, vector<7x16xf32>
    %cst_248 = arith.constant 1.000000e+00 : f32
    %667 = vector.broadcast %cst_248 : f32 to vector<7x16xf32>
    %668 = arith.addf %666, %667 : vector<7x16xf32>
    %669 = arith.select %664, %666, %668 : vector<7x16xi1>, vector<7x16xf32>
    %670 = arith.select %664, %666, %661 : vector<7x16xi1>, vector<7x16xf32>
    %671 = arith.subf %670, %666 : vector<7x16xf32>
    %cst_249 = arith.constant 1.000000e+00 : f32
    %672 = vector.broadcast %cst_249 : f32 to vector<7x16xf32>
    %673 = arith.subf %672, %671 : vector<7x16xf32>
    %674 = arith.cmpf oeq, %647, %666 : vector<7x16xf32>
    %675 = arith.extui %674 : vector<7x16xi1> to vector<7x16xi32>
    %676 = arith.sitofp %675 : vector<7x16xi32> to vector<7x16xf32>
    %677 = arith.mulf %673, %676 : vector<7x16xf32>
    %678 = arith.cmpf oeq, %647, %669 : vector<7x16xf32>
    %679 = arith.extui %678 : vector<7x16xi1> to vector<7x16xi32>
    %680 = arith.sitofp %679 : vector<7x16xi32> to vector<7x16xf32>
    %681 = arith.mulf %671, %680 : vector<7x16xf32>
    %682 = arith.addf %677, %681 : vector<7x16xf32>
    %cst_250 = arith.constant 0.000000e+00 : f32
    %683 = vector.broadcast %cst_250 : f32 to vector<7x16xf32>
    %684 = arith.select %659, %682, %683 : vector<7x16xi1>, vector<7x16xf32>
    %685 = arith.addf %648, %684 : vector<7x16xf32>
    %cst_251 = arith.constant 7.500000e-01 : f32
    %686 = vector.broadcast %cst_251 : f32 to vector<7x16xf32>
    %687 = arith.addf %645, %686 : vector<7x16xf32>
    %688 = vector.broadcast %642 : f32 to vector<7x16xf32>
    %689 = arith.mulf %687, %688 : vector<7x16xf32>
    %690 = vector.broadcast %633 : f32 to vector<7x16xf32>
    %691 = arith.addf %690, %689 : vector<7x16xf32>
    %cst_252 = arith.constant -1.000000e+00 : f32
    %692 = vector.broadcast %cst_252 : f32 to vector<7x16xf32>
    %693 = arith.cmpf oge, %691, %692 : vector<7x16xf32>
    %cst_253 = arith.constant 1.600000e+01 : f32
    %694 = vector.broadcast %cst_253 : f32 to vector<7x16xf32>
    %695 = arith.cmpf ole, %691, %694 : vector<7x16xf32>
    %696 = arith.andi %693, %695 : vector<7x16xi1>
    %cst_254 = arith.constant 0.000000e+00 : f32
    %697 = vector.broadcast %cst_254 : f32 to vector<7x16xf32>
    %698 = arith.maximumf %691, %697 : vector<7x16xf32>
    %699 = math.floor %698 : vector<7x16xf32>
    %cst_255 = arith.constant 1.500000e+01 : f32
    %700 = vector.broadcast %cst_255 : f32 to vector<7x16xf32>
    %701 = arith.cmpf oge, %699, %700 : vector<7x16xf32>
    %cst_256 = arith.constant 1.500000e+01 : f32
    %702 = vector.broadcast %cst_256 : f32 to vector<7x16xf32>
    %703 = arith.select %701, %702, %699 : vector<7x16xi1>, vector<7x16xf32>
    %cst_257 = arith.constant 1.000000e+00 : f32
    %704 = vector.broadcast %cst_257 : f32 to vector<7x16xf32>
    %705 = arith.addf %703, %704 : vector<7x16xf32>
    %706 = arith.select %701, %703, %705 : vector<7x16xi1>, vector<7x16xf32>
    %707 = arith.select %701, %703, %698 : vector<7x16xi1>, vector<7x16xf32>
    %708 = arith.subf %707, %703 : vector<7x16xf32>
    %cst_258 = arith.constant 1.000000e+00 : f32
    %709 = vector.broadcast %cst_258 : f32 to vector<7x16xf32>
    %710 = arith.subf %709, %708 : vector<7x16xf32>
    %711 = arith.cmpf oeq, %647, %703 : vector<7x16xf32>
    %712 = arith.extui %711 : vector<7x16xi1> to vector<7x16xi32>
    %713 = arith.sitofp %712 : vector<7x16xi32> to vector<7x16xf32>
    %714 = arith.mulf %710, %713 : vector<7x16xf32>
    %715 = arith.cmpf oeq, %647, %706 : vector<7x16xf32>
    %716 = arith.extui %715 : vector<7x16xi1> to vector<7x16xi32>
    %717 = arith.sitofp %716 : vector<7x16xi32> to vector<7x16xf32>
    %718 = arith.mulf %708, %717 : vector<7x16xf32>
    %719 = arith.addf %714, %718 : vector<7x16xf32>
    %cst_259 = arith.constant 0.000000e+00 : f32
    %720 = vector.broadcast %cst_259 : f32 to vector<7x16xf32>
    %721 = arith.select %696, %719, %720 : vector<7x16xi1>, vector<7x16xf32>
    %722 = arith.addf %685, %721 : vector<7x16xf32>
    %cst_260 = arith.constant 2.000000e+00 : f32
    %723 = vector.broadcast %cst_260 : f32 to vector<7x16xf32>
    %724 = arith.divf %722, %723 : vector<7x16xf32>
    %725 = tpu.iota {dimensions = array<i32: 0>} : vector<7x16xi32>
    %726 = arith.sitofp %725 : vector<7x16xi32> to vector<7x16xf32>
    %727 = tpu.iota {dimensions = array<i32: 1>} : vector<7x16xi32>
    %728 = arith.sitofp %727 : vector<7x16xi32> to vector<7x16xf32>
    %cst_261 = arith.constant 0.000000e+00 : f32
    %729 = vector.broadcast %cst_261 : f32 to vector<7x16xf32>
    %cst_262 = arith.constant 2.500000e-01 : f32
    %730 = vector.broadcast %cst_262 : f32 to vector<7x16xf32>
    %731 = arith.addf %726, %730 : vector<7x16xf32>
    %732 = vector.broadcast %643 : f32 to vector<7x16xf32>
    %733 = arith.mulf %731, %732 : vector<7x16xf32>
    %734 = vector.broadcast %631 : f32 to vector<7x16xf32>
    %735 = arith.addf %734, %733 : vector<7x16xf32>
    %cst_263 = arith.constant -1.000000e+00 : f32
    %736 = vector.broadcast %cst_263 : f32 to vector<7x16xf32>
    %737 = arith.cmpf oge, %735, %736 : vector<7x16xf32>
    %cst_264 = arith.constant 1.600000e+01 : f32
    %738 = vector.broadcast %cst_264 : f32 to vector<7x16xf32>
    %739 = arith.cmpf ole, %735, %738 : vector<7x16xf32>
    %740 = arith.andi %737, %739 : vector<7x16xi1>
    %cst_265 = arith.constant 0.000000e+00 : f32
    %741 = vector.broadcast %cst_265 : f32 to vector<7x16xf32>
    %742 = arith.maximumf %735, %741 : vector<7x16xf32>
    %743 = math.floor %742 : vector<7x16xf32>
    %cst_266 = arith.constant 1.500000e+01 : f32
    %744 = vector.broadcast %cst_266 : f32 to vector<7x16xf32>
    %745 = arith.cmpf oge, %743, %744 : vector<7x16xf32>
    %cst_267 = arith.constant 1.500000e+01 : f32
    %746 = vector.broadcast %cst_267 : f32 to vector<7x16xf32>
    %747 = arith.select %745, %746, %743 : vector<7x16xi1>, vector<7x16xf32>
    %cst_268 = arith.constant 1.000000e+00 : f32
    %748 = vector.broadcast %cst_268 : f32 to vector<7x16xf32>
    %749 = arith.addf %747, %748 : vector<7x16xf32>
    %750 = arith.select %745, %747, %749 : vector<7x16xi1>, vector<7x16xf32>
    %751 = arith.select %745, %747, %742 : vector<7x16xi1>, vector<7x16xf32>
    %752 = arith.subf %751, %747 : vector<7x16xf32>
    %cst_269 = arith.constant 1.000000e+00 : f32
    %753 = vector.broadcast %cst_269 : f32 to vector<7x16xf32>
    %754 = arith.subf %753, %752 : vector<7x16xf32>
    %755 = arith.cmpf oeq, %728, %747 : vector<7x16xf32>
    %756 = arith.extui %755 : vector<7x16xi1> to vector<7x16xi32>
    %757 = arith.sitofp %756 : vector<7x16xi32> to vector<7x16xf32>
    %758 = arith.mulf %754, %757 : vector<7x16xf32>
    %759 = arith.cmpf oeq, %728, %750 : vector<7x16xf32>
    %760 = arith.extui %759 : vector<7x16xi1> to vector<7x16xi32>
    %761 = arith.sitofp %760 : vector<7x16xi32> to vector<7x16xf32>
    %762 = arith.mulf %752, %761 : vector<7x16xf32>
    %763 = arith.addf %758, %762 : vector<7x16xf32>
    %cst_270 = arith.constant 0.000000e+00 : f32
    %764 = vector.broadcast %cst_270 : f32 to vector<7x16xf32>
    %765 = arith.select %740, %763, %764 : vector<7x16xi1>, vector<7x16xf32>
    %766 = arith.addf %729, %765 : vector<7x16xf32>
    %cst_271 = arith.constant 7.500000e-01 : f32
    %767 = vector.broadcast %cst_271 : f32 to vector<7x16xf32>
    %768 = arith.addf %726, %767 : vector<7x16xf32>
    %769 = vector.broadcast %643 : f32 to vector<7x16xf32>
    %770 = arith.mulf %768, %769 : vector<7x16xf32>
    %771 = vector.broadcast %631 : f32 to vector<7x16xf32>
    %772 = arith.addf %771, %770 : vector<7x16xf32>
    %cst_272 = arith.constant -1.000000e+00 : f32
    %773 = vector.broadcast %cst_272 : f32 to vector<7x16xf32>
    %774 = arith.cmpf oge, %772, %773 : vector<7x16xf32>
    %cst_273 = arith.constant 1.600000e+01 : f32
    %775 = vector.broadcast %cst_273 : f32 to vector<7x16xf32>
    %776 = arith.cmpf ole, %772, %775 : vector<7x16xf32>
    %777 = arith.andi %774, %776 : vector<7x16xi1>
    %cst_274 = arith.constant 0.000000e+00 : f32
    %778 = vector.broadcast %cst_274 : f32 to vector<7x16xf32>
    %779 = arith.maximumf %772, %778 : vector<7x16xf32>
    %780 = math.floor %779 : vector<7x16xf32>
    %cst_275 = arith.constant 1.500000e+01 : f32
    %781 = vector.broadcast %cst_275 : f32 to vector<7x16xf32>
    %782 = arith.cmpf oge, %780, %781 : vector<7x16xf32>
    %cst_276 = arith.constant 1.500000e+01 : f32
    %783 = vector.broadcast %cst_276 : f32 to vector<7x16xf32>
    %784 = arith.select %782, %783, %780 : vector<7x16xi1>, vector<7x16xf32>
    %cst_277 = arith.constant 1.000000e+00 : f32
    %785 = vector.broadcast %cst_277 : f32 to vector<7x16xf32>
    %786 = arith.addf %784, %785 : vector<7x16xf32>
    %787 = arith.select %782, %784, %786 : vector<7x16xi1>, vector<7x16xf32>
    %788 = arith.select %782, %784, %779 : vector<7x16xi1>, vector<7x16xf32>
    %789 = arith.subf %788, %784 : vector<7x16xf32>
    %cst_278 = arith.constant 1.000000e+00 : f32
    %790 = vector.broadcast %cst_278 : f32 to vector<7x16xf32>
    %791 = arith.subf %790, %789 : vector<7x16xf32>
    %792 = arith.cmpf oeq, %728, %784 : vector<7x16xf32>
    %793 = arith.extui %792 : vector<7x16xi1> to vector<7x16xi32>
    %794 = arith.sitofp %793 : vector<7x16xi32> to vector<7x16xf32>
    %795 = arith.mulf %791, %794 : vector<7x16xf32>
    %796 = arith.cmpf oeq, %728, %787 : vector<7x16xf32>
    %797 = arith.extui %796 : vector<7x16xi1> to vector<7x16xi32>
    %798 = arith.sitofp %797 : vector<7x16xi32> to vector<7x16xf32>
    %799 = arith.mulf %789, %798 : vector<7x16xf32>
    %800 = arith.addf %795, %799 : vector<7x16xf32>
    %cst_279 = arith.constant 0.000000e+00 : f32
    %801 = vector.broadcast %cst_279 : f32 to vector<7x16xf32>
    %802 = arith.select %777, %800, %801 : vector<7x16xi1>, vector<7x16xf32>
    %803 = arith.addf %766, %802 : vector<7x16xf32>
    %cst_280 = arith.constant 2.000000e+00 : f32
    %804 = vector.broadcast %cst_280 : f32 to vector<7x16xf32>
    %805 = arith.divf %803, %804 : vector<7x16xf32>
    %cst_281 = arith.constant dense<0.000000e+00> : vector<7x64xf32>
    %806 = tpu.matmul %724, %621, %cst_281 {dimension_numbers = #tpu.dot_dimension_numbers<[1], [0], [0], [1], [0, 0, 1, 1], [], []>} : vector<7x16xf32>, vector<16x64xf32>, vector<7x64xf32> -> vector<7x64xf32>
    %c0_282 = arith.constant 0 : index
    %c0_283 = arith.constant 0 : index
    %807 = vector.load %arg8[%c0_282, %c0_283] : memref<7x64xf32, #tpu.memory_space<vmem>>, vector<7x64xf32>
    tpu.vector_store %arg8[%c0_282, %c0_283], %806 {strides = array<i32>} : memref<7x64xf32, #tpu.memory_space<vmem>>, vector<7x64xf32>,
    %c0_284 = arith.constant 0 : index
    %c0_285 = arith.constant 0 : index
    %808 = vector.load %arg8[%c0_284, %c0_285] : memref<7x64xf32, #tpu.memory_space<vmem>>, vector<7x16xf32>
    %c0_286 = arith.constant 0 : index
    %c0_287 = arith.constant 0 : index
    %809 = vector.load %arg9[%c0_286, %c0_287] : memref<28x16xf32, #tpu.memory_space<vmem>>, vector<7x16xf32>
    tpu.vector_store %arg9[%c0_286, %c0_287], %808 {strides = array<i32>} : memref<28x16xf32, #tpu.memory_space<vmem>>, vector<7x16xf32>,
    %c0_288 = arith.constant 0 : index
    %c16_289 = arith.constant 16 : index
    %810 = vector.load %arg8[%c0_288, %c16_289] : memref<7x64xf32, #tpu.memory_space<vmem>>, vector<7x16xf32>
    %c7_290 = arith.constant 7 : index
    %c0_291 = arith.constant 0 : index
    %811 = vector.load %arg9[%c7_290, %c0_291] : memref<28x16xf32, #tpu.memory_space<vmem>>, vector<7x16xf32>
    tpu.vector_store %arg9[%c7_290, %c0_291], %810 {strides = array<i32>} : memref<28x16xf32, #tpu.memory_space<vmem>>, vector<7x16xf32>,
    %c0_292 = arith.constant 0 : index
    %c32_293 = arith.constant 32 : index
    %812 = vector.load %arg8[%c0_292, %c32_293] : memref<7x64xf32, #tpu.memory_space<vmem>>, vector<7x16xf32>
    %c14_294 = arith.constant 14 : index
    %c0_295 = arith.constant 0 : index
    %813 = vector.load %arg9[%c14_294, %c0_295] : memref<28x16xf32, #tpu.memory_space<vmem>>, vector<7x16xf32>
    tpu.vector_store %arg9[%c14_294, %c0_295], %812 {strides = array<i32>} : memref<28x16xf32, #tpu.memory_space<vmem>>, vector<7x16xf32>,
    %c0_296 = arith.constant 0 : index
    %c48_297 = arith.constant 48 : index
    %814 = vector.load %arg8[%c0_296, %c48_297] : memref<7x64xf32, #tpu.memory_space<vmem>>, vector<7x16xf32>
    %c21_298 = arith.constant 21 : index
    %c0_299 = arith.constant 0 : index
    %815 = vector.load %arg9[%c21_298, %c0_299] : memref<28x16xf32, #tpu.memory_space<vmem>>, vector<7x16xf32>
    tpu.vector_store %arg9[%c21_298, %c0_299], %814 {strides = array<i32>} : memref<28x16xf32, #tpu.memory_space<vmem>>, vector<7x16xf32>,
    %c0_300 = arith.constant 0 : index
    %c0_301 = arith.constant 0 : index
    %816 = vector.load %arg9[%c0_300, %c0_301] : memref<28x16xf32, #tpu.memory_space<vmem>>, vector<28x16xf32>
    %cst_302 = arith.constant dense<0.000000e+00> : vector<7x28xf32>
    %817 = tpu.matmul %805, %816, %cst_302 {dimension_numbers = #tpu.dot_dimension_numbers<[1], [1], [0], [0], [0, 0, 1, 0], [], []>} : vector<7x16xf32>, vector<28x16xf32>, vector<7x28xf32> -> vector<7x28xf32>
    %c3 = arith.constant 3 : index
    %c0_303 = arith.constant 0 : index
    %c0_304 = arith.constant 0 : index
    %818 = vector.load %arg7[%c3, %c0_303, %c0_304] : memref<8x7x28xf32, #tpu.memory_space<vmem>>, vector<1x7x28xf32>
    %819 = vector.shape_cast %818 : vector<1x7x28xf32> to vector<7x28xf32>
    %820 = vector.shape_cast %817 : vector<7x28xf32> to vector<1x7x28xf32>
    tpu.vector_store %arg7[%c3, %c0_303, %c0_304], %820 {strides = array<i32>} : memref<8x7x28xf32, #tpu.memory_space<vmem>>, vector<1x7x28xf32>,
    %c4_i32 = arith.constant 4 : i32
    %821 = arith.addi %0, %c4_i32 : i32
    %822 = arith.index_cast %821 : i32 to index
    %823 = memref.load %arg1[%822] : memref<8xi32, #tpu.memory_space<smem>>
    %824 = arith.index_cast %823 : i32 to index
    %c0_305 = arith.constant 0 : index
    %c0_306 = arith.constant 0 : index
    %825 = vector.load %arg6[%824, %c0_305, %c0_306] : memref<2x16x64xf32, #tpu.memory_space<vmem>>, vector<1x16x64xf32>
    %826 = vector.shape_cast %825 : vector<1x16x64xf32> to vector<16x64xf32>
    %827 = arith.index_cast %821 : i32 to index
    %828 = memref.load %arg2[%827] : memref<8xf32, #tpu.memory_space<smem>>
    %829 = arith.index_cast %821 : i32 to index
    %830 = memref.load %arg3[%829] : memref<8xf32, #tpu.memory_space<smem>>
    %831 = arith.index_cast %821 : i32 to index
    %832 = memref.load %arg4[%831] : memref<8xf32, #tpu.memory_space<smem>>
    %833 = arith.index_cast %821 : i32 to index
    %834 = memref.load %arg5[%833] : memref<8xf32, #tpu.memory_space<smem>>
    %cst_307 = arith.constant 5.000000e-01 : f32
    %835 = arith.mulf %828, %cst_307 : f32
    %cst_308 = arith.constant 0.000000e+00 : f32
    %836 = arith.subf %835, %cst_308 : f32
    %cst_309 = arith.constant 5.000000e-01 : f32
    %837 = arith.mulf %830, %cst_309 : f32
    %cst_310 = arith.constant 0.000000e+00 : f32
    %838 = arith.subf %837, %cst_310 : f32
    %cst_311 = arith.constant 5.000000e-01 : f32
    %839 = arith.mulf %832, %cst_311 : f32
    %cst_312 = arith.constant 0.000000e+00 : f32
    %840 = arith.subf %839, %cst_312 : f32
    %cst_313 = arith.constant 5.000000e-01 : f32
    %841 = arith.mulf %834, %cst_313 : f32
    %cst_314 = arith.constant 0.000000e+00 : f32
    %842 = arith.subf %841, %cst_314 : f32
    %843 = arith.subf %840, %836 : f32
    %844 = arith.subf %842, %838 : f32
    %cst_315 = arith.constant 1.000000e+00 : f32
    %845 = arith.maximumf %843, %cst_315 : f32
    %cst_316 = arith.constant 1.000000e+00 : f32
    %846 = arith.maximumf %844, %cst_316 : f32
    %cst_317 = arith.constant 7.000000e+00 : f32
    %847 = arith.divf %846, %cst_317 : f32
    %cst_318 = arith.constant 7.000000e+00 : f32
    %848 = arith.divf %845, %cst_318 : f32
    %849 = tpu.iota {dimensions = array<i32: 0>} : vector<7x16xi32>
    %850 = arith.sitofp %849 : vector<7x16xi32> to vector<7x16xf32>
    %851 = tpu.iota {dimensions = array<i32: 1>} : vector<7x16xi32>
    %852 = arith.sitofp %851 : vector<7x16xi32> to vector<7x16xf32>
    %cst_319 = arith.constant 0.000000e+00 : f32
    %853 = vector.broadcast %cst_319 : f32 to vector<7x16xf32>
    %cst_320 = arith.constant 2.500000e-01 : f32
    %854 = vector.broadcast %cst_320 : f32 to vector<7x16xf32>
    %855 = arith.addf %850, %854 : vector<7x16xf32>
    %856 = vector.broadcast %847 : f32 to vector<7x16xf32>
    %857 = arith.mulf %855, %856 : vector<7x16xf32>
    %858 = vector.broadcast %838 : f32 to vector<7x16xf32>
    %859 = arith.addf %858, %857 : vector<7x16xf32>
    %cst_321 = arith.constant -1.000000e+00 : f32
    %860 = vector.broadcast %cst_321 : f32 to vector<7x16xf32>
    %861 = arith.cmpf oge, %859, %860 : vector<7x16xf32>
    %cst_322 = arith.constant 1.600000e+01 : f32
    %862 = vector.broadcast %cst_322 : f32 to vector<7x16xf32>
    %863 = arith.cmpf ole, %859, %862 : vector<7x16xf32>
    %864 = arith.andi %861, %863 : vector<7x16xi1>
    %cst_323 = arith.constant 0.000000e+00 : f32
    %865 = vector.broadcast %cst_323 : f32 to vector<7x16xf32>
    %866 = arith.maximumf %859, %865 : vector<7x16xf32>
    %867 = math.floor %866 : vector<7x16xf32>
    %cst_324 = arith.constant 1.500000e+01 : f32
    %868 = vector.broadcast %cst_324 : f32 to vector<7x16xf32>
    %869 = arith.cmpf oge, %867, %868 : vector<7x16xf32>
    %cst_325 = arith.constant 1.500000e+01 : f32
    %870 = vector.broadcast %cst_325 : f32 to vector<7x16xf32>
    %871 = arith.select %869, %870, %867 : vector<7x16xi1>, vector<7x16xf32>
    %cst_326 = arith.constant 1.000000e+00 : f32
    %872 = vector.broadcast %cst_326 : f32 to vector<7x16xf32>
    %873 = arith.addf %871, %872 : vector<7x16xf32>
    %874 = arith.select %869, %871, %873 : vector<7x16xi1>, vector<7x16xf32>
    %875 = arith.select %869, %871, %866 : vector<7x16xi1>, vector<7x16xf32>
    %876 = arith.subf %875, %871 : vector<7x16xf32>
    %cst_327 = arith.constant 1.000000e+00 : f32
    %877 = vector.broadcast %cst_327 : f32 to vector<7x16xf32>
    %878 = arith.subf %877, %876 : vector<7x16xf32>
    %879 = arith.cmpf oeq, %852, %871 : vector<7x16xf32>
    %880 = arith.extui %879 : vector<7x16xi1> to vector<7x16xi32>
    %881 = arith.sitofp %880 : vector<7x16xi32> to vector<7x16xf32>
    %882 = arith.mulf %878, %881 : vector<7x16xf32>
    %883 = arith.cmpf oeq, %852, %874 : vector<7x16xf32>
    %884 = arith.extui %883 : vector<7x16xi1> to vector<7x16xi32>
    %885 = arith.sitofp %884 : vector<7x16xi32> to vector<7x16xf32>
    %886 = arith.mulf %876, %885 : vector<7x16xf32>
    %887 = arith.addf %882, %886 : vector<7x16xf32>
    %cst_328 = arith.constant 0.000000e+00 : f32
    %888 = vector.broadcast %cst_328 : f32 to vector<7x16xf32>
    %889 = arith.select %864, %887, %888 : vector<7x16xi1>, vector<7x16xf32>
    %890 = arith.addf %853, %889 : vector<7x16xf32>
    %cst_329 = arith.constant 7.500000e-01 : f32
    %891 = vector.broadcast %cst_329 : f32 to vector<7x16xf32>
    %892 = arith.addf %850, %891 : vector<7x16xf32>
    %893 = vector.broadcast %847 : f32 to vector<7x16xf32>
    %894 = arith.mulf %892, %893 : vector<7x16xf32>
    %895 = vector.broadcast %838 : f32 to vector<7x16xf32>
    %896 = arith.addf %895, %894 : vector<7x16xf32>
    %cst_330 = arith.constant -1.000000e+00 : f32
    %897 = vector.broadcast %cst_330 : f32 to vector<7x16xf32>
    %898 = arith.cmpf oge, %896, %897 : vector<7x16xf32>
    %cst_331 = arith.constant 1.600000e+01 : f32
    %899 = vector.broadcast %cst_331 : f32 to vector<7x16xf32>
    %900 = arith.cmpf ole, %896, %899 : vector<7x16xf32>
    %901 = arith.andi %898, %900 : vector<7x16xi1>
    %cst_332 = arith.constant 0.000000e+00 : f32
    %902 = vector.broadcast %cst_332 : f32 to vector<7x16xf32>
    %903 = arith.maximumf %896, %902 : vector<7x16xf32>
    %904 = math.floor %903 : vector<7x16xf32>
    %cst_333 = arith.constant 1.500000e+01 : f32
    %905 = vector.broadcast %cst_333 : f32 to vector<7x16xf32>
    %906 = arith.cmpf oge, %904, %905 : vector<7x16xf32>
    %cst_334 = arith.constant 1.500000e+01 : f32
    %907 = vector.broadcast %cst_334 : f32 to vector<7x16xf32>
    %908 = arith.select %906, %907, %904 : vector<7x16xi1>, vector<7x16xf32>
    %cst_335 = arith.constant 1.000000e+00 : f32
    %909 = vector.broadcast %cst_335 : f32 to vector<7x16xf32>
    %910 = arith.addf %908, %909 : vector<7x16xf32>
    %911 = arith.select %906, %908, %910 : vector<7x16xi1>, vector<7x16xf32>
    %912 = arith.select %906, %908, %903 : vector<7x16xi1>, vector<7x16xf32>
    %913 = arith.subf %912, %908 : vector<7x16xf32>
    %cst_336 = arith.constant 1.000000e+00 : f32
    %914 = vector.broadcast %cst_336 : f32 to vector<7x16xf32>
    %915 = arith.subf %914, %913 : vector<7x16xf32>
    %916 = arith.cmpf oeq, %852, %908 : vector<7x16xf32>
    %917 = arith.extui %916 : vector<7x16xi1> to vector<7x16xi32>
    %918 = arith.sitofp %917 : vector<7x16xi32> to vector<7x16xf32>
    %919 = arith.mulf %915, %918 : vector<7x16xf32>
    %920 = arith.cmpf oeq, %852, %911 : vector<7x16xf32>
    %921 = arith.extui %920 : vector<7x16xi1> to vector<7x16xi32>
    %922 = arith.sitofp %921 : vector<7x16xi32> to vector<7x16xf32>
    %923 = arith.mulf %913, %922 : vector<7x16xf32>
    %924 = arith.addf %919, %923 : vector<7x16xf32>
    %cst_337 = arith.constant 0.000000e+00 : f32
    %925 = vector.broadcast %cst_337 : f32 to vector<7x16xf32>
    %926 = arith.select %901, %924, %925 : vector<7x16xi1>, vector<7x16xf32>
    %927 = arith.addf %890, %926 : vector<7x16xf32>
    %cst_338 = arith.constant 2.000000e+00 : f32
    %928 = vector.broadcast %cst_338 : f32 to vector<7x16xf32>
    %929 = arith.divf %927, %928 : vector<7x16xf32>
    %930 = tpu.iota {dimensions = array<i32: 0>} : vector<7x16xi32>
    %931 = arith.sitofp %930 : vector<7x16xi32> to vector<7x16xf32>
    %932 = tpu.iota {dimensions = array<i32: 1>} : vector<7x16xi32>
    %933 = arith.sitofp %932 : vector<7x16xi32> to vector<7x16xf32>
    %cst_339 = arith.constant 0.000000e+00 : f32
    %934 = vector.broadcast %cst_339 : f32 to vector<7x16xf32>
    %cst_340 = arith.constant 2.500000e-01 : f32
    %935 = vector.broadcast %cst_340 : f32 to vector<7x16xf32>
    %936 = arith.addf %931, %935 : vector<7x16xf32>
    %937 = vector.broadcast %848 : f32 to vector<7x16xf32>
    %938 = arith.mulf %936, %937 : vector<7x16xf32>
    %939 = vector.broadcast %836 : f32 to vector<7x16xf32>
    %940 = arith.addf %939, %938 : vector<7x16xf32>
    %cst_341 = arith.constant -1.000000e+00 : f32
    %941 = vector.broadcast %cst_341 : f32 to vector<7x16xf32>
    %942 = arith.cmpf oge, %940, %941 : vector<7x16xf32>
    %cst_342 = arith.constant 1.600000e+01 : f32
    %943 = vector.broadcast %cst_342 : f32 to vector<7x16xf32>
    %944 = arith.cmpf ole, %940, %943 : vector<7x16xf32>
    %945 = arith.andi %942, %944 : vector<7x16xi1>
    %cst_343 = arith.constant 0.000000e+00 : f32
    %946 = vector.broadcast %cst_343 : f32 to vector<7x16xf32>
    %947 = arith.maximumf %940, %946 : vector<7x16xf32>
    %948 = math.floor %947 : vector<7x16xf32>
    %cst_344 = arith.constant 1.500000e+01 : f32
    %949 = vector.broadcast %cst_344 : f32 to vector<7x16xf32>
    %950 = arith.cmpf oge, %948, %949 : vector<7x16xf32>
    %cst_345 = arith.constant 1.500000e+01 : f32
    %951 = vector.broadcast %cst_345 : f32 to vector<7x16xf32>
    %952 = arith.select %950, %951, %948 : vector<7x16xi1>, vector<7x16xf32>
    %cst_346 = arith.constant 1.000000e+00 : f32
    %953 = vector.broadcast %cst_346 : f32 to vector<7x16xf32>
    %954 = arith.addf %952, %953 : vector<7x16xf32>
    %955 = arith.select %950, %952, %954 : vector<7x16xi1>, vector<7x16xf32>
    %956 = arith.select %950, %952, %947 : vector<7x16xi1>, vector<7x16xf32>
    %957 = arith.subf %956, %952 : vector<7x16xf32>
    %cst_347 = arith.constant 1.000000e+00 : f32
    %958 = vector.broadcast %cst_347 : f32 to vector<7x16xf32>
    %959 = arith.subf %958, %957 : vector<7x16xf32>
    %960 = arith.cmpf oeq, %933, %952 : vector<7x16xf32>
    %961 = arith.extui %960 : vector<7x16xi1> to vector<7x16xi32>
    %962 = arith.sitofp %961 : vector<7x16xi32> to vector<7x16xf32>
    %963 = arith.mulf %959, %962 : vector<7x16xf32>
    %964 = arith.cmpf oeq, %933, %955 : vector<7x16xf32>
    %965 = arith.extui %964 : vector<7x16xi1> to vector<7x16xi32>
    %966 = arith.sitofp %965 : vector<7x16xi32> to vector<7x16xf32>
    %967 = arith.mulf %957, %966 : vector<7x16xf32>
    %968 = arith.addf %963, %967 : vector<7x16xf32>
    %cst_348 = arith.constant 0.000000e+00 : f32
    %969 = vector.broadcast %cst_348 : f32 to vector<7x16xf32>
    %970 = arith.select %945, %968, %969 : vector<7x16xi1>, vector<7x16xf32>
    %971 = arith.addf %934, %970 : vector<7x16xf32>
    %cst_349 = arith.constant 7.500000e-01 : f32
    %972 = vector.broadcast %cst_349 : f32 to vector<7x16xf32>
    %973 = arith.addf %931, %972 : vector<7x16xf32>
    %974 = vector.broadcast %848 : f32 to vector<7x16xf32>
    %975 = arith.mulf %973, %974 : vector<7x16xf32>
    %976 = vector.broadcast %836 : f32 to vector<7x16xf32>
    %977 = arith.addf %976, %975 : vector<7x16xf32>
    %cst_350 = arith.constant -1.000000e+00 : f32
    %978 = vector.broadcast %cst_350 : f32 to vector<7x16xf32>
    %979 = arith.cmpf oge, %977, %978 : vector<7x16xf32>
    %cst_351 = arith.constant 1.600000e+01 : f32
    %980 = vector.broadcast %cst_351 : f32 to vector<7x16xf32>
    %981 = arith.cmpf ole, %977, %980 : vector<7x16xf32>
    %982 = arith.andi %979, %981 : vector<7x16xi1>
    %cst_352 = arith.constant 0.000000e+00 : f32
    %983 = vector.broadcast %cst_352 : f32 to vector<7x16xf32>
    %984 = arith.maximumf %977, %983 : vector<7x16xf32>
    %985 = math.floor %984 : vector<7x16xf32>
    %cst_353 = arith.constant 1.500000e+01 : f32
    %986 = vector.broadcast %cst_353 : f32 to vector<7x16xf32>
    %987 = arith.cmpf oge, %985, %986 : vector<7x16xf32>
    %cst_354 = arith.constant 1.500000e+01 : f32
    %988 = vector.broadcast %cst_354 : f32 to vector<7x16xf32>
    %989 = arith.select %987, %988, %985 : vector<7x16xi1>, vector<7x16xf32>
    %cst_355 = arith.constant 1.000000e+00 : f32
    %990 = vector.broadcast %cst_355 : f32 to vector<7x16xf32>
    %991 = arith.addf %989, %990 : vector<7x16xf32>
    %992 = arith.select %987, %989, %991 : vector<7x16xi1>, vector<7x16xf32>
    %993 = arith.select %987, %989, %984 : vector<7x16xi1>, vector<7x16xf32>
    %994 = arith.subf %993, %989 : vector<7x16xf32>
    %cst_356 = arith.constant 1.000000e+00 : f32
    %995 = vector.broadcast %cst_356 : f32 to vector<7x16xf32>
    %996 = arith.subf %995, %994 : vector<7x16xf32>
    %997 = arith.cmpf oeq, %933, %989 : vector<7x16xf32>
    %998 = arith.extui %997 : vector<7x16xi1> to vector<7x16xi32>
    %999 = arith.sitofp %998 : vector<7x16xi32> to vector<7x16xf32>
    %1000 = arith.mulf %996, %999 : vector<7x16xf32>
    %1001 = arith.cmpf oeq, %933, %992 : vector<7x16xf32>
    %1002 = arith.extui %1001 : vector<7x16xi1> to vector<7x16xi32>
    %1003 = arith.sitofp %1002 : vector<7x16xi32> to vector<7x16xf32>
    %1004 = arith.mulf %994, %1003 : vector<7x16xf32>
    %1005 = arith.addf %1000, %1004 : vector<7x16xf32>
    %cst_357 = arith.constant 0.000000e+00 : f32
    %1006 = vector.broadcast %cst_357 : f32 to vector<7x16xf32>
    %1007 = arith.select %982, %1005, %1006 : vector<7x16xi1>, vector<7x16xf32>
    %1008 = arith.addf %971, %1007 : vector<7x16xf32>
    %cst_358 = arith.constant 2.000000e+00 : f32
    %1009 = vector.broadcast %cst_358 : f32 to vector<7x16xf32>
    %1010 = arith.divf %1008, %1009 : vector<7x16xf32>
    %cst_359 = arith.constant dense<0.000000e+00> : vector<7x64xf32>
    %1011 = tpu.matmul %929, %826, %cst_359 {dimension_numbers = #tpu.dot_dimension_numbers<[1], [0], [0], [1], [0, 0, 1, 1], [], []>} : vector<7x16xf32>, vector<16x64xf32>, vector<7x64xf32> -> vector<7x64xf32>
    %c0_360 = arith.constant 0 : index
    %c0_361 = arith.constant 0 : index
    %1012 = vector.load %arg8[%c0_360, %c0_361] : memref<7x64xf32, #tpu.memory_space<vmem>>, vector<7x64xf32>
    tpu.vector_store %arg8[%c0_360, %c0_361], %1011 {strides = array<i32>} : memref<7x64xf32, #tpu.memory_space<vmem>>, vector<7x64xf32>,
    %c0_362 = arith.constant 0 : index
    %c0_363 = arith.constant 0 : index
    %1013 = vector.load %arg8[%c0_362, %c0_363] : memref<7x64xf32, #tpu.memory_space<vmem>>, vector<7x16xf32>
    %c0_364 = arith.constant 0 : index
    %c0_365 = arith.constant 0 : index
    %1014 = vector.load %arg9[%c0_364, %c0_365] : memref<28x16xf32, #tpu.memory_space<vmem>>, vector<7x16xf32>
    tpu.vector_store %arg9[%c0_364, %c0_365], %1013 {strides = array<i32>} : memref<28x16xf32, #tpu.memory_space<vmem>>, vector<7x16xf32>,
    %c0_366 = arith.constant 0 : index
    %c16_367 = arith.constant 16 : index
    %1015 = vector.load %arg8[%c0_366, %c16_367] : memref<7x64xf32, #tpu.memory_space<vmem>>, vector<7x16xf32>
    %c7_368 = arith.constant 7 : index
    %c0_369 = arith.constant 0 : index
    %1016 = vector.load %arg9[%c7_368, %c0_369] : memref<28x16xf32, #tpu.memory_space<vmem>>, vector<7x16xf32>
    tpu.vector_store %arg9[%c7_368, %c0_369], %1015 {strides = array<i32>} : memref<28x16xf32, #tpu.memory_space<vmem>>, vector<7x16xf32>,
    %c0_370 = arith.constant 0 : index
    %c32_371 = arith.constant 32 : index
    %1017 = vector.load %arg8[%c0_370, %c32_371] : memref<7x64xf32, #tpu.memory_space<vmem>>, vector<7x16xf32>
    %c14_372 = arith.constant 14 : index
    %c0_373 = arith.constant 0 : index
    %1018 = vector.load %arg9[%c14_372, %c0_373] : memref<28x16xf32, #tpu.memory_space<vmem>>, vector<7x16xf32>
    tpu.vector_store %arg9[%c14_372, %c0_373], %1017 {strides = array<i32>} : memref<28x16xf32, #tpu.memory_space<vmem>>, vector<7x16xf32>,
    %c0_374 = arith.constant 0 : index
    %c48_375 = arith.constant 48 : index
    %1019 = vector.load %arg8[%c0_374, %c48_375] : memref<7x64xf32, #tpu.memory_space<vmem>>, vector<7x16xf32>
    %c21_376 = arith.constant 21 : index
    %c0_377 = arith.constant 0 : index
    %1020 = vector.load %arg9[%c21_376, %c0_377] : memref<28x16xf32, #tpu.memory_space<vmem>>, vector<7x16xf32>
    tpu.vector_store %arg9[%c21_376, %c0_377], %1019 {strides = array<i32>} : memref<28x16xf32, #tpu.memory_space<vmem>>, vector<7x16xf32>,
    %c0_378 = arith.constant 0 : index
    %c0_379 = arith.constant 0 : index
    %1021 = vector.load %arg9[%c0_378, %c0_379] : memref<28x16xf32, #tpu.memory_space<vmem>>, vector<28x16xf32>
    %cst_380 = arith.constant dense<0.000000e+00> : vector<7x28xf32>
    %1022 = tpu.matmul %1010, %1021, %cst_380 {dimension_numbers = #tpu.dot_dimension_numbers<[1], [1], [0], [0], [0, 0, 1, 0], [], []>} : vector<7x16xf32>, vector<28x16xf32>, vector<7x28xf32> -> vector<7x28xf32>
    %c4 = arith.constant 4 : index
    %c0_381 = arith.constant 0 : index
    %c0_382 = arith.constant 0 : index
    %1023 = vector.load %arg7[%c4, %c0_381, %c0_382] : memref<8x7x28xf32, #tpu.memory_space<vmem>>, vector<1x7x28xf32>
    %1024 = vector.shape_cast %1023 : vector<1x7x28xf32> to vector<7x28xf32>
    %1025 = vector.shape_cast %1022 : vector<7x28xf32> to vector<1x7x28xf32>
    tpu.vector_store %arg7[%c4, %c0_381, %c0_382], %1025 {strides = array<i32>} : memref<8x7x28xf32, #tpu.memory_space<vmem>>, vector<1x7x28xf32>,
    %c5_i32 = arith.constant 5 : i32
    %1026 = arith.addi %0, %c5_i32 : i32
    %1027 = arith.index_cast %1026 : i32 to index
    %1028 = memref.load %arg1[%1027] : memref<8xi32, #tpu.memory_space<smem>>
    %1029 = arith.index_cast %1028 : i32 to index
    %c0_383 = arith.constant 0 : index
    %c0_384 = arith.constant 0 : index
    %1030 = vector.load %arg6[%1029, %c0_383, %c0_384] : memref<2x16x64xf32, #tpu.memory_space<vmem>>, vector<1x16x64xf32>
    %1031 = vector.shape_cast %1030 : vector<1x16x64xf32> to vector<16x64xf32>
    %1032 = arith.index_cast %1026 : i32 to index
    %1033 = memref.load %arg2[%1032] : memref<8xf32, #tpu.memory_space<smem>>
    %1034 = arith.index_cast %1026 : i32 to index
    %1035 = memref.load %arg3[%1034] : memref<8xf32, #tpu.memory_space<smem>>
    %1036 = arith.index_cast %1026 : i32 to index
    %1037 = memref.load %arg4[%1036] : memref<8xf32, #tpu.memory_space<smem>>
    %1038 = arith.index_cast %1026 : i32 to index
    %1039 = memref.load %arg5[%1038] : memref<8xf32, #tpu.memory_space<smem>>
    %cst_385 = arith.constant 5.000000e-01 : f32
    %1040 = arith.mulf %1033, %cst_385 : f32
    %cst_386 = arith.constant 0.000000e+00 : f32
    %1041 = arith.subf %1040, %cst_386 : f32
    %cst_387 = arith.constant 5.000000e-01 : f32
    %1042 = arith.mulf %1035, %cst_387 : f32
    %cst_388 = arith.constant 0.000000e+00 : f32
    %1043 = arith.subf %1042, %cst_388 : f32
    %cst_389 = arith.constant 5.000000e-01 : f32
    %1044 = arith.mulf %1037, %cst_389 : f32
    %cst_390 = arith.constant 0.000000e+00 : f32
    %1045 = arith.subf %1044, %cst_390 : f32
    %cst_391 = arith.constant 5.000000e-01 : f32
    %1046 = arith.mulf %1039, %cst_391 : f32
    %cst_392 = arith.constant 0.000000e+00 : f32
    %1047 = arith.subf %1046, %cst_392 : f32
    %1048 = arith.subf %1045, %1041 : f32
    %1049 = arith.subf %1047, %1043 : f32
    %cst_393 = arith.constant 1.000000e+00 : f32
    %1050 = arith.maximumf %1048, %cst_393 : f32
    %cst_394 = arith.constant 1.000000e+00 : f32
    %1051 = arith.maximumf %1049, %cst_394 : f32
    %cst_395 = arith.constant 7.000000e+00 : f32
    %1052 = arith.divf %1051, %cst_395 : f32
    %cst_396 = arith.constant 7.000000e+00 : f32
    %1053 = arith.divf %1050, %cst_396 : f32
    %1054 = tpu.iota {dimensions = array<i32: 0>} : vector<7x16xi32>
    %1055 = arith.sitofp %1054 : vector<7x16xi32> to vector<7x16xf32>
    %1056 = tpu.iota {dimensions = array<i32: 1>} : vector<7x16xi32>
    %1057 = arith.sitofp %1056 : vector<7x16xi32> to vector<7x16xf32>
    %cst_397 = arith.constant 0.000000e+00 : f32
    %1058 = vector.broadcast %cst_397 : f32 to vector<7x16xf32>
    %cst_398 = arith.constant 2.500000e-01 : f32
    %1059 = vector.broadcast %cst_398 : f32 to vector<7x16xf32>
    %1060 = arith.addf %1055, %1059 : vector<7x16xf32>
    %1061 = vector.broadcast %1052 : f32 to vector<7x16xf32>
    %1062 = arith.mulf %1060, %1061 : vector<7x16xf32>
    %1063 = vector.broadcast %1043 : f32 to vector<7x16xf32>
    %1064 = arith.addf %1063, %1062 : vector<7x16xf32>
    %cst_399 = arith.constant -1.000000e+00 : f32
    %1065 = vector.broadcast %cst_399 : f32 to vector<7x16xf32>
    %1066 = arith.cmpf oge, %1064, %1065 : vector<7x16xf32>
    %cst_400 = arith.constant 1.600000e+01 : f32
    %1067 = vector.broadcast %cst_400 : f32 to vector<7x16xf32>
    %1068 = arith.cmpf ole, %1064, %1067 : vector<7x16xf32>
    %1069 = arith.andi %1066, %1068 : vector<7x16xi1>
    %cst_401 = arith.constant 0.000000e+00 : f32
    %1070 = vector.broadcast %cst_401 : f32 to vector<7x16xf32>
    %1071 = arith.maximumf %1064, %1070 : vector<7x16xf32>
    %1072 = math.floor %1071 : vector<7x16xf32>
    %cst_402 = arith.constant 1.500000e+01 : f32
    %1073 = vector.broadcast %cst_402 : f32 to vector<7x16xf32>
    %1074 = arith.cmpf oge, %1072, %1073 : vector<7x16xf32>
    %cst_403 = arith.constant 1.500000e+01 : f32
    %1075 = vector.broadcast %cst_403 : f32 to vector<7x16xf32>
    %1076 = arith.select %1074, %1075, %1072 : vector<7x16xi1>, vector<7x16xf32>
    %cst_404 = arith.constant 1.000000e+00 : f32
    %1077 = vector.broadcast %cst_404 : f32 to vector<7x16xf32>
    %1078 = arith.addf %1076, %1077 : vector<7x16xf32>
    %1079 = arith.select %1074, %1076, %1078 : vector<7x16xi1>, vector<7x16xf32>
    %1080 = arith.select %1074, %1076, %1071 : vector<7x16xi1>, vector<7x16xf32>
    %1081 = arith.subf %1080, %1076 : vector<7x16xf32>
    %cst_405 = arith.constant 1.000000e+00 : f32
    %1082 = vector.broadcast %cst_405 : f32 to vector<7x16xf32>
    %1083 = arith.subf %1082, %1081 : vector<7x16xf32>
    %1084 = arith.cmpf oeq, %1057, %1076 : vector<7x16xf32>
    %1085 = arith.extui %1084 : vector<7x16xi1> to vector<7x16xi32>
    %1086 = arith.sitofp %1085 : vector<7x16xi32> to vector<7x16xf32>
    %1087 = arith.mulf %1083, %1086 : vector<7x16xf32>
    %1088 = arith.cmpf oeq, %1057, %1079 : vector<7x16xf32>
    %1089 = arith.extui %1088 : vector<7x16xi1> to vector<7x16xi32>
    %1090 = arith.sitofp %1089 : vector<7x16xi32> to vector<7x16xf32>
    %1091 = arith.mulf %1081, %1090 : vector<7x16xf32>
    %1092 = arith.addf %1087, %1091 : vector<7x16xf32>
    %cst_406 = arith.constant 0.000000e+00 : f32
    %1093 = vector.broadcast %cst_406 : f32 to vector<7x16xf32>
    %1094 = arith.select %1069, %1092, %1093 : vector<7x16xi1>, vector<7x16xf32>
    %1095 = arith.addf %1058, %1094 : vector<7x16xf32>
    %cst_407 = arith.constant 7.500000e-01 : f32
    %1096 = vector.broadcast %cst_407 : f32 to vector<7x16xf32>
    %1097 = arith.addf %1055, %1096 : vector<7x16xf32>
    %1098 = vector.broadcast %1052 : f32 to vector<7x16xf32>
    %1099 = arith.mulf %1097, %1098 : vector<7x16xf32>
    %1100 = vector.broadcast %1043 : f32 to vector<7x16xf32>
    %1101 = arith.addf %1100, %1099 : vector<7x16xf32>
    %cst_408 = arith.constant -1.000000e+00 : f32
    %1102 = vector.broadcast %cst_408 : f32 to vector<7x16xf32>
    %1103 = arith.cmpf oge, %1101, %1102 : vector<7x16xf32>
    %cst_409 = arith.constant 1.600000e+01 : f32
    %1104 = vector.broadcast %cst_409 : f32 to vector<7x16xf32>
    %1105 = arith.cmpf ole, %1101, %1104 : vector<7x16xf32>
    %1106 = arith.andi %1103, %1105 : vector<7x16xi1>
    %cst_410 = arith.constant 0.000000e+00 : f32
    %1107 = vector.broadcast %cst_410 : f32 to vector<7x16xf32>
    %1108 = arith.maximumf %1101, %1107 : vector<7x16xf32>
    %1109 = math.floor %1108 : vector<7x16xf32>
    %cst_411 = arith.constant 1.500000e+01 : f32
    %1110 = vector.broadcast %cst_411 : f32 to vector<7x16xf32>
    %1111 = arith.cmpf oge, %1109, %1110 : vector<7x16xf32>
    %cst_412 = arith.constant 1.500000e+01 : f32
    %1112 = vector.broadcast %cst_412 : f32 to vector<7x16xf32>
    %1113 = arith.select %1111, %1112, %1109 : vector<7x16xi1>, vector<7x16xf32>
    %cst_413 = arith.constant 1.000000e+00 : f32
    %1114 = vector.broadcast %cst_413 : f32 to vector<7x16xf32>
    %1115 = arith.addf %1113, %1114 : vector<7x16xf32>
    %1116 = arith.select %1111, %1113, %1115 : vector<7x16xi1>, vector<7x16xf32>
    %1117 = arith.select %1111, %1113, %1108 : vector<7x16xi1>, vector<7x16xf32>
    %1118 = arith.subf %1117, %1113 : vector<7x16xf32>
    %cst_414 = arith.constant 1.000000e+00 : f32
    %1119 = vector.broadcast %cst_414 : f32 to vector<7x16xf32>
    %1120 = arith.subf %1119, %1118 : vector<7x16xf32>
    %1121 = arith.cmpf oeq, %1057, %1113 : vector<7x16xf32>
    %1122 = arith.extui %1121 : vector<7x16xi1> to vector<7x16xi32>
    %1123 = arith.sitofp %1122 : vector<7x16xi32> to vector<7x16xf32>
    %1124 = arith.mulf %1120, %1123 : vector<7x16xf32>
    %1125 = arith.cmpf oeq, %1057, %1116 : vector<7x16xf32>
    %1126 = arith.extui %1125 : vector<7x16xi1> to vector<7x16xi32>
    %1127 = arith.sitofp %1126 : vector<7x16xi32> to vector<7x16xf32>
    %1128 = arith.mulf %1118, %1127 : vector<7x16xf32>
    %1129 = arith.addf %1124, %1128 : vector<7x16xf32>
    %cst_415 = arith.constant 0.000000e+00 : f32
    %1130 = vector.broadcast %cst_415 : f32 to vector<7x16xf32>
    %1131 = arith.select %1106, %1129, %1130 : vector<7x16xi1>, vector<7x16xf32>
    %1132 = arith.addf %1095, %1131 : vector<7x16xf32>
    %cst_416 = arith.constant 2.000000e+00 : f32
    %1133 = vector.broadcast %cst_416 : f32 to vector<7x16xf32>
    %1134 = arith.divf %1132, %1133 : vector<7x16xf32>
    %1135 = tpu.iota {dimensions = array<i32: 0>} : vector<7x16xi32>
    %1136 = arith.sitofp %1135 : vector<7x16xi32> to vector<7x16xf32>
    %1137 = tpu.iota {dimensions = array<i32: 1>} : vector<7x16xi32>
    %1138 = arith.sitofp %1137 : vector<7x16xi32> to vector<7x16xf32>
    %cst_417 = arith.constant 0.000000e+00 : f32
    %1139 = vector.broadcast %cst_417 : f32 to vector<7x16xf32>
    %cst_418 = arith.constant 2.500000e-01 : f32
    %1140 = vector.broadcast %cst_418 : f32 to vector<7x16xf32>
    %1141 = arith.addf %1136, %1140 : vector<7x16xf32>
    %1142 = vector.broadcast %1053 : f32 to vector<7x16xf32>
    %1143 = arith.mulf %1141, %1142 : vector<7x16xf32>
    %1144 = vector.broadcast %1041 : f32 to vector<7x16xf32>
    %1145 = arith.addf %1144, %1143 : vector<7x16xf32>
    %cst_419 = arith.constant -1.000000e+00 : f32
    %1146 = vector.broadcast %cst_419 : f32 to vector<7x16xf32>
    %1147 = arith.cmpf oge, %1145, %1146 : vector<7x16xf32>
    %cst_420 = arith.constant 1.600000e+01 : f32
    %1148 = vector.broadcast %cst_420 : f32 to vector<7x16xf32>
    %1149 = arith.cmpf ole, %1145, %1148 : vector<7x16xf32>
    %1150 = arith.andi %1147, %1149 : vector<7x16xi1>
    %cst_421 = arith.constant 0.000000e+00 : f32
    %1151 = vector.broadcast %cst_421 : f32 to vector<7x16xf32>
    %1152 = arith.maximumf %1145, %1151 : vector<7x16xf32>
    %1153 = math.floor %1152 : vector<7x16xf32>
    %cst_422 = arith.constant 1.500000e+01 : f32
    %1154 = vector.broadcast %cst_422 : f32 to vector<7x16xf32>
    %1155 = arith.cmpf oge, %1153, %1154 : vector<7x16xf32>
    %cst_423 = arith.constant 1.500000e+01 : f32
    %1156 = vector.broadcast %cst_423 : f32 to vector<7x16xf32>
    %1157 = arith.select %1155, %1156, %1153 : vector<7x16xi1>, vector<7x16xf32>
    %cst_424 = arith.constant 1.000000e+00 : f32
    %1158 = vector.broadcast %cst_424 : f32 to vector<7x16xf32>
    %1159 = arith.addf %1157, %1158 : vector<7x16xf32>
    %1160 = arith.select %1155, %1157, %1159 : vector<7x16xi1>, vector<7x16xf32>
    %1161 = arith.select %1155, %1157, %1152 : vector<7x16xi1>, vector<7x16xf32>
    %1162 = arith.subf %1161, %1157 : vector<7x16xf32>
    %cst_425 = arith.constant 1.000000e+00 : f32
    %1163 = vector.broadcast %cst_425 : f32 to vector<7x16xf32>
    %1164 = arith.subf %1163, %1162 : vector<7x16xf32>
    %1165 = arith.cmpf oeq, %1138, %1157 : vector<7x16xf32>
    %1166 = arith.extui %1165 : vector<7x16xi1> to vector<7x16xi32>
    %1167 = arith.sitofp %1166 : vector<7x16xi32> to vector<7x16xf32>
    %1168 = arith.mulf %1164, %1167 : vector<7x16xf32>
    %1169 = arith.cmpf oeq, %1138, %1160 : vector<7x16xf32>
    %1170 = arith.extui %1169 : vector<7x16xi1> to vector<7x16xi32>
    %1171 = arith.sitofp %1170 : vector<7x16xi32> to vector<7x16xf32>
    %1172 = arith.mulf %1162, %1171 : vector<7x16xf32>
    %1173 = arith.addf %1168, %1172 : vector<7x16xf32>
    %cst_426 = arith.constant 0.000000e+00 : f32
    %1174 = vector.broadcast %cst_426 : f32 to vector<7x16xf32>
    %1175 = arith.select %1150, %1173, %1174 : vector<7x16xi1>, vector<7x16xf32>
    %1176 = arith.addf %1139, %1175 : vector<7x16xf32>
    %cst_427 = arith.constant 7.500000e-01 : f32
    %1177 = vector.broadcast %cst_427 : f32 to vector<7x16xf32>
    %1178 = arith.addf %1136, %1177 : vector<7x16xf32>
    %1179 = vector.broadcast %1053 : f32 to vector<7x16xf32>
    %1180 = arith.mulf %1178, %1179 : vector<7x16xf32>
    %1181 = vector.broadcast %1041 : f32 to vector<7x16xf32>
    %1182 = arith.addf %1181, %1180 : vector<7x16xf32>
    %cst_428 = arith.constant -1.000000e+00 : f32
    %1183 = vector.broadcast %cst_428 : f32 to vector<7x16xf32>
    %1184 = arith.cmpf oge, %1182, %1183 : vector<7x16xf32>
    %cst_429 = arith.constant 1.600000e+01 : f32
    %1185 = vector.broadcast %cst_429 : f32 to vector<7x16xf32>
    %1186 = arith.cmpf ole, %1182, %1185 : vector<7x16xf32>
    %1187 = arith.andi %1184, %1186 : vector<7x16xi1>
    %cst_430 = arith.constant 0.000000e+00 : f32
    %1188 = vector.broadcast %cst_430 : f32 to vector<7x16xf32>
    %1189 = arith.maximumf %1182, %1188 : vector<7x16xf32>
    %1190 = math.floor %1189 : vector<7x16xf32>
    %cst_431 = arith.constant 1.500000e+01 : f32
    %1191 = vector.broadcast %cst_431 : f32 to vector<7x16xf32>
    %1192 = arith.cmpf oge, %1190, %1191 : vector<7x16xf32>
    %cst_432 = arith.constant 1.500000e+01 : f32
    %1193 = vector.broadcast %cst_432 : f32 to vector<7x16xf32>
    %1194 = arith.select %1192, %1193, %1190 : vector<7x16xi1>, vector<7x16xf32>
    %cst_433 = arith.constant 1.000000e+00 : f32
    %1195 = vector.broadcast %cst_433 : f32 to vector<7x16xf32>
    %1196 = arith.addf %1194, %1195 : vector<7x16xf32>
    %1197 = arith.select %1192, %1194, %1196 : vector<7x16xi1>, vector<7x16xf32>
    %1198 = arith.select %1192, %1194, %1189 : vector<7x16xi1>, vector<7x16xf32>
    %1199 = arith.subf %1198, %1194 : vector<7x16xf32>
    %cst_434 = arith.constant 1.000000e+00 : f32
    %1200 = vector.broadcast %cst_434 : f32 to vector<7x16xf32>
    %1201 = arith.subf %1200, %1199 : vector<7x16xf32>
    %1202 = arith.cmpf oeq, %1138, %1194 : vector<7x16xf32>
    %1203 = arith.extui %1202 : vector<7x16xi1> to vector<7x16xi32>
    %1204 = arith.sitofp %1203 : vector<7x16xi32> to vector<7x16xf32>
    %1205 = arith.mulf %1201, %1204 : vector<7x16xf32>
    %1206 = arith.cmpf oeq, %1138, %1197 : vector<7x16xf32>
    %1207 = arith.extui %1206 : vector<7x16xi1> to vector<7x16xi32>
    %1208 = arith.sitofp %1207 : vector<7x16xi32> to vector<7x16xf32>
    %1209 = arith.mulf %1199, %1208 : vector<7x16xf32>
    %1210 = arith.addf %1205, %1209 : vector<7x16xf32>
    %cst_435 = arith.constant 0.000000e+00 : f32
    %1211 = vector.broadcast %cst_435 : f32 to vector<7x16xf32>
    %1212 = arith.select %1187, %1210, %1211 : vector<7x16xi1>, vector<7x16xf32>
    %1213 = arith.addf %1176, %1212 : vector<7x16xf32>
    %cst_436 = arith.constant 2.000000e+00 : f32
    %1214 = vector.broadcast %cst_436 : f32 to vector<7x16xf32>
    %1215 = arith.divf %1213, %1214 : vector<7x16xf32>
    %cst_437 = arith.constant dense<0.000000e+00> : vector<7x64xf32>
    %1216 = tpu.matmul %1134, %1031, %cst_437 {dimension_numbers = #tpu.dot_dimension_numbers<[1], [0], [0], [1], [0, 0, 1, 1], [], []>} : vector<7x16xf32>, vector<16x64xf32>, vector<7x64xf32> -> vector<7x64xf32>
    %c0_438 = arith.constant 0 : index
    %c0_439 = arith.constant 0 : index
    %1217 = vector.load %arg8[%c0_438, %c0_439] : memref<7x64xf32, #tpu.memory_space<vmem>>, vector<7x64xf32>
    tpu.vector_store %arg8[%c0_438, %c0_439], %1216 {strides = array<i32>} : memref<7x64xf32, #tpu.memory_space<vmem>>, vector<7x64xf32>,
    %c0_440 = arith.constant 0 : index
    %c0_441 = arith.constant 0 : index
    %1218 = vector.load %arg8[%c0_440, %c0_441] : memref<7x64xf32, #tpu.memory_space<vmem>>, vector<7x16xf32>
    %c0_442 = arith.constant 0 : index
    %c0_443 = arith.constant 0 : index
    %1219 = vector.load %arg9[%c0_442, %c0_443] : memref<28x16xf32, #tpu.memory_space<vmem>>, vector<7x16xf32>
    tpu.vector_store %arg9[%c0_442, %c0_443], %1218 {strides = array<i32>} : memref<28x16xf32, #tpu.memory_space<vmem>>, vector<7x16xf32>,
    %c0_444 = arith.constant 0 : index
    %c16_445 = arith.constant 16 : index
    %1220 = vector.load %arg8[%c0_444, %c16_445] : memref<7x64xf32, #tpu.memory_space<vmem>>, vector<7x16xf32>
    %c7_446 = arith.constant 7 : index
    %c0_447 = arith.constant 0 : index
    %1221 = vector.load %arg9[%c7_446, %c0_447] : memref<28x16xf32, #tpu.memory_space<vmem>>, vector<7x16xf32>
    tpu.vector_store %arg9[%c7_446, %c0_447], %1220 {strides = array<i32>} : memref<28x16xf32, #tpu.memory_space<vmem>>, vector<7x16xf32>,
    %c0_448 = arith.constant 0 : index
    %c32_449 = arith.constant 32 : index
    %1222 = vector.load %arg8[%c0_448, %c32_449] : memref<7x64xf32, #tpu.memory_space<vmem>>, vector<7x16xf32>
    %c14_450 = arith.constant 14 : index
    %c0_451 = arith.constant 0 : index
    %1223 = vector.load %arg9[%c14_450, %c0_451] : memref<28x16xf32, #tpu.memory_space<vmem>>, vector<7x16xf32>
    tpu.vector_store %arg9[%c14_450, %c0_451], %1222 {strides = array<i32>} : memref<28x16xf32, #tpu.memory_space<vmem>>, vector<7x16xf32>,
    %c0_452 = arith.constant 0 : index
    %c48_453 = arith.constant 48 : index
    %1224 = vector.load %arg8[%c0_452, %c48_453] : memref<7x64xf32, #tpu.memory_space<vmem>>, vector<7x16xf32>
    %c21_454 = arith.constant 21 : index
    %c0_455 = arith.constant 0 : index
    %1225 = vector.load %arg9[%c21_454, %c0_455] : memref<28x16xf32, #tpu.memory_space<vmem>>, vector<7x16xf32>
    tpu.vector_store %arg9[%c21_454, %c0_455], %1224 {strides = array<i32>} : memref<28x16xf32, #tpu.memory_space<vmem>>, vector<7x16xf32>,
    %c0_456 = arith.constant 0 : index
    %c0_457 = arith.constant 0 : index
    %1226 = vector.load %arg9[%c0_456, %c0_457] : memref<28x16xf32, #tpu.memory_space<vmem>>, vector<28x16xf32>
    %cst_458 = arith.constant dense<0.000000e+00> : vector<7x28xf32>
    %1227 = tpu.matmul %1215, %1226, %cst_458 {dimension_numbers = #tpu.dot_dimension_numbers<[1], [1], [0], [0], [0, 0, 1, 0], [], []>} : vector<7x16xf32>, vector<28x16xf32>, vector<7x28xf32> -> vector<7x28xf32>
    %c5 = arith.constant 5 : index
    %c0_459 = arith.constant 0 : index
    %c0_460 = arith.constant 0 : index
    %1228 = vector.load %arg7[%c5, %c0_459, %c0_460] : memref<8x7x28xf32, #tpu.memory_space<vmem>>, vector<1x7x28xf32>
    %1229 = vector.shape_cast %1228 : vector<1x7x28xf32> to vector<7x28xf32>
    %1230 = vector.shape_cast %1227 : vector<7x28xf32> to vector<1x7x28xf32>
    tpu.vector_store %arg7[%c5, %c0_459, %c0_460], %1230 {strides = array<i32>} : memref<8x7x28xf32, #tpu.memory_space<vmem>>, vector<1x7x28xf32>,
    %c6_i32 = arith.constant 6 : i32
    %1231 = arith.addi %0, %c6_i32 : i32
    %1232 = arith.index_cast %1231 : i32 to index
    %1233 = memref.load %arg1[%1232] : memref<8xi32, #tpu.memory_space<smem>>
    %1234 = arith.index_cast %1233 : i32 to index
    %c0_461 = arith.constant 0 : index
    %c0_462 = arith.constant 0 : index
    %1235 = vector.load %arg6[%1234, %c0_461, %c0_462] : memref<2x16x64xf32, #tpu.memory_space<vmem>>, vector<1x16x64xf32>
    %1236 = vector.shape_cast %1235 : vector<1x16x64xf32> to vector<16x64xf32>
    %1237 = arith.index_cast %1231 : i32 to index
    %1238 = memref.load %arg2[%1237] : memref<8xf32, #tpu.memory_space<smem>>
    %1239 = arith.index_cast %1231 : i32 to index
    %1240 = memref.load %arg3[%1239] : memref<8xf32, #tpu.memory_space<smem>>
    %1241 = arith.index_cast %1231 : i32 to index
    %1242 = memref.load %arg4[%1241] : memref<8xf32, #tpu.memory_space<smem>>
    %1243 = arith.index_cast %1231 : i32 to index
    %1244 = memref.load %arg5[%1243] : memref<8xf32, #tpu.memory_space<smem>>
    %cst_463 = arith.constant 5.000000e-01 : f32
    %1245 = arith.mulf %1238, %cst_463 : f32
    %cst_464 = arith.constant 0.000000e+00 : f32
    %1246 = arith.subf %1245, %cst_464 : f32
    %cst_465 = arith.constant 5.000000e-01 : f32
    %1247 = arith.mulf %1240, %cst_465 : f32
    %cst_466 = arith.constant 0.000000e+00 : f32
    %1248 = arith.subf %1247, %cst_466 : f32
    %cst_467 = arith.constant 5.000000e-01 : f32
    %1249 = arith.mulf %1242, %cst_467 : f32
    %cst_468 = arith.constant 0.000000e+00 : f32
    %1250 = arith.subf %1249, %cst_468 : f32
    %cst_469 = arith.constant 5.000000e-01 : f32
    %1251 = arith.mulf %1244, %cst_469 : f32
    %cst_470 = arith.constant 0.000000e+00 : f32
    %1252 = arith.subf %1251, %cst_470 : f32
    %1253 = arith.subf %1250, %1246 : f32
    %1254 = arith.subf %1252, %1248 : f32
    %cst_471 = arith.constant 1.000000e+00 : f32
    %1255 = arith.maximumf %1253, %cst_471 : f32
    %cst_472 = arith.constant 1.000000e+00 : f32
    %1256 = arith.maximumf %1254, %cst_472 : f32
    %cst_473 = arith.constant 7.000000e+00 : f32
    %1257 = arith.divf %1256, %cst_473 : f32
    %cst_474 = arith.constant 7.000000e+00 : f32
    %1258 = arith.divf %1255, %cst_474 : f32
    %1259 = tpu.iota {dimensions = array<i32: 0>} : vector<7x16xi32>
    %1260 = arith.sitofp %1259 : vector<7x16xi32> to vector<7x16xf32>
    %1261 = tpu.iota {dimensions = array<i32: 1>} : vector<7x16xi32>
    %1262 = arith.sitofp %1261 : vector<7x16xi32> to vector<7x16xf32>
    %cst_475 = arith.constant 0.000000e+00 : f32
    %1263 = vector.broadcast %cst_475 : f32 to vector<7x16xf32>
    %cst_476 = arith.constant 2.500000e-01 : f32
    %1264 = vector.broadcast %cst_476 : f32 to vector<7x16xf32>
    %1265 = arith.addf %1260, %1264 : vector<7x16xf32>
    %1266 = vector.broadcast %1257 : f32 to vector<7x16xf32>
    %1267 = arith.mulf %1265, %1266 : vector<7x16xf32>
    %1268 = vector.broadcast %1248 : f32 to vector<7x16xf32>
    %1269 = arith.addf %1268, %1267 : vector<7x16xf32>
    %cst_477 = arith.constant -1.000000e+00 : f32
    %1270 = vector.broadcast %cst_477 : f32 to vector<7x16xf32>
    %1271 = arith.cmpf oge, %1269, %1270 : vector<7x16xf32>
    %cst_478 = arith.constant 1.600000e+01 : f32
    %1272 = vector.broadcast %cst_478 : f32 to vector<7x16xf32>
    %1273 = arith.cmpf ole, %1269, %1272 : vector<7x16xf32>
    %1274 = arith.andi %1271, %1273 : vector<7x16xi1>
    %cst_479 = arith.constant 0.000000e+00 : f32
    %1275 = vector.broadcast %cst_479 : f32 to vector<7x16xf32>
    %1276 = arith.maximumf %1269, %1275 : vector<7x16xf32>
    %1277 = math.floor %1276 : vector<7x16xf32>
    %cst_480 = arith.constant 1.500000e+01 : f32
    %1278 = vector.broadcast %cst_480 : f32 to vector<7x16xf32>
    %1279 = arith.cmpf oge, %1277, %1278 : vector<7x16xf32>
    %cst_481 = arith.constant 1.500000e+01 : f32
    %1280 = vector.broadcast %cst_481 : f32 to vector<7x16xf32>
    %1281 = arith.select %1279, %1280, %1277 : vector<7x16xi1>, vector<7x16xf32>
    %cst_482 = arith.constant 1.000000e+00 : f32
    %1282 = vector.broadcast %cst_482 : f32 to vector<7x16xf32>
    %1283 = arith.addf %1281, %1282 : vector<7x16xf32>
    %1284 = arith.select %1279, %1281, %1283 : vector<7x16xi1>, vector<7x16xf32>
    %1285 = arith.select %1279, %1281, %1276 : vector<7x16xi1>, vector<7x16xf32>
    %1286 = arith.subf %1285, %1281 : vector<7x16xf32>
    %cst_483 = arith.constant 1.000000e+00 : f32
    %1287 = vector.broadcast %cst_483 : f32 to vector<7x16xf32>
    %1288 = arith.subf %1287, %1286 : vector<7x16xf32>
    %1289 = arith.cmpf oeq, %1262, %1281 : vector<7x16xf32>
    %1290 = arith.extui %1289 : vector<7x16xi1> to vector<7x16xi32>
    %1291 = arith.sitofp %1290 : vector<7x16xi32> to vector<7x16xf32>
    %1292 = arith.mulf %1288, %1291 : vector<7x16xf32>
    %1293 = arith.cmpf oeq, %1262, %1284 : vector<7x16xf32>
    %1294 = arith.extui %1293 : vector<7x16xi1> to vector<7x16xi32>
    %1295 = arith.sitofp %1294 : vector<7x16xi32> to vector<7x16xf32>
    %1296 = arith.mulf %1286, %1295 : vector<7x16xf32>
    %1297 = arith.addf %1292, %1296 : vector<7x16xf32>
    %cst_484 = arith.constant 0.000000e+00 : f32
    %1298 = vector.broadcast %cst_484 : f32 to vector<7x16xf32>
    %1299 = arith.select %1274, %1297, %1298 : vector<7x16xi1>, vector<7x16xf32>
    %1300 = arith.addf %1263, %1299 : vector<7x16xf32>
    %cst_485 = arith.constant 7.500000e-01 : f32
    %1301 = vector.broadcast %cst_485 : f32 to vector<7x16xf32>
    %1302 = arith.addf %1260, %1301 : vector<7x16xf32>
    %1303 = vector.broadcast %1257 : f32 to vector<7x16xf32>
    %1304 = arith.mulf %1302, %1303 : vector<7x16xf32>
    %1305 = vector.broadcast %1248 : f32 to vector<7x16xf32>
    %1306 = arith.addf %1305, %1304 : vector<7x16xf32>
    %cst_486 = arith.constant -1.000000e+00 : f32
    %1307 = vector.broadcast %cst_486 : f32 to vector<7x16xf32>
    %1308 = arith.cmpf oge, %1306, %1307 : vector<7x16xf32>
    %cst_487 = arith.constant 1.600000e+01 : f32
    %1309 = vector.broadcast %cst_487 : f32 to vector<7x16xf32>
    %1310 = arith.cmpf ole, %1306, %1309 : vector<7x16xf32>
    %1311 = arith.andi %1308, %1310 : vector<7x16xi1>
    %cst_488 = arith.constant 0.000000e+00 : f32
    %1312 = vector.broadcast %cst_488 : f32 to vector<7x16xf32>
    %1313 = arith.maximumf %1306, %1312 : vector<7x16xf32>
    %1314 = math.floor %1313 : vector<7x16xf32>
    %cst_489 = arith.constant 1.500000e+01 : f32
    %1315 = vector.broadcast %cst_489 : f32 to vector<7x16xf32>
    %1316 = arith.cmpf oge, %1314, %1315 : vector<7x16xf32>
    %cst_490 = arith.constant 1.500000e+01 : f32
    %1317 = vector.broadcast %cst_490 : f32 to vector<7x16xf32>
    %1318 = arith.select %1316, %1317, %1314 : vector<7x16xi1>, vector<7x16xf32>
    %cst_491 = arith.constant 1.000000e+00 : f32
    %1319 = vector.broadcast %cst_491 : f32 to vector<7x16xf32>
    %1320 = arith.addf %1318, %1319 : vector<7x16xf32>
    %1321 = arith.select %1316, %1318, %1320 : vector<7x16xi1>, vector<7x16xf32>
    %1322 = arith.select %1316, %1318, %1313 : vector<7x16xi1>, vector<7x16xf32>
    %1323 = arith.subf %1322, %1318 : vector<7x16xf32>
    %cst_492 = arith.constant 1.000000e+00 : f32
    %1324 = vector.broadcast %cst_492 : f32 to vector<7x16xf32>
    %1325 = arith.subf %1324, %1323 : vector<7x16xf32>
    %1326 = arith.cmpf oeq, %1262, %1318 : vector<7x16xf32>
    %1327 = arith.extui %1326 : vector<7x16xi1> to vector<7x16xi32>
    %1328 = arith.sitofp %1327 : vector<7x16xi32> to vector<7x16xf32>
    %1329 = arith.mulf %1325, %1328 : vector<7x16xf32>
    %1330 = arith.cmpf oeq, %1262, %1321 : vector<7x16xf32>
    %1331 = arith.extui %1330 : vector<7x16xi1> to vector<7x16xi32>
    %1332 = arith.sitofp %1331 : vector<7x16xi32> to vector<7x16xf32>
    %1333 = arith.mulf %1323, %1332 : vector<7x16xf32>
    %1334 = arith.addf %1329, %1333 : vector<7x16xf32>
    %cst_493 = arith.constant 0.000000e+00 : f32
    %1335 = vector.broadcast %cst_493 : f32 to vector<7x16xf32>
    %1336 = arith.select %1311, %1334, %1335 : vector<7x16xi1>, vector<7x16xf32>
    %1337 = arith.addf %1300, %1336 : vector<7x16xf32>
    %cst_494 = arith.constant 2.000000e+00 : f32
    %1338 = vector.broadcast %cst_494 : f32 to vector<7x16xf32>
    %1339 = arith.divf %1337, %1338 : vector<7x16xf32>
    %1340 = tpu.iota {dimensions = array<i32: 0>} : vector<7x16xi32>
    %1341 = arith.sitofp %1340 : vector<7x16xi32> to vector<7x16xf32>
    %1342 = tpu.iota {dimensions = array<i32: 1>} : vector<7x16xi32>
    %1343 = arith.sitofp %1342 : vector<7x16xi32> to vector<7x16xf32>
    %cst_495 = arith.constant 0.000000e+00 : f32
    %1344 = vector.broadcast %cst_495 : f32 to vector<7x16xf32>
    %cst_496 = arith.constant 2.500000e-01 : f32
    %1345 = vector.broadcast %cst_496 : f32 to vector<7x16xf32>
    %1346 = arith.addf %1341, %1345 : vector<7x16xf32>
    %1347 = vector.broadcast %1258 : f32 to vector<7x16xf32>
    %1348 = arith.mulf %1346, %1347 : vector<7x16xf32>
    %1349 = vector.broadcast %1246 : f32 to vector<7x16xf32>
    %1350 = arith.addf %1349, %1348 : vector<7x16xf32>
    %cst_497 = arith.constant -1.000000e+00 : f32
    %1351 = vector.broadcast %cst_497 : f32 to vector<7x16xf32>
    %1352 = arith.cmpf oge, %1350, %1351 : vector<7x16xf32>
    %cst_498 = arith.constant 1.600000e+01 : f32
    %1353 = vector.broadcast %cst_498 : f32 to vector<7x16xf32>
    %1354 = arith.cmpf ole, %1350, %1353 : vector<7x16xf32>
    %1355 = arith.andi %1352, %1354 : vector<7x16xi1>
    %cst_499 = arith.constant 0.000000e+00 : f32
    %1356 = vector.broadcast %cst_499 : f32 to vector<7x16xf32>
    %1357 = arith.maximumf %1350, %1356 : vector<7x16xf32>
    %1358 = math.floor %1357 : vector<7x16xf32>
    %cst_500 = arith.constant 1.500000e+01 : f32
    %1359 = vector.broadcast %cst_500 : f32 to vector<7x16xf32>
    %1360 = arith.cmpf oge, %1358, %1359 : vector<7x16xf32>
    %cst_501 = arith.constant 1.500000e+01 : f32
    %1361 = vector.broadcast %cst_501 : f32 to vector<7x16xf32>
    %1362 = arith.select %1360, %1361, %1358 : vector<7x16xi1>, vector<7x16xf32>
    %cst_502 = arith.constant 1.000000e+00 : f32
    %1363 = vector.broadcast %cst_502 : f32 to vector<7x16xf32>
    %1364 = arith.addf %1362, %1363 : vector<7x16xf32>
    %1365 = arith.select %1360, %1362, %1364 : vector<7x16xi1>, vector<7x16xf32>
    %1366 = arith.select %1360, %1362, %1357 : vector<7x16xi1>, vector<7x16xf32>
    %1367 = arith.subf %1366, %1362 : vector<7x16xf32>
    %cst_503 = arith.constant 1.000000e+00 : f32
    %1368 = vector.broadcast %cst_503 : f32 to vector<7x16xf32>
    %1369 = arith.subf %1368, %1367 : vector<7x16xf32>
    %1370 = arith.cmpf oeq, %1343, %1362 : vector<7x16xf32>
    %1371 = arith.extui %1370 : vector<7x16xi1> to vector<7x16xi32>
    %1372 = arith.sitofp %1371 : vector<7x16xi32> to vector<7x16xf32>
    %1373 = arith.mulf %1369, %1372 : vector<7x16xf32>
    %1374 = arith.cmpf oeq, %1343, %1365 : vector<7x16xf32>
    %1375 = arith.extui %1374 : vector<7x16xi1> to vector<7x16xi32>
    %1376 = arith.sitofp %1375 : vector<7x16xi32> to vector<7x16xf32>
    %1377 = arith.mulf %1367, %1376 : vector<7x16xf32>
    %1378 = arith.addf %1373, %1377 : vector<7x16xf32>
    %cst_504 = arith.constant 0.000000e+00 : f32
    %1379 = vector.broadcast %cst_504 : f32 to vector<7x16xf32>
    %1380 = arith.select %1355, %1378, %1379 : vector<7x16xi1>, vector<7x16xf32>
    %1381 = arith.addf %1344, %1380 : vector<7x16xf32>
    %cst_505 = arith.constant 7.500000e-01 : f32
    %1382 = vector.broadcast %cst_505 : f32 to vector<7x16xf32>
    %1383 = arith.addf %1341, %1382 : vector<7x16xf32>
    %1384 = vector.broadcast %1258 : f32 to vector<7x16xf32>
    %1385 = arith.mulf %1383, %1384 : vector<7x16xf32>
    %1386 = vector.broadcast %1246 : f32 to vector<7x16xf32>
    %1387 = arith.addf %1386, %1385 : vector<7x16xf32>
    %cst_506 = arith.constant -1.000000e+00 : f32
    %1388 = vector.broadcast %cst_506 : f32 to vector<7x16xf32>
    %1389 = arith.cmpf oge, %1387, %1388 : vector<7x16xf32>
    %cst_507 = arith.constant 1.600000e+01 : f32
    %1390 = vector.broadcast %cst_507 : f32 to vector<7x16xf32>
    %1391 = arith.cmpf ole, %1387, %1390 : vector<7x16xf32>
    %1392 = arith.andi %1389, %1391 : vector<7x16xi1>
    %cst_508 = arith.constant 0.000000e+00 : f32
    %1393 = vector.broadcast %cst_508 : f32 to vector<7x16xf32>
    %1394 = arith.maximumf %1387, %1393 : vector<7x16xf32>
    %1395 = math.floor %1394 : vector<7x16xf32>
    %cst_509 = arith.constant 1.500000e+01 : f32
    %1396 = vector.broadcast %cst_509 : f32 to vector<7x16xf32>
    %1397 = arith.cmpf oge, %1395, %1396 : vector<7x16xf32>
    %cst_510 = arith.constant 1.500000e+01 : f32
    %1398 = vector.broadcast %cst_510 : f32 to vector<7x16xf32>
    %1399 = arith.select %1397, %1398, %1395 : vector<7x16xi1>, vector<7x16xf32>
    %cst_511 = arith.constant 1.000000e+00 : f32
    %1400 = vector.broadcast %cst_511 : f32 to vector<7x16xf32>
    %1401 = arith.addf %1399, %1400 : vector<7x16xf32>
    %1402 = arith.select %1397, %1399, %1401 : vector<7x16xi1>, vector<7x16xf32>
    %1403 = arith.select %1397, %1399, %1394 : vector<7x16xi1>, vector<7x16xf32>
    %1404 = arith.subf %1403, %1399 : vector<7x16xf32>
    %cst_512 = arith.constant 1.000000e+00 : f32
    %1405 = vector.broadcast %cst_512 : f32 to vector<7x16xf32>
    %1406 = arith.subf %1405, %1404 : vector<7x16xf32>
    %1407 = arith.cmpf oeq, %1343, %1399 : vector<7x16xf32>
    %1408 = arith.extui %1407 : vector<7x16xi1> to vector<7x16xi32>
    %1409 = arith.sitofp %1408 : vector<7x16xi32> to vector<7x16xf32>
    %1410 = arith.mulf %1406, %1409 : vector<7x16xf32>
    %1411 = arith.cmpf oeq, %1343, %1402 : vector<7x16xf32>
    %1412 = arith.extui %1411 : vector<7x16xi1> to vector<7x16xi32>
    %1413 = arith.sitofp %1412 : vector<7x16xi32> to vector<7x16xf32>
    %1414 = arith.mulf %1404, %1413 : vector<7x16xf32>
    %1415 = arith.addf %1410, %1414 : vector<7x16xf32>
    %cst_513 = arith.constant 0.000000e+00 : f32
    %1416 = vector.broadcast %cst_513 : f32 to vector<7x16xf32>
    %1417 = arith.select %1392, %1415, %1416 : vector<7x16xi1>, vector<7x16xf32>
    %1418 = arith.addf %1381, %1417 : vector<7x16xf32>
    %cst_514 = arith.constant 2.000000e+00 : f32
    %1419 = vector.broadcast %cst_514 : f32 to vector<7x16xf32>
    %1420 = arith.divf %1418, %1419 : vector<7x16xf32>
    %cst_515 = arith.constant dense<0.000000e+00> : vector<7x64xf32>
    %1421 = tpu.matmul %1339, %1236, %cst_515 {dimension_numbers = #tpu.dot_dimension_numbers<[1], [0], [0], [1], [0, 0, 1, 1], [], []>} : vector<7x16xf32>, vector<16x64xf32>, vector<7x64xf32> -> vector<7x64xf32>
    %c0_516 = arith.constant 0 : index
    %c0_517 = arith.constant 0 : index
    %1422 = vector.load %arg8[%c0_516, %c0_517] : memref<7x64xf32, #tpu.memory_space<vmem>>, vector<7x64xf32>
    tpu.vector_store %arg8[%c0_516, %c0_517], %1421 {strides = array<i32>} : memref<7x64xf32, #tpu.memory_space<vmem>>, vector<7x64xf32>,
    %c0_518 = arith.constant 0 : index
    %c0_519 = arith.constant 0 : index
    %1423 = vector.load %arg8[%c0_518, %c0_519] : memref<7x64xf32, #tpu.memory_space<vmem>>, vector<7x16xf32>
    %c0_520 = arith.constant 0 : index
    %c0_521 = arith.constant 0 : index
    %1424 = vector.load %arg9[%c0_520, %c0_521] : memref<28x16xf32, #tpu.memory_space<vmem>>, vector<7x16xf32>
    tpu.vector_store %arg9[%c0_520, %c0_521], %1423 {strides = array<i32>} : memref<28x16xf32, #tpu.memory_space<vmem>>, vector<7x16xf32>,
    %c0_522 = arith.constant 0 : index
    %c16_523 = arith.constant 16 : index
    %1425 = vector.load %arg8[%c0_522, %c16_523] : memref<7x64xf32, #tpu.memory_space<vmem>>, vector<7x16xf32>
    %c7_524 = arith.constant 7 : index
    %c0_525 = arith.constant 0 : index
    %1426 = vector.load %arg9[%c7_524, %c0_525] : memref<28x16xf32, #tpu.memory_space<vmem>>, vector<7x16xf32>
    tpu.vector_store %arg9[%c7_524, %c0_525], %1425 {strides = array<i32>} : memref<28x16xf32, #tpu.memory_space<vmem>>, vector<7x16xf32>,
    %c0_526 = arith.constant 0 : index
    %c32_527 = arith.constant 32 : index
    %1427 = vector.load %arg8[%c0_526, %c32_527] : memref<7x64xf32, #tpu.memory_space<vmem>>, vector<7x16xf32>
    %c14_528 = arith.constant 14 : index
    %c0_529 = arith.constant 0 : index
    %1428 = vector.load %arg9[%c14_528, %c0_529] : memref<28x16xf32, #tpu.memory_space<vmem>>, vector<7x16xf32>
    tpu.vector_store %arg9[%c14_528, %c0_529], %1427 {strides = array<i32>} : memref<28x16xf32, #tpu.memory_space<vmem>>, vector<7x16xf32>,
    %c0_530 = arith.constant 0 : index
    %c48_531 = arith.constant 48 : index
    %1429 = vector.load %arg8[%c0_530, %c48_531] : memref<7x64xf32, #tpu.memory_space<vmem>>, vector<7x16xf32>
    %c21_532 = arith.constant 21 : index
    %c0_533 = arith.constant 0 : index
    %1430 = vector.load %arg9[%c21_532, %c0_533] : memref<28x16xf32, #tpu.memory_space<vmem>>, vector<7x16xf32>
    tpu.vector_store %arg9[%c21_532, %c0_533], %1429 {strides = array<i32>} : memref<28x16xf32, #tpu.memory_space<vmem>>, vector<7x16xf32>,
    %c0_534 = arith.constant 0 : index
    %c0_535 = arith.constant 0 : index
    %1431 = vector.load %arg9[%c0_534, %c0_535] : memref<28x16xf32, #tpu.memory_space<vmem>>, vector<28x16xf32>
    %cst_536 = arith.constant dense<0.000000e+00> : vector<7x28xf32>
    %1432 = tpu.matmul %1420, %1431, %cst_536 {dimension_numbers = #tpu.dot_dimension_numbers<[1], [1], [0], [0], [0, 0, 1, 0], [], []>} : vector<7x16xf32>, vector<28x16xf32>, vector<7x28xf32> -> vector<7x28xf32>
    %c6 = arith.constant 6 : index
    %c0_537 = arith.constant 0 : index
    %c0_538 = arith.constant 0 : index
    %1433 = vector.load %arg7[%c6, %c0_537, %c0_538] : memref<8x7x28xf32, #tpu.memory_space<vmem>>, vector<1x7x28xf32>
    %1434 = vector.shape_cast %1433 : vector<1x7x28xf32> to vector<7x28xf32>
    %1435 = vector.shape_cast %1432 : vector<7x28xf32> to vector<1x7x28xf32>
    tpu.vector_store %arg7[%c6, %c0_537, %c0_538], %1435 {strides = array<i32>} : memref<8x7x28xf32, #tpu.memory_space<vmem>>, vector<1x7x28xf32>,
    %c7_i32 = arith.constant 7 : i32
    %1436 = arith.addi %0, %c7_i32 : i32
    %1437 = arith.index_cast %1436 : i32 to index
    %1438 = memref.load %arg1[%1437] : memref<8xi32, #tpu.memory_space<smem>>
    %1439 = arith.index_cast %1438 : i32 to index
    %c0_539 = arith.constant 0 : index
    %c0_540 = arith.constant 0 : index
    %1440 = vector.load %arg6[%1439, %c0_539, %c0_540] : memref<2x16x64xf32, #tpu.memory_space<vmem>>, vector<1x16x64xf32>
    %1441 = vector.shape_cast %1440 : vector<1x16x64xf32> to vector<16x64xf32>
    %1442 = arith.index_cast %1436 : i32 to index
    %1443 = memref.load %arg2[%1442] : memref<8xf32, #tpu.memory_space<smem>>
    %1444 = arith.index_cast %1436 : i32 to index
    %1445 = memref.load %arg3[%1444] : memref<8xf32, #tpu.memory_space<smem>>
    %1446 = arith.index_cast %1436 : i32 to index
    %1447 = memref.load %arg4[%1446] : memref<8xf32, #tpu.memory_space<smem>>
    %1448 = arith.index_cast %1436 : i32 to index
    %1449 = memref.load %arg5[%1448] : memref<8xf32, #tpu.memory_space<smem>>
    %cst_541 = arith.constant 5.000000e-01 : f32
    %1450 = arith.mulf %1443, %cst_541 : f32
    %cst_542 = arith.constant 0.000000e+00 : f32
    %1451 = arith.subf %1450, %cst_542 : f32
    %cst_543 = arith.constant 5.000000e-01 : f32
    %1452 = arith.mulf %1445, %cst_543 : f32
    %cst_544 = arith.constant 0.000000e+00 : f32
    %1453 = arith.subf %1452, %cst_544 : f32
    %cst_545 = arith.constant 5.000000e-01 : f32
    %1454 = arith.mulf %1447, %cst_545 : f32
    %cst_546 = arith.constant 0.000000e+00 : f32
    %1455 = arith.subf %1454, %cst_546 : f32
    %cst_547 = arith.constant 5.000000e-01 : f32
    %1456 = arith.mulf %1449, %cst_547 : f32
    %cst_548 = arith.constant 0.000000e+00 : f32
    %1457 = arith.subf %1456, %cst_548 : f32
    %1458 = arith.subf %1455, %1451 : f32
    %1459 = arith.subf %1457, %1453 : f32
    %cst_549 = arith.constant 1.000000e+00 : f32
    %1460 = arith.maximumf %1458, %cst_549 : f32
    %cst_550 = arith.constant 1.000000e+00 : f32
    %1461 = arith.maximumf %1459, %cst_550 : f32
    %cst_551 = arith.constant 7.000000e+00 : f32
    %1462 = arith.divf %1461, %cst_551 : f32
    %cst_552 = arith.constant 7.000000e+00 : f32
    %1463 = arith.divf %1460, %cst_552 : f32
    %1464 = tpu.iota {dimensions = array<i32: 0>} : vector<7x16xi32>
    %1465 = arith.sitofp %1464 : vector<7x16xi32> to vector<7x16xf32>
    %1466 = tpu.iota {dimensions = array<i32: 1>} : vector<7x16xi32>
    %1467 = arith.sitofp %1466 : vector<7x16xi32> to vector<7x16xf32>
    %cst_553 = arith.constant 0.000000e+00 : f32
    %1468 = vector.broadcast %cst_553 : f32 to vector<7x16xf32>
    %cst_554 = arith.constant 2.500000e-01 : f32
    %1469 = vector.broadcast %cst_554 : f32 to vector<7x16xf32>
    %1470 = arith.addf %1465, %1469 : vector<7x16xf32>
    %1471 = vector.broadcast %1462 : f32 to vector<7x16xf32>
    %1472 = arith.mulf %1470, %1471 : vector<7x16xf32>
    %1473 = vector.broadcast %1453 : f32 to vector<7x16xf32>
    %1474 = arith.addf %1473, %1472 : vector<7x16xf32>
    %cst_555 = arith.constant -1.000000e+00 : f32
    %1475 = vector.broadcast %cst_555 : f32 to vector<7x16xf32>
    %1476 = arith.cmpf oge, %1474, %1475 : vector<7x16xf32>
    %cst_556 = arith.constant 1.600000e+01 : f32
    %1477 = vector.broadcast %cst_556 : f32 to vector<7x16xf32>
    %1478 = arith.cmpf ole, %1474, %1477 : vector<7x16xf32>
    %1479 = arith.andi %1476, %1478 : vector<7x16xi1>
    %cst_557 = arith.constant 0.000000e+00 : f32
    %1480 = vector.broadcast %cst_557 : f32 to vector<7x16xf32>
    %1481 = arith.maximumf %1474, %1480 : vector<7x16xf32>
    %1482 = math.floor %1481 : vector<7x16xf32>
    %cst_558 = arith.constant 1.500000e+01 : f32
    %1483 = vector.broadcast %cst_558 : f32 to vector<7x16xf32>
    %1484 = arith.cmpf oge, %1482, %1483 : vector<7x16xf32>
    %cst_559 = arith.constant 1.500000e+01 : f32
    %1485 = vector.broadcast %cst_559 : f32 to vector<7x16xf32>
    %1486 = arith.select %1484, %1485, %1482 : vector<7x16xi1>, vector<7x16xf32>
    %cst_560 = arith.constant 1.000000e+00 : f32
    %1487 = vector.broadcast %cst_560 : f32 to vector<7x16xf32>
    %1488 = arith.addf %1486, %1487 : vector<7x16xf32>
    %1489 = arith.select %1484, %1486, %1488 : vector<7x16xi1>, vector<7x16xf32>
    %1490 = arith.select %1484, %1486, %1481 : vector<7x16xi1>, vector<7x16xf32>
    %1491 = arith.subf %1490, %1486 : vector<7x16xf32>
    %cst_561 = arith.constant 1.000000e+00 : f32
    %1492 = vector.broadcast %cst_561 : f32 to vector<7x16xf32>
    %1493 = arith.subf %1492, %1491 : vector<7x16xf32>
    %1494 = arith.cmpf oeq, %1467, %1486 : vector<7x16xf32>
    %1495 = arith.extui %1494 : vector<7x16xi1> to vector<7x16xi32>
    %1496 = arith.sitofp %1495 : vector<7x16xi32> to vector<7x16xf32>
    %1497 = arith.mulf %1493, %1496 : vector<7x16xf32>
    %1498 = arith.cmpf oeq, %1467, %1489 : vector<7x16xf32>
    %1499 = arith.extui %1498 : vector<7x16xi1> to vector<7x16xi32>
    %1500 = arith.sitofp %1499 : vector<7x16xi32> to vector<7x16xf32>
    %1501 = arith.mulf %1491, %1500 : vector<7x16xf32>
    %1502 = arith.addf %1497, %1501 : vector<7x16xf32>
    %cst_562 = arith.constant 0.000000e+00 : f32
    %1503 = vector.broadcast %cst_562 : f32 to vector<7x16xf32>
    %1504 = arith.select %1479, %1502, %1503 : vector<7x16xi1>, vector<7x16xf32>
    %1505 = arith.addf %1468, %1504 : vector<7x16xf32>
    %cst_563 = arith.constant 7.500000e-01 : f32
    %1506 = vector.broadcast %cst_563 : f32 to vector<7x16xf32>
    %1507 = arith.addf %1465, %1506 : vector<7x16xf32>
    %1508 = vector.broadcast %1462 : f32 to vector<7x16xf32>
    %1509 = arith.mulf %1507, %1508 : vector<7x16xf32>
    %1510 = vector.broadcast %1453 : f32 to vector<7x16xf32>
    %1511 = arith.addf %1510, %1509 : vector<7x16xf32>
    %cst_564 = arith.constant -1.000000e+00 : f32
    %1512 = vector.broadcast %cst_564 : f32 to vector<7x16xf32>
    %1513 = arith.cmpf oge, %1511, %1512 : vector<7x16xf32>
    %cst_565 = arith.constant 1.600000e+01 : f32
    %1514 = vector.broadcast %cst_565 : f32 to vector<7x16xf32>
    %1515 = arith.cmpf ole, %1511, %1514 : vector<7x16xf32>
    %1516 = arith.andi %1513, %1515 : vector<7x16xi1>
    %cst_566 = arith.constant 0.000000e+00 : f32
    %1517 = vector.broadcast %cst_566 : f32 to vector<7x16xf32>
    %1518 = arith.maximumf %1511, %1517 : vector<7x16xf32>
    %1519 = math.floor %1518 : vector<7x16xf32>
    %cst_567 = arith.constant 1.500000e+01 : f32
    %1520 = vector.broadcast %cst_567 : f32 to vector<7x16xf32>
    %1521 = arith.cmpf oge, %1519, %1520 : vector<7x16xf32>
    %cst_568 = arith.constant 1.500000e+01 : f32
    %1522 = vector.broadcast %cst_568 : f32 to vector<7x16xf32>
    %1523 = arith.select %1521, %1522, %1519 : vector<7x16xi1>, vector<7x16xf32>
    %cst_569 = arith.constant 1.000000e+00 : f32
    %1524 = vector.broadcast %cst_569 : f32 to vector<7x16xf32>
    %1525 = arith.addf %1523, %1524 : vector<7x16xf32>
    %1526 = arith.select %1521, %1523, %1525 : vector<7x16xi1>, vector<7x16xf32>
    %1527 = arith.select %1521, %1523, %1518 : vector<7x16xi1>, vector<7x16xf32>
    %1528 = arith.subf %1527, %1523 : vector<7x16xf32>
    %cst_570 = arith.constant 1.000000e+00 : f32
    %1529 = vector.broadcast %cst_570 : f32 to vector<7x16xf32>
    %1530 = arith.subf %1529, %1528 : vector<7x16xf32>
    %1531 = arith.cmpf oeq, %1467, %1523 : vector<7x16xf32>
    %1532 = arith.extui %1531 : vector<7x16xi1> to vector<7x16xi32>
    %1533 = arith.sitofp %1532 : vector<7x16xi32> to vector<7x16xf32>
    %1534 = arith.mulf %1530, %1533 : vector<7x16xf32>
    %1535 = arith.cmpf oeq, %1467, %1526 : vector<7x16xf32>
    %1536 = arith.extui %1535 : vector<7x16xi1> to vector<7x16xi32>
    %1537 = arith.sitofp %1536 : vector<7x16xi32> to vector<7x16xf32>
    %1538 = arith.mulf %1528, %1537 : vector<7x16xf32>
    %1539 = arith.addf %1534, %1538 : vector<7x16xf32>
    %cst_571 = arith.constant 0.000000e+00 : f32
    %1540 = vector.broadcast %cst_571 : f32 to vector<7x16xf32>
    %1541 = arith.select %1516, %1539, %1540 : vector<7x16xi1>, vector<7x16xf32>
    %1542 = arith.addf %1505, %1541 : vector<7x16xf32>
    %cst_572 = arith.constant 2.000000e+00 : f32
    %1543 = vector.broadcast %cst_572 : f32 to vector<7x16xf32>
    %1544 = arith.divf %1542, %1543 : vector<7x16xf32>
    %1545 = tpu.iota {dimensions = array<i32: 0>} : vector<7x16xi32>
    %1546 = arith.sitofp %1545 : vector<7x16xi32> to vector<7x16xf32>
    %1547 = tpu.iota {dimensions = array<i32: 1>} : vector<7x16xi32>
    %1548 = arith.sitofp %1547 : vector<7x16xi32> to vector<7x16xf32>
    %cst_573 = arith.constant 0.000000e+00 : f32
    %1549 = vector.broadcast %cst_573 : f32 to vector<7x16xf32>
    %cst_574 = arith.constant 2.500000e-01 : f32
    %1550 = vector.broadcast %cst_574 : f32 to vector<7x16xf32>
    %1551 = arith.addf %1546, %1550 : vector<7x16xf32>
    %1552 = vector.broadcast %1463 : f32 to vector<7x16xf32>
    %1553 = arith.mulf %1551, %1552 : vector<7x16xf32>
    %1554 = vector.broadcast %1451 : f32 to vector<7x16xf32>
    %1555 = arith.addf %1554, %1553 : vector<7x16xf32>
    %cst_575 = arith.constant -1.000000e+00 : f32
    %1556 = vector.broadcast %cst_575 : f32 to vector<7x16xf32>
    %1557 = arith.cmpf oge, %1555, %1556 : vector<7x16xf32>
    %cst_576 = arith.constant 1.600000e+01 : f32
    %1558 = vector.broadcast %cst_576 : f32 to vector<7x16xf32>
    %1559 = arith.cmpf ole, %1555, %1558 : vector<7x16xf32>
    %1560 = arith.andi %1557, %1559 : vector<7x16xi1>
    %cst_577 = arith.constant 0.000000e+00 : f32
    %1561 = vector.broadcast %cst_577 : f32 to vector<7x16xf32>
    %1562 = arith.maximumf %1555, %1561 : vector<7x16xf32>
    %1563 = math.floor %1562 : vector<7x16xf32>
    %cst_578 = arith.constant 1.500000e+01 : f32
    %1564 = vector.broadcast %cst_578 : f32 to vector<7x16xf32>
    %1565 = arith.cmpf oge, %1563, %1564 : vector<7x16xf32>
    %cst_579 = arith.constant 1.500000e+01 : f32
    %1566 = vector.broadcast %cst_579 : f32 to vector<7x16xf32>
    %1567 = arith.select %1565, %1566, %1563 : vector<7x16xi1>, vector<7x16xf32>
    %cst_580 = arith.constant 1.000000e+00 : f32
    %1568 = vector.broadcast %cst_580 : f32 to vector<7x16xf32>
    %1569 = arith.addf %1567, %1568 : vector<7x16xf32>
    %1570 = arith.select %1565, %1567, %1569 : vector<7x16xi1>, vector<7x16xf32>
    %1571 = arith.select %1565, %1567, %1562 : vector<7x16xi1>, vector<7x16xf32>
    %1572 = arith.subf %1571, %1567 : vector<7x16xf32>
    %cst_581 = arith.constant 1.000000e+00 : f32
    %1573 = vector.broadcast %cst_581 : f32 to vector<7x16xf32>
    %1574 = arith.subf %1573, %1572 : vector<7x16xf32>
    %1575 = arith.cmpf oeq, %1548, %1567 : vector<7x16xf32>
    %1576 = arith.extui %1575 : vector<7x16xi1> to vector<7x16xi32>
    %1577 = arith.sitofp %1576 : vector<7x16xi32> to vector<7x16xf32>
    %1578 = arith.mulf %1574, %1577 : vector<7x16xf32>
    %1579 = arith.cmpf oeq, %1548, %1570 : vector<7x16xf32>
    %1580 = arith.extui %1579 : vector<7x16xi1> to vector<7x16xi32>
    %1581 = arith.sitofp %1580 : vector<7x16xi32> to vector<7x16xf32>
    %1582 = arith.mulf %1572, %1581 : vector<7x16xf32>
    %1583 = arith.addf %1578, %1582 : vector<7x16xf32>
    %cst_582 = arith.constant 0.000000e+00 : f32
    %1584 = vector.broadcast %cst_582 : f32 to vector<7x16xf32>
    %1585 = arith.select %1560, %1583, %1584 : vector<7x16xi1>, vector<7x16xf32>
    %1586 = arith.addf %1549, %1585 : vector<7x16xf32>
    %cst_583 = arith.constant 7.500000e-01 : f32
    %1587 = vector.broadcast %cst_583 : f32 to vector<7x16xf32>
    %1588 = arith.addf %1546, %1587 : vector<7x16xf32>
    %1589 = vector.broadcast %1463 : f32 to vector<7x16xf32>
    %1590 = arith.mulf %1588, %1589 : vector<7x16xf32>
    %1591 = vector.broadcast %1451 : f32 to vector<7x16xf32>
    %1592 = arith.addf %1591, %1590 : vector<7x16xf32>
    %cst_584 = arith.constant -1.000000e+00 : f32
    %1593 = vector.broadcast %cst_584 : f32 to vector<7x16xf32>
    %1594 = arith.cmpf oge, %1592, %1593 : vector<7x16xf32>
    %cst_585 = arith.constant 1.600000e+01 : f32
    %1595 = vector.broadcast %cst_585 : f32 to vector<7x16xf32>
    %1596 = arith.cmpf ole, %1592, %1595 : vector<7x16xf32>
    %1597 = arith.andi %1594, %1596 : vector<7x16xi1>
    %cst_586 = arith.constant 0.000000e+00 : f32
    %1598 = vector.broadcast %cst_586 : f32 to vector<7x16xf32>
    %1599 = arith.maximumf %1592, %1598 : vector<7x16xf32>
    %1600 = math.floor %1599 : vector<7x16xf32>
    %cst_587 = arith.constant 1.500000e+01 : f32
    %1601 = vector.broadcast %cst_587 : f32 to vector<7x16xf32>
    %1602 = arith.cmpf oge, %1600, %1601 : vector<7x16xf32>
    %cst_588 = arith.constant 1.500000e+01 : f32
    %1603 = vector.broadcast %cst_588 : f32 to vector<7x16xf32>
    %1604 = arith.select %1602, %1603, %1600 : vector<7x16xi1>, vector<7x16xf32>
    %cst_589 = arith.constant 1.000000e+00 : f32
    %1605 = vector.broadcast %cst_589 : f32 to vector<7x16xf32>
    %1606 = arith.addf %1604, %1605 : vector<7x16xf32>
    %1607 = arith.select %1602, %1604, %1606 : vector<7x16xi1>, vector<7x16xf32>
    %1608 = arith.select %1602, %1604, %1599 : vector<7x16xi1>, vector<7x16xf32>
    %1609 = arith.subf %1608, %1604 : vector<7x16xf32>
    %cst_590 = arith.constant 1.000000e+00 : f32
    %1610 = vector.broadcast %cst_590 : f32 to vector<7x16xf32>
    %1611 = arith.subf %1610, %1609 : vector<7x16xf32>
    %1612 = arith.cmpf oeq, %1548, %1604 : vector<7x16xf32>
    %1613 = arith.extui %1612 : vector<7x16xi1> to vector<7x16xi32>
    %1614 = arith.sitofp %1613 : vector<7x16xi32> to vector<7x16xf32>
    %1615 = arith.mulf %1611, %1614 : vector<7x16xf32>
    %1616 = arith.cmpf oeq, %1548, %1607 : vector<7x16xf32>
    %1617 = arith.extui %1616 : vector<7x16xi1> to vector<7x16xi32>
    %1618 = arith.sitofp %1617 : vector<7x16xi32> to vector<7x16xf32>
    %1619 = arith.mulf %1609, %1618 : vector<7x16xf32>
    %1620 = arith.addf %1615, %1619 : vector<7x16xf32>
    %cst_591 = arith.constant 0.000000e+00 : f32
    %1621 = vector.broadcast %cst_591 : f32 to vector<7x16xf32>
    %1622 = arith.select %1597, %1620, %1621 : vector<7x16xi1>, vector<7x16xf32>
    %1623 = arith.addf %1586, %1622 : vector<7x16xf32>
    %cst_592 = arith.constant 2.000000e+00 : f32
    %1624 = vector.broadcast %cst_592 : f32 to vector<7x16xf32>
    %1625 = arith.divf %1623, %1624 : vector<7x16xf32>
    %cst_593 = arith.constant dense<0.000000e+00> : vector<7x64xf32>
    %1626 = tpu.matmul %1544, %1441, %cst_593 {dimension_numbers = #tpu.dot_dimension_numbers<[1], [0], [0], [1], [0, 0, 1, 1], [], []>} : vector<7x16xf32>, vector<16x64xf32>, vector<7x64xf32> -> vector<7x64xf32>
    %c0_594 = arith.constant 0 : index
    %c0_595 = arith.constant 0 : index
    %1627 = vector.load %arg8[%c0_594, %c0_595] : memref<7x64xf32, #tpu.memory_space<vmem>>, vector<7x64xf32>
    tpu.vector_store %arg8[%c0_594, %c0_595], %1626 {strides = array<i32>} : memref<7x64xf32, #tpu.memory_space<vmem>>, vector<7x64xf32>,
    %c0_596 = arith.constant 0 : index
    %c0_597 = arith.constant 0 : index
    %1628 = vector.load %arg8[%c0_596, %c0_597] : memref<7x64xf32, #tpu.memory_space<vmem>>, vector<7x16xf32>
    %c0_598 = arith.constant 0 : index
    %c0_599 = arith.constant 0 : index
    %1629 = vector.load %arg9[%c0_598, %c0_599] : memref<28x16xf32, #tpu.memory_space<vmem>>, vector<7x16xf32>
    tpu.vector_store %arg9[%c0_598, %c0_599], %1628 {strides = array<i32>} : memref<28x16xf32, #tpu.memory_space<vmem>>, vector<7x16xf32>,
    %c0_600 = arith.constant 0 : index
    %c16_601 = arith.constant 16 : index
    %1630 = vector.load %arg8[%c0_600, %c16_601] : memref<7x64xf32, #tpu.memory_space<vmem>>, vector<7x16xf32>
    %c7_602 = arith.constant 7 : index
    %c0_603 = arith.constant 0 : index
    %1631 = vector.load %arg9[%c7_602, %c0_603] : memref<28x16xf32, #tpu.memory_space<vmem>>, vector<7x16xf32>
    tpu.vector_store %arg9[%c7_602, %c0_603], %1630 {strides = array<i32>} : memref<28x16xf32, #tpu.memory_space<vmem>>, vector<7x16xf32>,
    %c0_604 = arith.constant 0 : index
    %c32_605 = arith.constant 32 : index
    %1632 = vector.load %arg8[%c0_604, %c32_605] : memref<7x64xf32, #tpu.memory_space<vmem>>, vector<7x16xf32>
    %c14_606 = arith.constant 14 : index
    %c0_607 = arith.constant 0 : index
    %1633 = vector.load %arg9[%c14_606, %c0_607] : memref<28x16xf32, #tpu.memory_space<vmem>>, vector<7x16xf32>
    tpu.vector_store %arg9[%c14_606, %c0_607], %1632 {strides = array<i32>} : memref<28x16xf32, #tpu.memory_space<vmem>>, vector<7x16xf32>,
    %c0_608 = arith.constant 0 : index
    %c48_609 = arith.constant 48 : index
    %1634 = vector.load %arg8[%c0_608, %c48_609] : memref<7x64xf32, #tpu.memory_space<vmem>>, vector<7x16xf32>
    %c21_610 = arith.constant 21 : index
    %c0_611 = arith.constant 0 : index
    %1635 = vector.load %arg9[%c21_610, %c0_611] : memref<28x16xf32, #tpu.memory_space<vmem>>, vector<7x16xf32>
    tpu.vector_store %arg9[%c21_610, %c0_611], %1634 {strides = array<i32>} : memref<28x16xf32, #tpu.memory_space<vmem>>, vector<7x16xf32>,
    %c0_612 = arith.constant 0 : index
    %c0_613 = arith.constant 0 : index
    %1636 = vector.load %arg9[%c0_612, %c0_613] : memref<28x16xf32, #tpu.memory_space<vmem>>, vector<28x16xf32>
    %cst_614 = arith.constant dense<0.000000e+00> : vector<7x28xf32>
    %1637 = tpu.matmul %1625, %1636, %cst_614 {dimension_numbers = #tpu.dot_dimension_numbers<[1], [1], [0], [0], [0, 0, 1, 0], [], []>} : vector<7x16xf32>, vector<28x16xf32>, vector<7x28xf32> -> vector<7x28xf32>
    %c7_615 = arith.constant 7 : index
    %c0_616 = arith.constant 0 : index
    %c0_617 = arith.constant 0 : index
    %1638 = vector.load %arg7[%c7_615, %c0_616, %c0_617] : memref<8x7x28xf32, #tpu.memory_space<vmem>>, vector<1x7x28xf32>
    %1639 = vector.shape_cast %1638 : vector<1x7x28xf32> to vector<7x28xf32>
    %1640 = vector.shape_cast %1637 : vector<7x28xf32> to vector<1x7x28xf32>
    tpu.vector_store %arg7[%c7_615, %c0_616, %c0_617], %1640 {strides = array<i32>} : memref<8x7x28xf32, #tpu.memory_space<vmem>>, vector<1x7x28xf32>,
    return
  }
  func.func @transform_0(%arg0: i32) -> i32 {
    %c0_i32 = arith.constant 0 : i32
    %c0_i32_0 = arith.constant 0 : i32
    return %c0_i32 : i32
  }
  func.func @transform_1(%arg0: i32) -> i32 {
    %c0_i32 = arith.constant 0 : i32
    %c0_i32_0 = arith.constant 0 : i32
    return %c0_i32 : i32
  }
  func.func @transform_2(%arg0: i32) -> i32 {
    %c0_i32 = arith.constant 0 : i32
    %c0_i32_0 = arith.constant 0 : i32
    return %c0_i32 : i32
  }
  func.func @transform_3(%arg0: i32) -> i32 {
    %c0_i32 = arith.constant 0 : i32
    %c0_i32_0 = arith.constant 0 : i32
    return %c0_i32 : i32
  }
  func.func @transform_4(%arg0: i32) -> i32 {
    %c0_i32 = arith.constant 0 : i32
    %c0_i32_0 = arith.constant 0 : i32
    return %c0_i32 : i32
  }
  func.func @transform_5(%arg0: i32) -> (i32, i32, i32) {
    %c0_i32 = arith.constant 0 : i32
    %c0_i32_0 = arith.constant 0 : i32
    %c0_i32_1 = arith.constant 0 : i32
    %c0_i32_2 = arith.constant 0 : i32
    return %c0_i32, %c0_i32_0, %c0_i32_1 : i32, i32, i32
  }
  func.func @transform_6(%arg0: i32) -> (i32, i32, i32) {
    %c0_i32 = arith.constant 0 : i32
    %c0_i32_0 = arith.constant 0 : i32
    %c0_i32_1 = arith.constant 0 : i32
    return %arg0, %c0_i32, %c0_i32_0 : i32, i32, i32
  }
}

</mosaic_0001>

<llo_original>
// kernel: tpu_custom_call.1
$region0: #{tpu_custom_call.1}
  #allocation0 [shape = 'u32[]', space=smem, size = 0x4, offset = 0x4, fixed_abs, tag = 'smem constant byte address 0x4 - core index']
  #allocation1 [shape = 'u32[144,128]{1,0:T(1,128)}', space=vmem, size = 0x12000, scoped, tag = 'internal scratch']
  #allocation2 [shape = 'f32[7,64]{1,0:T(8,128)}', space=vmem, size = 0x1000, scoped, tag = 'scratch operand']
  #allocation3 [shape = 'f32[28,16]{1,0:T(8,128)}', space=vmem, size = 0x4000, scoped, tag = 'scratch operand']
  %s0 = inlined_call_operand.hbm [shape: s32[8], index: 0, kind: input, shape index: {}]
  %s1 = inlined_call_operand.vmem [shape: f32[8], index: 1, kind: input, shape index: {}]
  %s2 = inlined_call_operand.vmem [shape: f32[8], index: 2, kind: input, shape index: {}]
  %s3 = inlined_call_operand.vmem [shape: f32[8], index: 3, kind: input, shape index: {}]
  %s4 = inlined_call_operand.vmem [shape: f32[8], index: 4, kind: input, shape index: {}]
  %s5 = inlined_call_operand.hbm [shape: f32[2,16,64], index: 5, kind: input, shape index: {}]
  %s6 = inlined_call_operand.vmem [shape: f32[8,7,28], index: 6, kind: output, shape index: {}]
  %s7 = sld [smem:[#allocation0]]
  $region58: #{tpu_custom_call.1} parent=0
    _
  %s9 = ssub.s32 1, %s7
  %s10 = scalar_select 0, %s9, %s7
  $region1: #{tpu_custom_call.1} parent=0
    #allocation4 [shape = 'u8[512]{0}', space=smem, size = 0x200, scoped, tag = 'input window, operand 0, single buffered']
    #allocation5 [shape = 's32[1]{0}', space=sflag, size = 0x4, scoped, tag = 'scoped memory for tpu_custom_call.1']
    #allocation6 [shape = 's32[1]{0}', space=sflag, size = 0x4, scoped, tag = 'scoped memory for tpu_custom_call.1']
    #allocation7 [shape = 's32[1]{0}', space=sflag, size = 0x4, scoped, tag = 'scoped memory for tpu_custom_call.1']
    #allocation8 [shape = 'u8[512]{0}', space=smem, size = 0x200, scoped, tag = 'input window, operand 1, single buffered']
    #allocation9 [shape = 'u8[512]{0}', space=smem, size = 0x200, scoped, tag = 'input window, operand 2, single buffered']
    #allocation10 [shape = 's32[1]{0}', space=sflag, size = 0x4, scoped, tag = 'scoped memory for tpu_custom_call.1']
    #allocation11 [shape = 'u8[512]{0}', space=smem, size = 0x200, scoped, tag = 'input window, operand 3, single buffered']
    #allocation12 [shape = 'u8[512]{0}', space=smem, size = 0x200, scoped, tag = 'input window, operand 4, single buffered']
    #allocation13 [shape = 's32[1]{0}', space=sflag, size = 0x4, scoped, tag = 'scoped memory for tpu_custom_call.1']
    #allocation14 [shape = 'u8[16384]{0}', space=vmem, size = 0x4000, scoped, tag = 'input window, operand 5, single buffered']
    %11 = vsyncpa [#allocation6], 0
    %12 = vsyncpa [#allocation7], 0
    %13 = vsyncpa [#allocation10], 0
    %14 = vsyncpa [#allocation13], 0
    %15 = vsyncpa [#allocation5], 0
    // Predicated region
    $region2: #{tpu_custom_call.1} parent=1 // pred_check
      _
    $region3: #{tpu_custom_call.1} parent=1 // pred_check_branch
      %17 = sbr.rel (0) target = $region5
    $region4: #{tpu_custom_call.1} parent=1 // pred_region
      %s19 = ssub.s32 16, 16
      %20 = vsyncadd [#allocation6], %s19
      %23 = dma.hbm_to_smem %s0, 16, [#allocation4], [#allocation6]
    $region5: #{tpu_custom_call.1} parent=1 // pred_fallthru
      _
    // Predicated region
    $region6: #{tpu_custom_call.1} parent=1 // pred_check
      _
    $region7: #{tpu_custom_call.1} parent=1 // pred_check_branch
      %25 = sbr.rel (0) target = $region9
    $region8: #{tpu_custom_call.1} parent=1 // pred_region
      %s27 = ssub.s32 16, 16
      %28 = vsyncadd [#allocation7], %s27
      %s30 = sshll.u32 %s1, 4
      %s31 = int_to_ptr.vmem [resolvable:$true] %s30
      %33 = dma.vmem_to_smem %s31, 16, [#allocation8], [#allocation7]
    $region9: #{tpu_custom_call.1} parent=1 // pred_fallthru
      _
    // Predicated region
    $region10: #{tpu_custom_call.1} parent=1 // pred_check
      _
    $region11: #{tpu_custom_call.1} parent=1 // pred_check_branch
      %35 = sbr.rel (0) target = $region13
    $region12: #{tpu_custom_call.1} parent=1 // pred_region
      %s37 = ssub.s32 16, 16
      %38 = vsyncadd [#allocation10], %s37
      %s40 = sshll.u32 %s2, 4
      %s41 = int_to_ptr.vmem [resolvable:$true] %s40
      %43 = dma.vmem_to_smem %s41, 16, [#allocation9], [#allocation10]
    $region13: #{tpu_custom_call.1} parent=1 // pred_fallthru
      _
    // Predicated region
    $region14: #{tpu_custom_call.1} parent=1 // pred_check
      _
    $region15: #{tpu_custom_call.1} parent=1 // pred_check_branch
      %45 = sbr.rel (0) target = $region17
    $region16: #{tpu_custom_call.1} parent=1 // pred_region
      %s47 = ssub.s32 16, 16
      %48 = vsyncadd [#allocation10], %s47
      %s50 = sshll.u32 %s3, 4
      %s51 = int_to_ptr.vmem [resolvable:$true] %s50
      %53 = dma.vmem_to_smem %s51, 16, [#allocation11], [#allocation10]
    $region17: #{tpu_custom_call.1} parent=1 // pred_fallthru
      _
    // Predicated region
    $region18: #{tpu_custom_call.1} parent=1 // pred_check
      _
    $region19: #{tpu_custom_call.1} parent=1 // pred_check_branch
      %55 = sbr.rel (0) target = $region21
    $region20: #{tpu_custom_call.1} parent=1 // pred_region
      %s57 = ssub.s32 16, 16
      %58 = vsyncadd [#allocation13], %s57
      %s60 = sshll.u32 %s4, 4
      %s61 = int_to_ptr.vmem [resolvable:$true] %s60
      %63 = dma.vmem_to_smem %s61, 16, [#allocation12], [#allocation13]
    $region21: #{tpu_custom_call.1} parent=1 // pred_fallthru
      _
    // Predicated region
    $region22: #{tpu_custom_call.1} parent=1 // pred_check
      _
    $region23: #{tpu_custom_call.1} parent=1 // pred_check_branch
      %65 = sbr.rel (0) target = $region25
    $region24: #{tpu_custom_call.1} parent=1 // pred_region
      %s67 = ssub.s32 512, 512
      %68 = vsyncadd [#allocation5], %s67
      %s69 = sshll.u32 [#allocation14], 4
      %s70 = int_to_ptr.vmem [resolvable:$true] %s69
      %75 = dma.hbm_to_vmem [thread:$0]  %s5, 512, %s70, [#allocation5], 128, 128, 8
    $region25: #{tpu_custom_call.1} parent=1 // pred_fallthru
      _
    // Predicated region
    $region26: #{tpu_custom_call.1} parent=1 // pred_check
      _
    $region27: #{tpu_custom_call.1} parent=1 // pred_check_branch
      %77 = sbr.rel (0) target = $region29
    $region28: #{tpu_custom_call.1} parent=1 // pred_region
      %78 = dma.done [#allocation6], 16
    $region29: #{tpu_custom_call.1} parent=1 // pred_fallthru
      _
    // Predicated region
    $region30: #{tpu_custom_call.1} parent=1 // pred_check
      _
    $region31: #{tpu_custom_call.1} parent=1 // pred_check_branch
      %80 = sbr.rel (0) target = $region33
    $region32: #{tpu_custom_call.1} parent=1 // pred_region
      %81 = dma.done [#allocation7], 16
    $region33: #{tpu_custom_call.1} parent=1 // pred_fallthru
      _
    // Predicated region
    $region34: #{tpu_custom_call.1} parent=1 // pred_check
      _
    $region35: #{tpu_custom_call.1} parent=1 // pred_check_branch
      %83 = sbr.rel (0) target = $region37
    $region36: #{tpu_custom_call.1} parent=1 // pred_region
      %84 = dma.done [#allocation10], 16
    $region37: #{tpu_custom_call.1} parent=1 // pred_fallthru
      _
    // Predicated region
    $region38: #{tpu_custom_call.1} parent=1 // pred_check
      _
    $region39: #{tpu_custom_call.1} parent=1 // pred_check_branch
      %86 = sbr.rel (0) target = $region41
    $region40: #{tpu_custom_call.1} parent=1 // pred_region
      %87 = dma.done [#allocation10], 16
    $region41: #{tpu_custom_call.1} parent=1 // pred_fallthru
      _
    // Predicated region
    $region42: #{tpu_custom_call.1} parent=1 // pred_check
      _
    $region43: #{tpu_custom_call.1} parent=1 // pred_check_branch
      %89 = sbr.rel (0) target = $region45
    $region44: #{tpu_custom_call.1} parent=1 // pred_region
      %90 = dma.done [#allocation13], 16
    $region45: #{tpu_custom_call.1} parent=1 // pred_fallthru
      _
    // Predicated region
    $region46: #{tpu_custom_call.1} parent=1 // pred_check
      _
    $region47: #{tpu_custom_call.1} parent=1 // pred_check_branch
      %92 = sbr.rel (0) target = $region49
    $region48: #{tpu_custom_call.1} parent=1 // pred_region
      %93 = dma.done [#allocation5], 512
    $region49: #{tpu_custom_call.1} parent=1 // pred_fallthru
      _
    %94 = sfence
    %s95 = smul.u32 0, 8
    %s96 = sld [smem:[#allocation4 + %s95]]
    %s97 = smul.u32 %s96, 16
    %s98 = scalar_lea.vmem [#allocation14], %s97
    %v99 = vld [vmem:[%s98] sm:$0xff]
    %v100 = vld [vmem:[%s98 + $0x8] sm:$0xff]
    %s101 = sld [smem:[#allocation8 + %s95]]
    %s102 = sld [smem:[#allocation9 + %s95]]
    %s103 = sld [smem:[#allocation11 + %s95]]
    %s104 = sld [smem:[#allocation12 + %s95]]
    %s105 = smul.f32 %s101, 0.5
    %s106 = smul.f32 %s102, 0.5
    %s107 = smul.f32 %s103, 0.5
    %s108 = smul.f32 %s104, 0.5
    %s109 = ssub.f32 %s107, %s105
    %s110 = ssub.f32 %s108, %s106
    %s111 = smax.f32 %s109, 1.0
    %s112 = smax.f32 %s110, 1.0
    %v113 = vrcp.pop 7.0
    %s114 = vtos %v113
    %s115 = smul.f32 %s112, %s114
    %v116 = vrcp.pop 7.0
    %s117 = vtos %v116
    %s118 = smul.f32 %s111, %s117
    %v119 = vlaneseq
    %v120 = vshrl.u32 %v119, 7
    %v121 = vcvt.s32.f32 %v120
    %v122 = vlaneseq
    %v123 = vand.u32 %v122, 127
    %v124 = vcvt.s32.f32 %v123
    %v125 = vadd.f32 %v121, 0.25
    %v126 = vstv %s115
    %v127 = vmul.f32 %v125, %v126
    %v128 = vstv %s106
    %v129 = vadd.f32 %v128, %v127
    %vm130 = vcmp.ge.f32.partialorder %v129, -1.0
    %vm131 = vcmp.le.f32.partialorder %v129, 16.0
    %vm132 = vmand %vm130, %vm131
    %v133 = vmax.f32 %v129, 0.0
    %v134 = vfloor.f32 %v133
    %vm135 = vcmp.ge.f32.partialorder %v134, 15.0
    %v136 = vsel %vm135, 15.0, %v134
    %v137 = vadd.f32 %v136, 1.0
    %v138 = vsel %vm135, 15.0, %v137
    %v139 = vsel %vm135, 15.0, %v133
    %v140 = vsub.f32 %v139, %v136
    %v141 = vsub.f32 1.0, %v140
    %vm142 = vcmp.eq.f32.partialorder %v124, %v136
    %v143 = vsel %vm142, 1, 0
    %v144 = vcvt.s32.f32 %v143
    %v145 = vmul.f32 %v141, %v144
    %vm146 = vcmp.eq.f32.partialorder %v124, %v138
    %v147 = vsel %vm146, 1, 0
    %v148 = vcvt.s32.f32 %v147
    %v149 = vmul.f32 %v140, %v148
    %v150 = vadd.f32 %v145, %v149
    %v151 = vsel %vm132, %v150, 0.0
    %v152 = vadd.f32 %v151, 0.0
    %v153 = vadd.f32 %v121, 0.75
    %v154 = vmul.f32 %v153, %v126
    %v155 = vadd.f32 %v128, %v154
    %vm156 = vcmp.ge.f32.partialorder %v155, -1.0
    %vm157 = vcmp.le.f32.partialorder %v155, 16.0
    %vm158 = vmand %vm156, %vm157
    %v159 = vmax.f32 %v155, 0.0
    %v160 = vfloor.f32 %v159
    %vm161 = vcmp.ge.f32.partialorder %v160, 15.0
    %v162 = vsel %vm161, 15.0, %v160
    %v163 = vadd.f32 %v162, 1.0
    %v164 = vsel %vm161, 15.0, %v163
    %v165 = vsel %vm161, 15.0, %v159
    %v166 = vsub.f32 %v165, %v162
    %v167 = vsub.f32 1.0, %v166
    %vm168 = vcmp.eq.f32.partialorder %v124, %v162
    %v169 = vsel %vm168, 1, 0
    %v170 = vcvt.s32.f32 %v169
    %v171 = vmul.f32 %v167, %v170
    %vm172 = vcmp.eq.f32.partialorder %v124, %v164
    %v173 = vsel %vm172, 1, 0
    %v174 = vcvt.s32.f32 %v173
    %v175 = vmul.f32 %v166, %v174
    %v176 = vadd.f32 %v171, %v175
    %v177 = vsel %vm158, %v176, 0.0
    %v178 = vadd.f32 %v152, %v177
    %v179 = vrcp.pop 2.0
    %v180 = vmul.f32 %v178, %v179
    %v181 = vstv %s118
    %v182 = vmul.f32 %v125, %v181
    %v183 = vstv %s105
    %v184 = vadd.f32 %v183, %v182
    %vm185 = vcmp.ge.f32.partialorder %v184, -1.0
    %vm186 = vcmp.le.f32.partialorder %v184, 16.0
    %vm187 = vmand %vm185, %vm186
    %v188 = vmax.f32 %v184, 0.0
    %v189 = vfloor.f32 %v188
    %vm190 = vcmp.ge.f32.partialorder %v189, 15.0
    %v191 = vsel %vm190, 15.0, %v189
    %v192 = vadd.f32 %v191, 1.0
    %v193 = vsel %vm190, 15.0, %v192
    %v194 = vsel %vm190, 15.0, %v188
    %v195 = vsub.f32 %v194, %v191
    %v196 = vsub.f32 1.0, %v195
    %vm197 = vcmp.eq.f32.partialorder %v124, %v191
    %v198 = vsel %vm197, 1, 0
    %v199 = vcvt.s32.f32 %v198
    %v200 = vmul.f32 %v196, %v199
    %vm201 = vcmp.eq.f32.partialorder %v124, %v193
    %v202 = vsel %vm201, 1, 0
    %v203 = vcvt.s32.f32 %v202
    %v204 = vmul.f32 %v195, %v203
    %v205 = vadd.f32 %v200, %v204
    %v206 = vsel %vm187, %v205, 0.0
    %v207 = vadd.f32 %v206, 0.0
    %v208 = vmul.f32 %v153, %v181
    %v209 = vadd.f32 %v183, %v208
    %vm210 = vcmp.ge.f32.partialorder %v209, -1.0
    %vm211 = vcmp.le.f32.partialorder %v209, 16.0
    %vm212 = vmand %vm210, %vm211
    %v213 = vmax.f32 %v209, 0.0
    %v214 = vfloor.f32 %v213
    %vm215 = vcmp.ge.f32.partialorder %v214, 15.0
    %v216 = vsel %vm215, 15.0, %v214
    %v217 = vadd.f32 %v216, 1.0
    %v218 = vsel %vm215, 15.0, %v217
    %v219 = vsel %vm215, 15.0, %v213
    %v220 = vsub.f32 %v219, %v216
    %v221 = vsub.f32 1.0, %v220
    %vm222 = vcmp.eq.f32.partialorder %v124, %v216
    %v223 = vsel %vm222, 1, 0
    %v224 = vcvt.s32.f32 %v223
    %v225 = vmul.f32 %v221, %v224
    %vm226 = vcmp.eq.f32.partialorder %v124, %v218
    %v227 = vsel %vm226, 1, 0
    %v228 = vcvt.s32.f32 %v227
    %v229 = vmul.f32 %v220, %v228
    %v230 = vadd.f32 %v225, %v229
    %v231 = vsel %vm212, %v230, 0.0
    %v232 = vadd.f32 %v207, %v231
    %v233 = vmul.f32 %v232, %v179
    %vm234 = vcmask 130048
    %v236 = vsel %vm234, %v180, 0
    %238 = vmatprep.subr.mxu0 0.0
    %239 = vmatpush1.msra.mxu0 %v99
    %240 = vmatprep.subr.mxu0 0.0
    %241 = vmatpush1.msra.mxu0 %v100
    %242 = vmatprep.subr.mxu0 0.0
    %243 = vmatpush1.msra.mxu0 0.0
    %244 = vmatprep.subr.mxu0 0.0
    %245 = vmatpush1.msra.mxu0 0.0
    %246 = vmatprep.subr.mxu0 0.0
    %247 = vmatpush1.msra.mxu0 0.0
    %248 = vmatprep.subr.mxu0 0.0
    %249 = vmatpush1.msra.mxu0 0.0
    %250 = vmatprep.subr.mxu0 0.0
    %251 = vmatpush1.msra.mxu0 0.0
    %252 = vmatprep.subr.mxu0 0.0
    %253 = vmatpush1.msra.mxu0 0.0
    %254 = vmatprep.subr.mxu0 0.0
    %255 = vmatpush1.msra.mxu0 0.0
    %256 = vmatprep.subr.mxu0 0.0
    %257 = vmatpush1.msra.mxu0 0.0
    %258 = vmatprep.subr.mxu0 0.0
    %259 = vmatpush1.msra.mxu0 0.0
    %260 = vmatprep.subr.mxu0 0.0
    %261 = vmatpush1.msra.mxu0 0.0
    %262 = vmatprep.subr.mxu0 0.0
    %263 = vmatpush1.msra.mxu0 0.0
    %264 = vmatprep.subr.mxu0 0.0
    %265 = vmatpush1.msra.mxu0 0.0
    %266 = vmatprep.subr.mxu0 0.0
    %267 = vmatpush1.msra.mxu0 0.0
    %268 = vmatprep.subr.mxu0 0.0
    %269 = vmatpush1.msra.mxu0 0.0
    %270 = vmatprep.subr.mxu0 0.0
    %271 = vmatpush1.msra.mxu0 0.0
    %272 = vmatprep.subr.mxu0 0.0
    %273 = vmatpush1.msra.mxu0 0.0
    %274 = vmatprep.subr.mxu0 0.0
    %275 = vmatpush1.msra.mxu0 0.0
    %276 = vmatprep.subr.mxu0 0.0
    %277 = vmatpush1.msra.mxu0 0.0
    %278 = vmatprep.subr.mxu0 0.0
    %279 = vmatpush1.msra.mxu0 0.0
    %280 = vmatprep.subr.mxu0 0.0
    %281 = vmatpush1.msra.mxu0 0.0
    %282 = vmatprep.subr.mxu0 0.0
    %283 = vmatpush1.msra.mxu0 0.0
    %284 = vmatprep.subr.mxu0 0.0
    %285 = vmatpush1.msra.mxu0 0.0
    %286 = vmatprep.subr.mxu0 0.0
    %287 = vmatpush1.msra.mxu0 0.0
    %288 = vmatprep.subr.mxu0 0.0
    %289 = vmatpush1.msra.mxu0 0.0
    %290 = vmatprep.subr.mxu0 0.0
    %291 = vmatpush1.msra.mxu0 0.0
    %292 = vmatprep.subr.mxu0 0.0
    %293 = vmatpush1.msra.mxu0 0.0
    %294 = vmatprep.subr.mxu0 0.0
    %295 = vmatpush1.msra.mxu0 0.0
    %296 = vmatprep.subr.mxu0 0.0
    %297 = vmatpush1.msra.mxu0 0.0
    %298 = vmatprep.subr.mxu0 0.0
    %299 = vmatpush1.msra.mxu0 0.0
    %300 = vmatprep.subr.mxu0 0.0
    %301 = vmatpush1.msra.mxu0 0.0
    %302 = vmatprep.mubr.f32.mxu0 0.0
    %303 = vmatmul.mubr.f32.gmra.mrb[0].mxu0 %v236
    %v304 = vpop.f32.mrb[0].mxu0
    %v305 = vadd.f32 0.0, %v304
    %v306 = vpop.f32.mrb[0].mxu0
    %307 = vdwg.mxu0
    %vm308 = vcmask 522240
    %309 = vst.msk [vmem:[#allocation2] sm:$0x7f] %vm308, %v305
    %v310 = vld [vmem:[#allocation2] sm:$0x7f]
    %vm311 = vcmask 129024
    %312 = vst.msk [vmem:[#allocation3] sm:$0x7f] %vm311, %v310
    %v313 = vld [vmem:[#allocation2] sm:$0x7f]
    %315 = vrot.lane.b32.xlu0 %v313, 112
    %v316 = vpop.permute.xlu0 %315
    %318 = vst.msk [vmem:[#allocation3 + $0x7] sm:$0x7f] %vm311, %v316
    %v319 = vld [vmem:[#allocation2] sm:$0x7f]
    %321 = vrot.lane.b32.xlu0 %v319, 96
    %v322 = vpop.permute.xlu0 %321
    %324 = vst.msk [vmem:[#allocation3 + $0xe] sm:$0x7f] %vm311, %v322
    %v325 = vld [vmem:[#allocation2] sm:$0x7f]
    %327 = vrot.lane.b32.xlu0 %v325, 80
    %v328 = vpop.permute.xlu0 %327
    %330 = vst.msk [vmem:[#allocation3 + $0x15] sm:$0x7f] %vm311, %v328
    %v331 = vld [vmem:[#allocation3] sm:$0xff]
    %v332 = vld [vmem:[#allocation3 + $0x8] sm:$0xff]
    %v333 = vld [vmem:[#allocation3 + $0x10] sm:$0xff]
    %v334 = vld [vmem:[#allocation3 + $0x18] sm:$0xf]
    %v336 = vsel %vm234, %v233, 0
    %v339 = vsel %vm234, %v331, 0
    %v342 = vsel %vm234, %v332, 0
    %v345 = vsel %vm234, %v333, 0
    %v348 = vsel %vm234, %v334, 0
    %350 = vmatprep.subr.mxu0 0.0
    %351 = vmatpush1.xpose.msra.mxu0 %v339
    %352 = vmatprep.subr.mxu0 0.0
    %353 = vmatpush1.xpose.msra.mxu0 %v342
    %354 = vmatprep.subr.mxu0 0.0
    %355 = vmatpush1.xpose.msra.mxu0 %v345
    %356 = vmatprep.subr.mxu0 0.0
    %357 = vmatpush1.xpose.msra.mxu0 %v348
    %358 = vmatprep.subr.mxu0 0.0
    %359 = vmatpush1.xpose.msra.mxu0 0.0
    %360 = vmatprep.subr.mxu0 0.0
    %361 = vmatpush1.xpose.msra.mxu0 0.0
    %362 = vmatprep.subr.mxu0 0.0
    %363 = vmatpush1.xpose.msra.mxu0 0.0
    %364 = vmatprep.subr.mxu0 0.0
    %365 = vmatpush1.xpose.msra.mxu0 0.0
    %366 = vmatprep.subr.mxu0 0.0
    %367 = vmatpush1.xpose.msra.mxu0 0.0
    %368 = vmatprep.subr.mxu0 0.0
    %369 = vmatpush1.xpose.msra.mxu0 0.0
    %370 = vmatprep.subr.mxu0 0.0
    %371 = vmatpush1.xpose.msra.mxu0 0.0
    %372 = vmatprep.subr.mxu0 0.0
    %373 = vmatpush1.xpose.msra.mxu0 0.0
    %374 = vmatprep.subr.mxu0 0.0
    %375 = vmatpush1.xpose.msra.mxu0 0.0
    %376 = vmatprep.subr.mxu0 0.0
    %377 = vmatpush1.xpose.msra.mxu0 0.0
    %378 = vmatprep.subr.mxu0 0.0
    %379 = vmatpush1.xpose.msra.mxu0 0.0
    %380 = vmatprep.subr.mxu0 0.0
    %381 = vmatpush1.xpose.msra.mxu0 0.0
    %382 = vmatprep.subr.mxu0 0.0
    %383 = vmatpush1.xpose.msra.mxu0 0.0
    %384 = vmatprep.subr.mxu0 0.0
    %385 = vmatpush1.xpose.msra.mxu0 0.0
    %386 = vmatprep.subr.mxu0 0.0
    %387 = vmatpush1.xpose.msra.mxu0 0.0
    %388 = vmatprep.subr.mxu0 0.0
    %389 = vmatpush1.xpose.msra.mxu0 0.0
    %390 = vmatprep.subr.mxu0 0.0
    %391 = vmatpush1.xpose.msra.mxu0 0.0
    %392 = vmatprep.subr.mxu0 0.0
    %393 = vmatpush1.xpose.msra.mxu0 0.0
    %394 = vmatprep.subr.mxu0 0.0
    %395 = vmatpush1.xpose.msra.mxu0 0.0
    %396 = vmatprep.subr.mxu0 0.0
    %397 = vmatpush1.xpose.msra.mxu0 0.0
    %398 = vmatprep.subr.mxu0 0.0
    %399 = vmatpush1.xpose.msra.mxu0 0.0
    %400 = vmatprep.subr.mxu0 0.0
    %401 = vmatpush1.xpose.msra.mxu0 0.0
    %402 = vmatprep.subr.mxu0 0.0
    %403 = vmatpush1.xpose.msra.mxu0 0.0
    %404 = vmatprep.subr.mxu0 0.0
    %405 = vmatpush1.xpose.msra.mxu0 0.0
    %406 = vmatprep.subr.mxu0 0.0
    %407 = vmatpush1.xpose.msra.mxu0 0.0
    %408 = vmatprep.subr.mxu0 0.0
    %409 = vmatpush1.xpose.msra.mxu0 0.0
    %410 = vmatprep.subr.mxu0 0.0
    %411 = vmatpush1.xpose.msra.mxu0 0.0
    %412 = vmatprep.subr.mxu0 0.0
    %413 = vmatpush1.xpose.msra.mxu0 0.0
    %414 = vmatprep.mubr.f32.mxu0 0.0
    %415 = vmatmul.mubr.f32.gmra.mrb[0].mxu0 %v336
    %v416 = vpop.f32.mrb[0].mxu0
    %v417 = vadd.f32 0.0, %v416
    %v418 = vpop.f32.mrb[0].mxu0
    %419 = vdwg.mxu0
    %vm420 = vcmask 227328
    %421 = vst.msk [vmem:[%s6] sm:$0x7f] %vm420, %v417
    %s422 = sadd.s32 %s95, 1
    %s423 = sld [smem:[#allocation4 + %s422]]
    %s424 = smul.u32 %s423, 16
    %s425 = scalar_lea.vmem [#allocation14], %s424
    %v426 = vld [vmem:[%s425] sm:$0xff]
    %v427 = vld [vmem:[%s425 + $0x8] sm:$0xff]
    %s428 = sld [smem:[#allocation8 + %s422]]
    %s429 = sld [smem:[#allocation9 + %s422]]
    %s430 = sld [smem:[#allocation11 + %s422]]
    %s431 = sld [smem:[#allocation12 + %s422]]
    %s432 = smul.f32 %s428, 0.5
    %s433 = smul.f32 %s429, 0.5
    %s434 = smul.f32 %s430, 0.5
    %s435 = smul.f32 %s431, 0.5
    %s436 = ssub.f32 %s434, %s432
    %s437 = ssub.f32 %s435, %s433
    %s438 = smax.f32 %s436, 1.0
    %s439 = smax.f32 %s437, 1.0
    %v440 = vrcp.pop 7.0
    %s441 = vtos %v440
    %s442 = smul.f32 %s439, %s441
    %v443 = vrcp.pop 7.0
    %s444 = vtos %v443
    %s445 = smul.f32 %s438, %s444
    %v446 = vstv %s442
    %v447 = vmul.f32 %v125, %v446
    %v448 = vstv %s433
    %v449 = vadd.f32 %v448, %v447
    %vm450 = vcmp.ge.f32.partialorder %v449, -1.0
    %vm451 = vcmp.le.f32.partialorder %v449, 16.0
    %vm452 = vmand %vm450, %vm451
    %v453 = vmax.f32 %v449, 0.0
    %v454 = vfloor.f32 %v453
    %vm455 = vcmp.ge.f32.partialorder %v454, 15.0
    %v456 = vsel %vm455, 15.0, %v454
    %v457 = vadd.f32 %v456, 1.0
    %v458 = vsel %vm455, 15.0, %v457
    %v459 = vsel %vm455, 15.0, %v453
    %v460 = vsub.f32 %v459, %v456
    %v461 = vsub.f32 1.0, %v460
    %vm462 = vcmp.eq.f32.partialorder %v124, %v456
    %v463 = vsel %vm462, 1, 0
    %v464 = vcvt.s32.f32 %v463
    %v465 = vmul.f32 %v461, %v464
    %vm466 = vcmp.eq.f32.partialorder %v124, %v458
    %v467 = vsel %vm466, 1, 0
    %v468 = vcvt.s32.f32 %v467
    %v469 = vmul.f32 %v460, %v468
    %v470 = vadd.f32 %v465, %v469
    %v471 = vsel %vm452, %v470, 0.0
    %v472 = vadd.f32 %v471, 0.0
    %v473 = vmul.f32 %v153, %v446
    %v474 = vadd.f32 %v448, %v473
    %vm475 = vcmp.ge.f32.partialorder %v474, -1.0
    %vm476 = vcmp.le.f32.partialorder %v474, 16.0
    %vm477 = vmand %vm475, %vm476
    %v478 = vmax.f32 %v474, 0.0
    %v479 = vfloor.f32 %v478
    %vm480 = vcmp.ge.f32.partialorder %v479, 15.0
    %v481 = vsel %vm480, 15.0, %v479
    %v482 = vadd.f32 %v481, 1.0
    %v483 = vsel %vm480, 15.0, %v482
    %v484 = vsel %vm480, 15.0, %v478
    %v485 = vsub.f32 %v484, %v481
    %v486 = vsub.f32 1.0, %v485
    %vm487 = vcmp.eq.f32.partialorder %v124, %v481
    %v488 = vsel %vm487, 1, 0
    %v489 = vcvt.s32.f32 %v488
    %v490 = vmul.f32 %v486, %v489
    %vm491 = vcmp.eq.f32.partialorder %v124, %v483
    %v492 = vsel %vm491, 1, 0
    %v493 = vcvt.s32.f32 %v492
    %v494 = vmul.f32 %v485, %v493
    %v495 = vadd.f32 %v490, %v494
    %v496 = vsel %vm477, %v495, 0.0
    %v497 = vadd.f32 %v472, %v496
    %v498 = vmul.f32 %v497, %v179
    %v499 = vstv %s445
    %v500 = vmul.f32 %v125, %v499
    %v501 = vstv %s432
    %v502 = vadd.f32 %v501, %v500
    %vm503 = vcmp.ge.f32.partialorder %v502, -1.0
    %vm504 = vcmp.le.f32.partialorder %v502, 16.0
    %vm505 = vmand %vm503, %vm504
    %v506 = vmax.f32 %v502, 0.0
    %v507 = vfloor.f32 %v506
    %vm508 = vcmp.ge.f32.partialorder %v507, 15.0
    %v509 = vsel %vm508, 15.0, %v507
    %v510 = vadd.f32 %v509, 1.0
    %v511 = vsel %vm508, 15.0, %v510
    %v512 = vsel %vm508, 15.0, %v506
    %v513 = vsub.f32 %v512, %v509
    %v514 = vsub.f32 1.0, %v513
    %vm515 = vcmp.eq.f32.partialorder %v124, %v509
    %v516 = vsel %vm515, 1, 0
    %v517 = vcvt.s32.f32 %v516
    %v518 = vmul.f32 %v514, %v517
    %vm519 = vcmp.eq.f32.partialorder %v124, %v511
    %v520 = vsel %vm519, 1, 0
    %v521 = vcvt.s32.f32 %v520
    %v522 = vmul.f32 %v513, %v521
    %v523 = vadd.f32 %v518, %v522
    %v524 = vsel %vm505, %v523, 0.0
    %v525 = vadd.f32 %v524, 0.0
    %v526 = vmul.f32 %v153, %v499
    %v527 = vadd.f32 %v501, %v526
    %vm528 = vcmp.ge.f32.partialorder %v527, -1.0
    %vm529 = vcmp.le.f32.partialorder %v527, 16.0
    %vm530 = vmand %vm528, %vm529
    %v531 = vmax.f32 %v527, 0.0
    %v532 = vfloor.f32 %v531
    %vm533 = vcmp.ge.f32.partialorder %v532, 15.0
    %v534 = vsel %vm533, 15.0, %v532
    %v535 = vadd.f32 %v534, 1.0
    %v536 = vsel %vm533, 15.0, %v535
    %v537 = vsel %vm533, 15.0, %v531
    %v538 = vsub.f32 %v537, %v534
    %v539 = vsub.f32 1.0, %v538
    %vm540 = vcmp.eq.f32.partialorder %v124, %v534
    %v541 = vsel %vm540, 1, 0
    %v542 = vcvt.s32.f32 %v541
    %v543 = vmul.f32 %v539, %v542
    %vm544 = vcmp.eq.f32.partialorder %v124, %v536
    %v545 = vsel %vm544, 1, 0
    %v546 = vcvt.s32.f32 %v545
    %v547 = vmul.f32 %v538, %v546
    %v548 = vadd.f32 %v543, %v547
    %v549 = vsel %vm530, %v548, 0.0
    %v550 = vadd.f32 %v525, %v549
    %v551 = vmul.f32 %v550, %v179
    %v553 = vsel %vm234, %v498, 0
    %555 = vmatprep.subr.mxu0 0.0
    %556 = vmatpush1.msra.mxu0 %v426
    %557 = vmatprep.subr.mxu0 0.0
    %558 = vmatpush1.msra.mxu0 %v427
    %559 = vmatprep.subr.mxu0 0.0
    %560 = vmatpush1.msra.mxu0 0.0
    %561 = vmatprep.subr.mxu0 0.0
    %562 = vmatpush1.msra.mxu0 0.0
    %563 = vmatprep.subr.mxu0 0.0
    %564 = vmatpush1.msra.mxu0 0.0
    %565 = vmatprep.subr.mxu0 0.0
    %566 = vmatpush1.msra.mxu0 0.0
    %567 = vmatprep.subr.mxu0 0.0
    %568 = vmatpush1.msra.mxu0 0.0
    %569 = vmatprep.subr.mxu0 0.0
    %570 = vmatpush1.msra.mxu0 0.0
    %571 = vmatprep.subr.mxu0 0.0
    %572 = vmatpush1.msra.mxu0 0.0
    %573 = vmatprep.subr.mxu0 0.0
    %574 = vmatpush1.msra.mxu0 0.0
    %575 = vmatprep.subr.mxu0 0.0
    %576 = vmatpush1.msra.mxu0 0.0
    %577 = vmatprep.subr.mxu0 0.0
    %578 = vmatpush1.msra.mxu0 0.0
    %579 = vmatprep.subr.mxu0 0.0
    %580 = vmatpush1.msra.mxu0 0.0
    %581 = vmatprep.subr.mxu0 0.0
    %582 = vmatpush1.msra.mxu0 0.0
    %583 = vmatprep.subr.mxu0 0.0
    %584 = vmatpush1.msra.mxu0 0.0
    %585 = vmatprep.subr.mxu0 0.0
    %586 = vmatpush1.msra.mxu0 0.0
    %587 = vmatprep.subr.mxu0 0.0
    %588 = vmatpush1.msra.mxu0 0.0
    %589 = vmatprep.subr.mxu0 0.0
    %590 = vmatpush1.msra.mxu0 0.0
    %591 = vmatprep.subr.mxu0 0.0
    %592 = vmatpush1.msra.mxu0 0.0
    %593 = vmatprep.subr.mxu0 0.0
    %594 = vmatpush1.msra.mxu0 0.0
    %595 = vmatprep.subr.mxu0 0.0
    %596 = vmatpush1.msra.mxu0 0.0
    %597 = vmatprep.subr.mxu0 0.0
    %598 = vmatpush1.msra.mxu0 0.0
    %599 = vmatprep.subr.mxu0 0.0
    %600 = vmatpush1.msra.mxu0 0.0
    %601 = vmatprep.subr.mxu0 0.0
    %602 = vmatpush1.msra.mxu0 0.0
    %603 = vmatprep.subr.mxu0 0.0
    %604 = vmatpush1.msra.mxu0 0.0
    %605 = vmatprep.subr.mxu0 0.0
    %606 = vmatpush1.msra.mxu0 0.0
    %607 = vmatprep.subr.mxu0 0.0
    %608 = vmatpush1.msra.mxu0 0.0
    %609 = vmatprep.subr.mxu0 0.0
    %610 = vmatpush1.msra.mxu0 0.0
    %611 = vmatprep.subr.mxu0 0.0
    %612 = vmatpush1.msra.mxu0 0.0
    %613 = vmatprep.subr.mxu0 0.0
    %614 = vmatpush1.msra.mxu0 0.0
    %615 = vmatprep.subr.mxu0 0.0
    %616 = vmatpush1.msra.mxu0 0.0
    %617 = vmatprep.subr.mxu0 0.0
    %618 = vmatpush1.msra.mxu0 0.0
    %619 = vmatprep.mubr.f32.mxu0 0.0
    %620 = vmatmul.mubr.f32.gmra.mrb[0].mxu0 %v553
    %v621 = vpop.f32.mrb[0].mxu0
    %v622 = vadd.f32 0.0, %v621
    %v623 = vpop.f32.mrb[0].mxu0
    %624 = vdwg.mxu0
    %625 = vst.msk [vmem:[#allocation2] sm:$0x7f] %vm308, %v622
    %v626 = vld [vmem:[#allocation2] sm:$0x7f]
    %627 = vst.msk [vmem:[#allocation3] sm:$0x7f] %vm311, %v626
    %v628 = vld [vmem:[#allocation2] sm:$0x7f]
    %630 = vrot.lane.b32.xlu0 %v628, 112
    %v631 = vpop.permute.xlu0 %630
    %633 = vst.msk [vmem:[#allocation3 + $0x7] sm:$0x7f] %vm311, %v631
    %v634 = vld [vmem:[#allocation2] sm:$0x7f]
    %636 = vrot.lane.b32.xlu0 %v634, 96
    %v637 = vpop.permute.xlu0 %636
    %639 = vst.msk [vmem:[#allocation3 + $0xe] sm:$0x7f] %vm311, %v637
    %v640 = vld [vmem:[#allocation2] sm:$0x7f]
    %642 = vrot.lane.b32.xlu0 %v640, 80
    %v643 = vpop.permute.xlu0 %642
    %645 = vst.msk [vmem:[#allocation3 + $0x15] sm:$0x7f] %vm311, %v643
    %v646 = vld [vmem:[#allocation3] sm:$0xff]
    %v647 = vld [vmem:[#allocation3 + $0x8] sm:$0xff]
    %v648 = vld [vmem:[#allocation3 + $0x10] sm:$0xff]
    %v649 = vld [vmem:[#allocation3 + $0x18] sm:$0xf]
    %v651 = vsel %vm234, %v551, 0
    %v654 = vsel %vm234, %v646, 0
    %v657 = vsel %vm234, %v647, 0
    %v660 = vsel %vm234, %v648, 0
    %v663 = vsel %vm234, %v649, 0
    %665 = vmatprep.subr.mxu0 0.0
    %666 = vmatpush1.xpose.msra.mxu0 %v654
    %667 = vmatprep.subr.mxu0 0.0
    %668 = vmatpush1.xpose.msra.mxu0 %v657
    %669 = vmatprep.subr.mxu0 0.0
    %670 = vmatpush1.xpose.msra.mxu0 %v660
    %671 = vmatprep.subr.mxu0 0.0
    %672 = vmatpush1.xpose.msra.mxu0 %v663
    %673 = vmatprep.subr.mxu0 0.0
    %674 = vmatpush1.xpose.msra.mxu0 0.0
    %675 = vmatprep.subr.mxu0 0.0
    %676 = vmatpush1.xpose.msra.mxu0 0.0
    %677 = vmatprep.subr.mxu0 0.0
    %678 = vmatpush1.xpose.msra.mxu0 0.0
    %679 = vmatprep.subr.mxu0 0.0
    %680 = vmatpush1.xpose.msra.mxu0 0.0
    %681 = vmatprep.subr.mxu0 0.0
    %682 = vmatpush1.xpose.msra.mxu0 0.0
    %683 = vmatprep.subr.mxu0 0.0
    %684 = vmatpush1.xpose.msra.mxu0 0.0
    %685 = vmatprep.subr.mxu0 0.0
    %686 = vmatpush1.xpose.msra.mxu0 0.0
    %687 = vmatprep.subr.mxu0 0.0
    %688 = vmatpush1.xpose.msra.mxu0 0.0
    %689 = vmatprep.subr.mxu0 0.0
    %690 = vmatpush1.xpose.msra.mxu0 0.0
    %691 = vmatprep.subr.mxu0 0.0
    %692 = vmatpush1.xpose.msra.mxu0 0.0
    %693 = vmatprep.subr.mxu0 0.0
    %694 = vmatpush1.xpose.msra.mxu0 0.0
    %695 = vmatprep.subr.mxu0 0.0
    %696 = vmatpush1.xpose.msra.mxu0 0.0
    %697 = vmatprep.subr.mxu0 0.0
    %698 = vmatpush1.xpose.msra.mxu0 0.0
    %699 = vmatprep.subr.mxu0 0.0
    %700 = vmatpush1.xpose.msra.mxu0 0.0
    %701 = vmatprep.subr.mxu0 0.0
    %702 = vmatpush1.xpose.msra.mxu0 0.0
    %703 = vmatprep.subr.mxu0 0.0
    %704 = vmatpush1.xpose.msra.mxu0 0.0
    %705 = vmatprep.subr.mxu0 0.0
    %706 = vmatpush1.xpose.msra.mxu0 0.0
    %707 = vmatprep.subr.mxu0 0.0
    %708 = vmatpush1.xpose.msra.mxu0 0.0
    %709 = vmatprep.subr.mxu0 0.0
    %710 = vmatpush1.xpose.msra.mxu0 0.0
    %711 = vmatprep.subr.mxu0 0.0
    %712 = vmatpush1.xpose.msra.mxu0 0.0
    %713 = vmatprep.subr.mxu0 0.0
    %714 = vmatpush1.xpose.msra.mxu0 0.0
    %715 = vmatprep.subr.mxu0 0.0
    %716 = vmatpush1.xpose.msra.mxu0 0.0
    %717 = vmatprep.subr.mxu0 0.0
    %718 = vmatpush1.xpose.msra.mxu0 0.0
    %719 = vmatprep.subr.mxu0 0.0
    %720 = vmatpush1.xpose.msra.mxu0 0.0
    %721 = vmatprep.subr.mxu0 0.0
    %722 = vmatpush1.xpose.msra.mxu0 0.0
    %723 = vmatprep.subr.mxu0 0.0
    %724 = vmatpush1.xpose.msra.mxu0 0.0
    %725 = vmatprep.subr.mxu0 0.0
    %726 = vmatpush1.xpose.msra.mxu0 0.0
    %727 = vmatprep.subr.mxu0 0.0
    %728 = vmatpush1.xpose.msra.mxu0 0.0
    %729 = vmatprep.mubr.f32.mxu0 0.0
    %730 = vmatmul.mubr.f32.gmra.mrb[0].mxu0 %v651
    %v731 = vpop.f32.mrb[0].mxu0
    %v732 = vadd.f32 0.0, %v731
    %v733 = vpop.f32.mrb[0].mxu0
    %734 = vdwg.mxu0
    %s735 = scalar_lea.vmem %s6, 8
    %736 = vst.msk [vmem:[%s735] sm:$0x7f] %vm420, %v732
    %s737 = sadd.s32 %s95, 2
    %s738 = sld [smem:[#allocation4 + %s737]]
    %s739 = smul.u32 %s738, 16
    %s740 = scalar_lea.vmem [#allocation14], %s739
    %v741 = vld [vmem:[%s740] sm:$0xff]
    %v742 = vld [vmem:[%s740 + $0x8] sm:$0xff]
    %s743 = sld [smem:[#allocation8 + %s737]]
    %s744 = sld [smem:[#allocation9 + %s737]]
    %s745 = sld [smem:[#allocation11 + %s737]]
    %s746 = sld [smem:[#allocation12 + %s737]]
    %s747 = smul.f32 %s743, 0.5
    %s748 = smul.f32 %s744, 0.5
    %s749 = smul.f32 %s745, 0.5
    %s750 = smul.f32 %s746, 0.5
    %s751 = ssub.f32 %s749, %s747
    %s752 = ssub.f32 %s750, %s748
    %s753 = smax.f32 %s751, 1.0
    %s754 = smax.f32 %s752, 1.0
    %v755 = vrcp.pop 7.0
    %s756 = vtos %v755
    %s757 = smul.f32 %s754, %s756
    %v758 = vrcp.pop 7.0
    %s759 = vtos %v758
    %s760 = smul.f32 %s753, %s759
    %v761 = vstv %s757
    %v762 = vmul.f32 %v125, %v761
    %v763 = vstv %s748
    %v764 = vadd.f32 %v763, %v762
    %vm765 = vcmp.ge.f32.partialorder %v764, -1.0
    %vm766 = vcmp.le.f32.partialorder %v764, 16.0
    %vm767 = vmand %vm765, %vm766
    %v768 = vmax.f32 %v764, 0.0
    %v769 = vfloor.f32 %v768
    %vm770 = vcmp.ge.f32.partialorder %v769, 15.0
    %v771 = vsel %vm770, 15.0, %v769
    %v772 = vadd.f32 %v771, 1.0
    %v773 = vsel %vm770, 15.0, %v772
    %v774 = vsel %vm770, 15.0, %v768
    %v775 = vsub.f32 %v774, %v771
    %v776 = vsub.f32 1.0, %v775
    %vm777 = vcmp.eq.f32.partialorder %v124, %v771
    %v778 = vsel %vm777, 1, 0
    %v779 = vcvt.s32.f32 %v778
    %v780 = vmul.f32 %v776, %v779
    %vm781 = vcmp.eq.f32.partialorder %v124, %v773
    %v782 = vsel %vm781, 1, 0
    %v783 = vcvt.s32.f32 %v782
    %v784 = vmul.f32 %v775, %v783
    %v785 = vadd.f32 %v780, %v784
    %v786 = vsel %vm767, %v785, 0.0
    %v787 = vadd.f32 %v786, 0.0
    %v788 = vmul.f32 %v153, %v761
    %v789 = vadd.f32 %v763, %v788
    %vm790 = vcmp.ge.f32.partialorder %v789, -1.0
    %vm791 = vcmp.le.f32.partialorder %v789, 16.0
    %vm792 = vmand %vm790, %vm791
    %v793 = vmax.f32 %v789, 0.0
    %v794 = vfloor.f32 %v793
    %vm795 = vcmp.ge.f32.partialorder %v794, 15.0
    %v796 = vsel %vm795, 15.0, %v794
    %v797 = vadd.f32 %v796, 1.0
    %v798 = vsel %vm795, 15.0, %v797
    %v799 = vsel %vm795, 15.0, %v793
    %v800 = vsub.f32 %v799, %v796
    %v801 = vsub.f32 1.0, %v800
    %vm802 = vcmp.eq.f32.partialorder %v124, %v796
    %v803 = vsel %vm802, 1, 0
    %v804 = vcvt.s32.f32 %v803
    %v805 = vmul.f32 %v801, %v804
    %vm806 = vcmp.eq.f32.partialorder %v124, %v798
    %v807 = vsel %vm806, 1, 0
    %v808 = vcvt.s32.f32 %v807
    %v809 = vmul.f32 %v800, %v808
    %v810 = vadd.f32 %v805, %v809
    %v811 = vsel %vm792, %v810, 0.0
    %v812 = vadd.f32 %v787, %v811
    %v813 = vmul.f32 %v812, %v179
    %v814 = vstv %s760
    %v815 = vmul.f32 %v125, %v814
    %v816 = vstv %s747
    %v817 = vadd.f32 %v816, %v815
    %vm818 = vcmp.ge.f32.partialorder %v817, -1.0
    %vm819 = vcmp.le.f32.partialorder %v817, 16.0
    %vm820 = vmand %vm818, %vm819
    %v821 = vmax.f32 %v817, 0.0
    %v822 = vfloor.f32 %v821
    %vm823 = vcmp.ge.f32.partialorder %v822, 15.0
    %v824 = vsel %vm823, 15.0, %v822
    %v825 = vadd.f32 %v824, 1.0
    %v826 = vsel %vm823, 15.0, %v825
    %v827 = vsel %vm823, 15.0, %v821
    %v828 = vsub.f32 %v827, %v824
    %v829 = vsub.f32 1.0, %v828
    %vm830 = vcmp.eq.f32.partialorder %v124, %v824
    %v831 = vsel %vm830, 1, 0
    %v832 = vcvt.s32.f32 %v831
    %v833 = vmul.f32 %v829, %v832
    %vm834 = vcmp.eq.f32.partialorder %v124, %v826
    %v835 = vsel %vm834, 1, 0
    %v836 = vcvt.s32.f32 %v835
    %v837 = vmul.f32 %v828, %v836
    %v838 = vadd.f32 %v833, %v837
    %v839 = vsel %vm820, %v838, 0.0
    %v840 = vadd.f32 %v839, 0.0
    %v841 = vmul.f32 %v153, %v814
    %v842 = vadd.f32 %v816, %v841
    %vm843 = vcmp.ge.f32.partialorder %v842, -1.0
    %vm844 = vcmp.le.f32.partialorder %v842, 16.0
    %vm845 = vmand %vm843, %vm844
    %v846 = vmax.f32 %v842, 0.0
    %v847 = vfloor.f32 %v846
    %vm848 = vcmp.ge.f32.partialorder %v847, 15.0
    %v849 = vsel %vm848, 15.0, %v847
    %v850 = vadd.f32 %v849, 1.0
    %v851 = vsel %vm848, 15.0, %v850
    %v852 = vsel %vm848, 15.0, %v846
    %v853 = vsub.f32 %v852, %v849
    %v854 = vsub.f32 1.0, %v853
    %vm855 = vcmp.eq.f32.partialorder %v124, %v849
    %v856 = vsel %vm855, 1, 0
    %v857 = vcvt.s32.f32 %v856
    %v858 = vmul.f32 %v854, %v857
    %vm859 = vcmp.eq.f32.partialorder %v124, %v851
    %v860 = vsel %vm859, 1, 0
    %v861 = vcvt.s32.f32 %v860
    %v862 = vmul.f32 %v853, %v861
    %v863 = vadd.f32 %v858, %v862
    %v864 = vsel %vm845, %v863, 0.0
    %v865 = vadd.f32 %v840, %v864
    %v866 = vmul.f32 %v865, %v179
    %v868 = vsel %vm234, %v813, 0
    %870 = vmatprep.subr.mxu0 0.0
    %871 = vmatpush1.msra.mxu0 %v741
    %872 = vmatprep.subr.mxu0 0.0
    %873 = vmatpush1.msra.mxu0 %v742
    %874 = vmatprep.subr.mxu0 0.0
    %875 = vmatpush1.msra.mxu0 0.0
    %876 = vmatprep.subr.mxu0 0.0
    %877 = vmatpush1.msra.mxu0 0.0
    %878 = vmatprep.subr.mxu0 0.0
    %879 = vmatpush1.msra.mxu0 0.0
    %880 = vmatprep.subr.mxu0 0.0
    %881 = vmatpush1.msra.mxu0 0.0
    %882 = vmatprep.subr.mxu0 0.0
    %883 = vmatpush1.msra.mxu0 0.0
    %884 = vmatprep.subr.mxu0 0.0
    %885 = vmatpush1.msra.mxu0 0.0
    %886 = vmatprep.subr.mxu0 0.0
    %887 = vmatpush1.msra.mxu0 0.0
    %888 = vmatprep.subr.mxu0 0.0
    %889 = vmatpush1.msra.mxu0 0.0
    %890 = vmatprep.subr.mxu0 0.0
    %891 = vmatpush1.msra.mxu0 0.0
    %892 = vmatprep.subr.mxu0 0.0
    %893 = vmatpush1.msra.mxu0 0.0
    %894 = vmatprep.subr.mxu0 0.0
    %895 = vmatpush1.msra.mxu0 0.0
    %896 = vmatprep.subr.mxu0 0.0
    %897 = vmatpush1.msra.mxu0 0.0
    %898 = vmatprep.subr.mxu0 0.0
    %899 = vmatpush1.msra.mxu0 0.0
    %900 = vmatprep.subr.mxu0 0.0
    %901 = vmatpush1.msra.mxu0 0.0
    %902 = vmatprep.subr.mxu0 0.0
    %903 = vmatpush1.msra.mxu0 0.0
    %904 = vmatprep.subr.mxu0 0.0
    %905 = vmatpush1.msra.mxu0 0.0
    %906 = vmatprep.subr.mxu0 0.0
    %907 = vmatpush1.msra.mxu0 0.0
    %908 = vmatprep.subr.mxu0 0.0
    %909 = vmatpush1.msra.mxu0 0.0
    %910 = vmatprep.subr.mxu0 0.0
    %911 = vmatpush1.msra.mxu0 0.0
    %912 = vmatprep.subr.mxu0 0.0
    %913 = vmatpush1.msra.mxu0 0.0
    %914 = vmatprep.subr.mxu0 0.0
    %915 = vmatpush1.msra.mxu0 0.0
    %916 = vmatprep.subr.mxu0 0.0
    %917 = vmatpush1.msra.mxu0 0.0
    %918 = vmatprep.subr.mxu0 0.0
    %919 = vmatpush1.msra.mxu0 0.0
    %920 = vmatprep.subr.mxu0 0.0
    %921 = vmatpush1.msra.mxu0 0.0
    %922 = vmatprep.subr.mxu0 0.0
    %923 = vmatpush1.msra.mxu0 0.0
    %924 = vmatprep.subr.mxu0 0.0
    %925 = vmatpush1.msra.mxu0 0.0
    %926 = vmatprep.subr.mxu0 0.0
    %927 = vmatpush1.msra.mxu0 0.0
    %928 = vmatprep.subr.mxu0 0.0
    %929 = vmatpush1.msra.mxu0 0.0
    %930 = vmatprep.subr.mxu0 0.0
    %931 = vmatpush1.msra.mxu0 0.0
    %932 = vmatprep.subr.mxu0 0.0
    %933 = vmatpush1.msra.mxu0 0.0
    %934 = vmatprep.mubr.f32.mxu0 0.0
    %935 = vmatmul.mubr.f32.gmra.mrb[0].mxu0 %v868
    %v936 = vpop.f32.mrb[0].mxu0
    %v937 = vadd.f32 0.0, %v936
    %v938 = vpop.f32.mrb[0].mxu0
    %939 = vdwg.mxu0
    %940 = vst.msk [vmem:[#allocation2] sm:$0x7f] %vm308, %v937
    %v941 = vld [vmem:[#allocation2] sm:$0x7f]
    %942 = vst.msk [vmem:[#allocation3] sm:$0x7f] %vm311, %v941
    %v943 = vld [vmem:[#allocation2] sm:$0x7f]
    %945 = vrot.lane.b32.xlu0 %v943, 112
    %v946 = vpop.permute.xlu0 %945
    %948 = vst.msk [vmem:[#allocation3 + $0x7] sm:$0x7f] %vm311, %v946
    %v949 = vld [vmem:[#allocation2] sm:$0x7f]
    %951 = vrot.lane.b32.xlu0 %v949, 96
    %v952 = vpop.permute.xlu0 %951
    %954 = vst.msk [vmem:[#allocation3 + $0xe] sm:$0x7f] %vm311, %v952
    %v955 = vld [vmem:[#allocation2] sm:$0x7f]
    %957 = vrot.lane.b32.xlu0 %v955, 80
    %v958 = vpop.permute.xlu0 %957
    %960 = vst.msk [vmem:[#allocation3 + $0x15] sm:$0x7f] %vm311, %v958
    %v961 = vld [vmem:[#allocation3] sm:$0xff]
    %v962 = vld [vmem:[#allocation3 + $0x8] sm:$0xff]
    %v963 = vld [vmem:[#allocation3 + $0x10] sm:$0xff]
    %v964 = vld [vmem:[#allocation3 + $0x18] sm:$0xf]
    %v966 = vsel %vm234, %v866, 0
    %v969 = vsel %vm234, %v961, 0
    %v972 = vsel %vm234, %v962, 0
    %v975 = vsel %vm234, %v963, 0
    %v978 = vsel %vm234, %v964, 0
    %980 = vmatprep.subr.mxu0 0.0
    %981 = vmatpush1.xpose.msra.mxu0 %v969
    %982 = vmatprep.subr.mxu0 0.0
    %983 = vmatpush1.xpose.msra.mxu0 %v972
    %984 = vmatprep.subr.mxu0 0.0
    %985 = vmatpush1.xpose.msra.mxu0 %v975
    %986 = vmatprep.subr.mxu0 0.0
    %987 = vmatpush1.xpose.msra.mxu0 %v978
    %988 = vmatprep.subr.mxu0 0.0
    %989 = vmatpush1.xpose.msra.mxu0 0.0
    %990 = vmatprep.subr.mxu0 0.0
    %991 = vmatpush1.xpose.msra.mxu0 0.0
    %992 = vmatprep.subr.mxu0 0.0
    %993 = vmatpush1.xpose.msra.mxu0 0.0
    %994 = vmatprep.subr.mxu0 0.0
    %995 = vmatpush1.xpose.msra.mxu0 0.0
    %996 = vmatprep.subr.mxu0 0.0
    %997 = vmatpush1.xpose.msra.mxu0 0.0
    %998 = vmatprep.subr.mxu0 0.0
    %999 = vmatpush1.xpose.msra.mxu0 0.0
    %1000 = vmatprep.subr.mxu0 0.0
    %1001 = vmatpush1.xpose.msra.mxu0 0.0
    %1002 = vmatprep.subr.mxu0 0.0
    %1003 = vmatpush1.xpose.msra.mxu0 0.0
    %1004 = vmatprep.subr.mxu0 0.0
    %1005 = vmatpush1.xpose.msra.mxu0 0.0
    %1006 = vmatprep.subr.mxu0 0.0
    %1007 = vmatpush1.xpose.msra.mxu0 0.0
    %1008 = vmatprep.subr.mxu0 0.0
    %1009 = vmatpush1.xpose.msra.mxu0 0.0
    %1010 = vmatprep.subr.mxu0 0.0
    %1011 = vmatpush1.xpose.msra.mxu0 0.0
    %1012 = vmatprep.subr.mxu0 0.0
    %1013 = vmatpush1.xpose.msra.mxu0 0.0
    %1014 = vmatprep.subr.mxu0 0.0
    %1015 = vmatpush1.xpose.msra.mxu0 0.0
    %1016 = vmatprep.subr.mxu0 0.0
    %1017 = vmatpush1.xpose.msra.mxu0 0.0
    %1018 = vmatprep.subr.mxu0 0.0
    %1019 = vmatpush1.xpose.msra.mxu0 0.0
    %1020 = vmatprep.subr.mxu0 0.0
    %1021 = vmatpush1.xpose.msra.mxu0 0.0
    %1022 = vmatprep.subr.mxu0 0.0
    %1023 = vmatpush1.xpose.msra.mxu0 0.0
    %1024 = vmatprep.subr.mxu0 0.0
    %1025 = vmatpush1.xpose.msra.mxu0 0.0
    %1026 = vmatprep.subr.mxu0 0.0
    %1027 = vmatpush1.xpose.msra.mxu0 0.0
    %1028 = vmatprep.subr.mxu0 0.0
    %1029 = vmatpush1.xpose.msra.mxu0 0.0
    %1030 = vmatprep.subr.mxu0 0.0
    %1031 = vmatpush1.xpose.msra.mxu0 0.0
    %1032 = vmatprep.subr.mxu0 0.0
    %1033 = vmatpush1.xpose.msra.mxu0 0.0
    %1034 = vmatprep.subr.mxu0 0.0
    %1035 = vmatpush1.xpose.msra.mxu0 0.0
    %1036 = vmatprep.subr.mxu0 0.0
    %1037 = vmatpush1.xpose.msra.mxu0 0.0
    %1038 = vmatprep.subr.mxu0 0.0
    %1039 = vmatpush1.xpose.msra.mxu0 0.0
    %1040 = vmatprep.subr.mxu0 0.0
    %1041 = vmatpush1.xpose.msra.mxu0 0.0
    %1042 = vmatprep.subr.mxu0 0.0
    %1043 = vmatpush1.xpose.msra.mxu0 0.0
    %1044 = vmatprep.mubr.f32.mxu0 0.0
    %1045 = vmatmul.mubr.f32.gmra.mrb[0].mxu0 %v966
    %v1046 = vpop.f32.mrb[0].mxu0
    %v1047 = vadd.f32 0.0, %v1046
    %v1048 = vpop.f32.mrb[0].mxu0
    %1049 = vdwg.mxu0
    %s1050 = scalar_lea.vmem %s6, 16
    %1051 = vst.msk [vmem:[%s1050] sm:$0x7f] %vm420, %v1047
    %s1052 = sadd.s32 %s95, 3
    %s1053 = sld [smem:[#allocation4 + %s1052]]
    %s1054 = smul.u32 %s1053, 16
    %s1055 = scalar_lea.vmem [#allocation14], %s1054
    %v1056 = vld [vmem:[%s1055] sm:$0xff]
    %v1057 = vld [vmem:[%s1055 + $0x8] sm:$0xff]
    %s1058 = sld [smem:[#allocation8 + %s1052]]
    %s1059 = sld [smem:[#allocation9 + %s1052]]
    %s1060 = sld [smem:[#allocation11 + %s1052]]
    %s1061 = sld [smem:[#allocation12 + %s1052]]
    %s1062 = smul.f32 %s1058, 0.5
    %s1063 = smul.f32 %s1059, 0.5
    %s1064 = smul.f32 %s1060, 0.5
    %s1065 = smul.f32 %s1061, 0.5
    %s1066 = ssub.f32 %s1064, %s1062
    %s1067 = ssub.f32 %s1065, %s1063
    %s1068 = smax.f32 %s1066, 1.0
    %s1069 = smax.f32 %s1067, 1.0
    %v1070 = vrcp.pop 7.0
    %s1071 = vtos %v1070
    %s1072 = smul.f32 %s1069, %s1071
    %v1073 = vrcp.pop 7.0
    %s1074 = vtos %v1073
    %s1075 = smul.f32 %s1068, %s1074
    %v1076 = vstv %s1072
    %v1077 = vmul.f32 %v125, %v1076
    %v1078 = vstv %s1063
    %v1079 = vadd.f32 %v1078, %v1077
    %vm1080 = vcmp.ge.f32.partialorder %v1079, -1.0
    %vm1081 = vcmp.le.f32.partialorder %v1079, 16.0
    %vm1082 = vmand %vm1080, %vm1081
    %v1083 = vmax.f32 %v1079, 0.0
    %v1084 = vfloor.f32 %v1083
    %vm1085 = vcmp.ge.f32.partialorder %v1084, 15.0
    %v1086 = vsel %vm1085, 15.0, %v1084
    %v1087 = vadd.f32 %v1086, 1.0
    %v1088 = vsel %vm1085, 15.0, %v1087
    %v1089 = vsel %vm1085, 15.0, %v1083
    %v1090 = vsub.f32 %v1089, %v1086
    %v1091 = vsub.f32 1.0, %v1090
    %vm1092 = vcmp.eq.f32.partialorder %v124, %v1086
    %v1093 = vsel %vm1092, 1, 0
    %v1094 = vcvt.s32.f32 %v1093
    %v1095 = vmul.f32 %v1091, %v1094
    %vm1096 = vcmp.eq.f32.partialorder %v124, %v1088
    %v1097 = vsel %vm1096, 1, 0
    %v1098 = vcvt.s32.f32 %v1097
    %v1099 = vmul.f32 %v1090, %v1098
    %v1100 = vadd.f32 %v1095, %v1099
    %v1101 = vsel %vm1082, %v1100, 0.0
    %v1102 = vadd.f32 %v1101, 0.0
    %v1103 = vmul.f32 %v153, %v1076
    %v1104 = vadd.f32 %v1078, %v1103
    %vm1105 = vcmp.ge.f32.partialorder %v1104, -1.0
    %vm1106 = vcmp.le.f32.partialorder %v1104, 16.0
    %vm1107 = vmand %vm1105, %vm1106
    %v1108 = vmax.f32 %v1104, 0.0
    %v1109 = vfloor.f32 %v1108
    %vm1110 = vcmp.ge.f32.partialorder %v1109, 15.0
    %v1111 = vsel %vm1110, 15.0, %v1109
    %v1112 = vadd.f32 %v1111, 1.0
    %v1113 = vsel %vm1110, 15.0, %v1112
    %v1114 = vsel %vm1110, 15.0, %v1108
    %v1115 = vsub.f32 %v1114, %v1111
    %v1116 = vsub.f32 1.0, %v1115
    %vm1117 = vcmp.eq.f32.partialorder %v124, %v1111
    %v1118 = vsel %vm1117, 1, 0
    %v1119 = vcvt.s32.f32 %v1118
    %v1120 = vmul.f32 %v1116, %v1119
    %vm1121 = vcmp.eq.f32.partialorder %v124, %v1113
    %v1122 = vsel %vm1121, 1, 0
    %v1123 = vcvt.s32.f32 %v1122
    %v1124 = vmul.f32 %v1115, %v1123
    %v1125 = vadd.f32 %v1120, %v1124
    %v1126 = vsel %vm1107, %v1125, 0.0
    %v1127 = vadd.f32 %v1102, %v1126
    %v1128 = vmul.f32 %v1127, %v179
    %v1129 = vstv %s1075
    %v1130 = vmul.f32 %v125, %v1129
    %v1131 = vstv %s1062
    %v1132 = vadd.f32 %v1131, %v1130
    %vm1133 = vcmp.ge.f32.partialorder %v1132, -1.0
    %vm1134 = vcmp.le.f32.partialorder %v1132, 16.0
    %vm1135 = vmand %vm1133, %vm1134
    %v1136 = vmax.f32 %v1132, 0.0
    %v1137 = vfloor.f32 %v1136
    %vm1138 = vcmp.ge.f32.partialorder %v1137, 15.0
    %v1139 = vsel %vm1138, 15.0, %v1137
    %v1140 = vadd.f32 %v1139, 1.0
    %v1141 = vsel %vm1138, 15.0, %v1140
    %v1142 = vsel %vm1138, 15.0, %v1136
    %v1143 = vsub.f32 %v1142, %v1139
    %v1144 = vsub.f32 1.0, %v1143
    %vm1145 = vcmp.eq.f32.partialorder %v124, %v1139
    %v1146 = vsel %vm1145, 1, 0
    %v1147 = vcvt.s32.f32 %v1146
    %v1148 = vmul.f32 %v1144, %v1147
    %vm1149 = vcmp.eq.f32.partialorder %v124, %v1141
    %v1150 = vsel %vm1149, 1, 0
    %v1151 = vcvt.s32.f32 %v1150
    %v1152 = vmul.f32 %v1143, %v1151
    %v1153 = vadd.f32 %v1148, %v1152
    %v1154 = vsel %vm1135, %v1153, 0.0
    %v1155 = vadd.f32 %v1154, 0.0
    %v1156 = vmul.f32 %v153, %v1129
    %v1157 = vadd.f32 %v1131, %v1156
    %vm1158 = vcmp.ge.f32.partialorder %v1157, -1.0
    %vm1159 = vcmp.le.f32.partialorder %v1157, 16.0
    %vm1160 = vmand %vm1158, %vm1159
    %v1161 = vmax.f32 %v1157, 0.0
    %v1162 = vfloor.f32 %v1161
    %vm1163 = vcmp.ge.f32.partialorder %v1162, 15.0
    %v1164 = vsel %vm1163, 15.0, %v1162
    %v1165 = vadd.f32 %v1164, 1.0
    %v1166 = vsel %vm1163, 15.0, %v1165
    %v1167 = vsel %vm1163, 15.0, %v1161
    %v1168 = vsub.f32 %v1167, %v1164
    %v1169 = vsub.f32 1.0, %v1168
    %vm1170 = vcmp.eq.f32.partialorder %v124, %v1164
    %v1171 = vsel %vm1170, 1, 0
    %v1172 = vcvt.s32.f32 %v1171
    %v1173 = vmul.f32 %v1169, %v1172
    %vm1174 = vcmp.eq.f32.partialorder %v124, %v1166
    %v1175 = vsel %vm1174, 1, 0
    %v1176 = vcvt.s32.f32 %v1175
    %v1177 = vmul.f32 %v1168, %v1176
    %v1178 = vadd.f32 %v1173, %v1177
    %v1179 = vsel %vm1160, %v1178, 0.0
    %v1180 = vadd.f32 %v1155, %v1179
    %v1181 = vmul.f32 %v1180, %v179
    %v1183 = vsel %vm234, %v1128, 0
    %1185 = vmatprep.subr.mxu0 0.0
    %1186 = vmatpush1.msra.mxu0 %v1056
    %1187 = vmatprep.subr.mxu0 0.0
    %1188 = vmatpush1.msra.mxu0 %v1057
    %1189 = vmatprep.subr.mxu0 0.0
    %1190 = vmatpush1.msra.mxu0 0.0
    %1191 = vmatprep.subr.mxu0 0.0
    %1192 = vmatpush1.msra.mxu0 0.0
    %1193 = vmatprep.subr.mxu0 0.0
    %1194 = vmatpush1.msra.mxu0 0.0
    %1195 = vmatprep.subr.mxu0 0.0
    %1196 = vmatpush1.msra.mxu0 0.0
    %1197 = vmatprep.subr.mxu0 0.0
    %1198 = vmatpush1.msra.mxu0 0.0
    %1199 = vmatprep.subr.mxu0 0.0
    %1200 = vmatpush1.msra.mxu0 0.0
    %1201 = vmatprep.subr.mxu0 0.0
    %1202 = vmatpush1.msra.mxu0 0.0
    %1203 = vmatprep.subr.mxu0 0.0
    %1204 = vmatpush1.msra.mxu0 0.0
    %1205 = vmatprep.subr.mxu0 0.0
    %1206 = vmatpush1.msra.mxu0 0.0
    %1207 = vmatprep.subr.mxu0 0.0
    %1208 = vmatpush1.msra.mxu0 0.0
    %1209 = vmatprep.subr.mxu0 0.0
    %1210 = vmatpush1.msra.mxu0 0.0
    %1211 = vmatprep.subr.mxu0 0.0
    %1212 = vmatpush1.msra.mxu0 0.0
    %1213 = vmatprep.subr.mxu0 0.0
    %1214 = vmatpush1.msra.mxu0 0.0
    %1215 = vmatprep.subr.mxu0 0.0
    %1216 = vmatpush1.msra.mxu0 0.0
    %1217 = vmatprep.subr.mxu0 0.0
    %1218 = vmatpush1.msra.mxu0 0.0
    %1219 = vmatprep.subr.mxu0 0.0
    %1220 = vmatpush1.msra.mxu0 0.0
    %1221 = vmatprep.subr.mxu0 0.0
    %1222 = vmatpush1.msra.mxu0 0.0
    %1223 = vmatprep.subr.mxu0 0.0
    %1224 = vmatpush1.msra.mxu0 0.0
    %1225 = vmatprep.subr.mxu0 0.0
    %1226 = vmatpush1.msra.mxu0 0.0
    %1227 = vmatprep.subr.mxu0 0.0
    %1228 = vmatpush1.msra.mxu0 0.0
    %1229 = vmatprep.subr.mxu0 0.0
    %1230 = vmatpush1.msra.mxu0 0.0
    %1231 = vmatprep.subr.mxu0 0.0
    %1232 = vmatpush1.msra.mxu0 0.0
    %1233 = vmatprep.subr.mxu0 0.0
    %1234 = vmatpush1.msra.mxu0 0.0
    %1235 = vmatprep.subr.mxu0 0.0
    %1236 = vmatpush1.msra.mxu0 0.0
    %1237 = vmatprep.subr.mxu0 0.0
    %1238 = vmatpush1.msra.mxu0 0.0
    %1239 = vmatprep.subr.mxu0 0.0
    %1240 = vmatpush1.msra.mxu0 0.0
    %1241 = vmatprep.subr.mxu0 0.0
    %1242 = vmatpush1.msra.mxu0 0.0
    %1243 = vmatprep.subr.mxu0 0.0
    %1244 = vmatpush1.msra.mxu0 0.0
    %1245 = vmatprep.subr.mxu0 0.0
    %1246 = vmatpush1.msra.mxu0 0.0
    %1247 = vmatprep.subr.mxu0 0.0
    %1248 = vmatpush1.msra.mxu0 0.0
    %1249 = vmatprep.mubr.f32.mxu0 0.0
    %1250 = vmatmul.mubr.f32.gmra.mrb[0].mxu0 %v1183
    %v1251 = vpop.f32.mrb[0].mxu0
    %v1252 = vadd.f32 0.0, %v1251
    %v1253 = vpop.f32.mrb[0].mxu0
    %1254 = vdwg.mxu0
    %1255 = vst.msk [vmem:[#allocation2] sm:$0x7f] %vm308, %v1252
    %v1256 = vld [vmem:[#allocation2] sm:$0x7f]
    %1257 = vst.msk [vmem:[#allocation3] sm:$0x7f] %vm311, %v1256
    %v1258 = vld [vmem:[#allocation2] sm:$0x7f]
    %1260 = vrot.lane.b32.xlu0 %v1258, 112
    %v1261 = vpop.permute.xlu0 %1260
    %1263 = vst.msk [vmem:[#allocation3 + $0x7] sm:$0x7f] %vm311, %v1261
    %v1264 = vld [vmem:[#allocation2] sm:$0x7f]
    %1266 = vrot.lane.b32.xlu0 %v1264, 96
    %v1267 = vpop.permute.xlu0 %1266
    %1269 = vst.msk [vmem:[#allocation3 + $0xe] sm:$0x7f] %vm311, %v1267
    %v1270 = vld [vmem:[#allocation2] sm:$0x7f]
    %1272 = vrot.lane.b32.xlu0 %v1270, 80
    %v1273 = vpop.permute.xlu0 %1272
    %1275 = vst.msk [vmem:[#allocation3 + $0x15] sm:$0x7f] %vm311, %v1273
    %v1276 = vld [vmem:[#allocation3] sm:$0xff]
    %v1277 = vld [vmem:[#allocation3 + $0x8] sm:$0xff]
    %v1278 = vld [vmem:[#allocation3 + $0x10] sm:$0xff]
    %v1279 = vld [vmem:[#allocation3 + $0x18] sm:$0xf]
    %v1281 = vsel %vm234, %v1181, 0
    %v1284 = vsel %vm234, %v1276, 0
    %v1287 = vsel %vm234, %v1277, 0
    %v1290 = vsel %vm234, %v1278, 0
    %v1293 = vsel %vm234, %v1279, 0
    %1295 = vmatprep.subr.mxu0 0.0
    %1296 = vmatpush1.xpose.msra.mxu0 %v1284
    %1297 = vmatprep.subr.mxu0 0.0
    %1298 = vmatpush1.xpose.msra.mxu0 %v1287
    %1299 = vmatprep.subr.mxu0 0.0
    %1300 = vmatpush1.xpose.msra.mxu0 %v1290
    %1301 = vmatprep.subr.mxu0 0.0
    %1302 = vmatpush1.xpose.msra.mxu0 %v1293
    %1303 = vmatprep.subr.mxu0 0.0
    %1304 = vmatpush1.xpose.msra.mxu0 0.0
    %1305 = vmatprep.subr.mxu0 0.0
    %1306 = vmatpush1.xpose.msra.mxu0 0.0
    %1307 = vmatprep.subr.mxu0 0.0
    %1308 = vmatpush1.xpose.msra.mxu0 0.0
    %1309 = vmatprep.subr.mxu0 0.0
    %1310 = vmatpush1.xpose.msra.mxu0 0.0
    %1311 = vmatprep.subr.mxu0 0.0
    %1312 = vmatpush1.xpose.msra.mxu0 0.0
    %1313 = vmatprep.subr.mxu0 0.0
    %1314 = vmatpush1.xpose.msra.mxu0 0.0
    %1315 = vmatprep.subr.mxu0 0.0
    %1316 = vmatpush1.xpose.msra.mxu0 0.0
    %1317 = vmatprep.subr.mxu0 0.0
    %1318 = vmatpush1.xpose.msra.mxu0 0.0
    %1319 = vmatprep.subr.mxu0 0.0
    %1320 = vmatpush1.xpose.msra.mxu0 0.0
    %1321 = vmatprep.subr.mxu0 0.0
    %1322 = vmatpush1.xpose.msra.mxu0 0.0
    %1323 = vmatprep.subr.mxu0 0.0
    %1324 = vmatpush1.xpose.msra.mxu0 0.0
    %1325 = vmatprep.subr.mxu0 0.0
    %1326 = vmatpush1.xpose.msra.mxu0 0.0
    %1327 = vmatprep.subr.mxu0 0.0
    %1328 = vmatpush1.xpose.msra.mxu0 0.0
    %1329 = vmatprep.subr.mxu0 0.0
    %1330 = vmatpush1.xpose.msra.mxu0 0.0
    %1331 = vmatprep.subr.mxu0 0.0
    %1332 = vmatpush1.xpose.msra.mxu0 0.0
    %1333 = vmatprep.subr.mxu0 0.0
    %1334 = vmatpush1.xpose.msra.mxu0 0.0
    %1335 = vmatprep.subr.mxu0 0.0
    %1336 = vmatpush1.xpose.msra.mxu0 0.0
    %1337 = vmatprep.subr.mxu0 0.0
    %1338 = vmatpush1.xpose.msra.mxu0 0.0
    %1339 = vmatprep.subr.mxu0 0.0
    %1340 = vmatpush1.xpose.msra.mxu0 0.0
    %1341 = vmatprep.subr.mxu0 0.0
    %1342 = vmatpush1.xpose.msra.mxu0 0.0
    %1343 = vmatprep.subr.mxu0 0.0
    %1344 = vmatpush1.xpose.msra.mxu0 0.0
    %1345 = vmatprep.subr.mxu0 0.0
    %1346 = vmatpush1.xpose.msra.mxu0 0.0
    %1347 = vmatprep.subr.mxu0 0.0
    %1348 = vmatpush1.xpose.msra.mxu0 0.0
    %1349 = vmatprep.subr.mxu0 0.0
    %1350 = vmatpush1.xpose.msra.mxu0 0.0
    %1351 = vmatprep.subr.mxu0 0.0
    %1352 = vmatpush1.xpose.msra.mxu0 0.0
    %1353 = vmatprep.subr.mxu0 0.0
    %1354 = vmatpush1.xpose.msra.mxu0 0.0
    %1355 = vmatprep.subr.mxu0 0.0
    %1356 = vmatpush1.xpose.msra.mxu0 0.0
    %1357 = vmatprep.subr.mxu0 0.0
    %1358 = vmatpush1.xpose.msra.mxu0 0.0
    %1359 = vmatprep.mubr.f32.mxu0 0.0
    %1360 = vmatmul.mubr.f32.gmra.mrb[0].mxu0 %v1281
    %v1361 = vpop.f32.mrb[0].mxu0
    %v1362 = vadd.f32 0.0, %v1361
    %v1363 = vpop.f32.mrb[0].mxu0
    %1364 = vdwg.mxu0
    %s1365 = scalar_lea.vmem %s6, 24
    %1366 = vst.msk [vmem:[%s1365] sm:$0x7f] %vm420, %v1362
    %s1367 = sadd.s32 %s95, 4
    %s1368 = sld [smem:[#allocation4 + %s1367]]
    %s1369 = smul.u32 %s1368, 16
    %s1370 = scalar_lea.vmem [#allocation14], %s1369
    %v1371 = vld [vmem:[%s1370] sm:$0xff]
    %v1372 = vld [vmem:[%s1370 + $0x8] sm:$0xff]
    %s1373 = sld [smem:[#allocation8 + %s1367]]
    %s1374 = sld [smem:[#allocation9 + %s1367]]
    %s1375 = sld [smem:[#allocation11 + %s1367]]
    %s1376 = sld [smem:[#allocation12 + %s1367]]
    %s1377 = smul.f32 %s1373, 0.5
    %s1378 = smul.f32 %s1374, 0.5
    %s1379 = smul.f32 %s1375, 0.5
    %s1380 = smul.f32 %s1376, 0.5
    %s1381 = ssub.f32 %s1379, %s1377
    %s1382 = ssub.f32 %s1380, %s1378
    %s1383 = smax.f32 %s1381, 1.0
    %s1384 = smax.f32 %s1382, 1.0
    %v1385 = vrcp.pop 7.0
    %s1386 = vtos %v1385
    %s1387 = smul.f32 %s1384, %s1386
    %v1388 = vrcp.pop 7.0
    %s1389 = vtos %v1388
    %s1390 = smul.f32 %s1383, %s1389
    %v1391 = vstv %s1387
    %v1392 = vmul.f32 %v125, %v1391
    %v1393 = vstv %s1378
    %v1394 = vadd.f32 %v1393, %v1392
    %vm1395 = vcmp.ge.f32.partialorder %v1394, -1.0
    %vm1396 = vcmp.le.f32.partialorder %v1394, 16.0
    %vm1397 = vmand %vm1395, %vm1396
    %v1398 = vmax.f32 %v1394, 0.0
    %v1399 = vfloor.f32 %v1398
    %vm1400 = vcmp.ge.f32.partialorder %v1399, 15.0
    %v1401 = vsel %vm1400, 15.0, %v1399
    %v1402 = vadd.f32 %v1401, 1.0
    %v1403 = vsel %vm1400, 15.0, %v1402
    %v1404 = vsel %vm1400, 15.0, %v1398
    %v1405 = vsub.f32 %v1404, %v1401
    %v1406 = vsub.f32 1.0, %v1405
    %vm1407 = vcmp.eq.f32.partialorder %v124, %v1401
    %v1408 = vsel %vm1407, 1, 0
    %v1409 = vcvt.s32.f32 %v1408
    %v1410 = vmul.f32 %v1406, %v1409
    %vm1411 = vcmp.eq.f32.partialorder %v124, %v1403
    %v1412 = vsel %vm1411, 1, 0
    %v1413 = vcvt.s32.f32 %v1412
    %v1414 = vmul.f32 %v1405, %v1413
    %v1415 = vadd.f32 %v1410, %v1414
    %v1416 = vsel %vm1397, %v1415, 0.0
    %v1417 = vadd.f32 %v1416, 0.0
    %v1418 = vmul.f32 %v153, %v1391
    %v1419 = vadd.f32 %v1393, %v1418
    %vm1420 = vcmp.ge.f32.partialorder %v1419, -1.0
    %vm1421 = vcmp.le.f32.partialorder %v1419, 16.0
    %vm1422 = vmand %vm1420, %vm1421
    %v1423 = vmax.f32 %v1419, 0.0
    %v1424 = vfloor.f32 %v1423
    %vm1425 = vcmp.ge.f32.partialorder %v1424, 15.0
    %v1426 = vsel %vm1425, 15.0, %v1424
    %v1427 = vadd.f32 %v1426, 1.0
    %v1428 = vsel %vm1425, 15.0, %v1427
    %v1429 = vsel %vm1425, 15.0, %v1423
    %v1430 = vsub.f32 %v1429, %v1426
    %v1431 = vsub.f32 1.0, %v1430
    %vm1432 = vcmp.eq.f32.partialorder %v124, %v1426
    %v1433 = vsel %vm1432, 1, 0
    %v1434 = vcvt.s32.f32 %v1433
    %v1435 = vmul.f32 %v1431, %v1434
    %vm1436 = vcmp.eq.f32.partialorder %v124, %v1428
    %v1437 = vsel %vm1436, 1, 0
    %v1438 = vcvt.s32.f32 %v1437
    %v1439 = vmul.f32 %v1430, %v1438
    %v1440 = vadd.f32 %v1435, %v1439
    %v1441 = vsel %vm1422, %v1440, 0.0
    %v1442 = vadd.f32 %v1417, %v1441
    %v1443 = vmul.f32 %v1442, %v179
    %v1444 = vstv %s1390
    %v1445 = vmul.f32 %v125, %v1444
    %v1446 = vstv %s1377
    %v1447 = vadd.f32 %v1446, %v1445
    %vm1448 = vcmp.ge.f32.partialorder %v1447, -1.0
    %vm1449 = vcmp.le.f32.partialorder %v1447, 16.0
    %vm1450 = vmand %vm1448, %vm1449
    %v1451 = vmax.f32 %v1447, 0.0
    %v1452 = vfloor.f32 %v1451
    %vm1453 = vcmp.ge.f32.partialorder %v1452, 15.0
    %v1454 = vsel %vm1453, 15.0, %v1452
    %v1455 = vadd.f32 %v1454, 1.0
    %v1456 = vsel %vm1453, 15.0, %v1455
    %v1457 = vsel %vm1453, 15.0, %v1451
    %v1458 = vsub.f32 %v1457, %v1454
    %v1459 = vsub.f32 1.0, %v1458
    %vm1460 = vcmp.eq.f32.partialorder %v124, %v1454
    %v1461 = vsel %vm1460, 1, 0
    %v1462 = vcvt.s32.f32 %v1461
    %v1463 = vmul.f32 %v1459, %v1462
    %vm1464 = vcmp.eq.f32.partialorder %v124, %v1456
    %v1465 = vsel %vm1464, 1, 0
    %v1466 = vcvt.s32.f32 %v1465
    %v1467 = vmul.f32 %v1458, %v1466
    %v1468 = vadd.f32 %v1463, %v1467
    %v1469 = vsel %vm1450, %v1468, 0.0
    %v1470 = vadd.f32 %v1469, 0.0
    %v1471 = vmul.f32 %v153, %v1444
    %v1472 = vadd.f32 %v1446, %v1471
    %vm1473 = vcmp.ge.f32.partialorder %v1472, -1.0
    %vm1474 = vcmp.le.f32.partialorder %v1472, 16.0
    %vm1475 = vmand %vm1473, %vm1474
    %v1476 = vmax.f32 %v1472, 0.0
    %v1477 = vfloor.f32 %v1476
    %vm1478 = vcmp.ge.f32.partialorder %v1477, 15.0
    %v1479 = vsel %vm1478, 15.0, %v1477
    %v1480 = vadd.f32 %v1479, 1.0
    %v1481 = vsel %vm1478, 15.0, %v1480
    %v1482 = vsel %vm1478, 15.0, %v1476
    %v1483 = vsub.f32 %v1482, %v1479
    %v1484 = vsub.f32 1.0, %v1483
    %vm1485 = vcmp.eq.f32.partialorder %v124, %v1479
    %v1486 = vsel %vm1485, 1, 0
    %v1487 = vcvt.s32.f32 %v1486
    %v1488 = vmul.f32 %v1484, %v1487
    %vm1489 = vcmp.eq.f32.partialorder %v124, %v1481
    %v1490 = vsel %vm1489, 1, 0
    %v1491 = vcvt.s32.f32 %v1490
    %v1492 = vmul.f32 %v1483, %v1491
    %v1493 = vadd.f32 %v1488, %v1492
    %v1494 = vsel %vm1475, %v1493, 0.0
    %v1495 = vadd.f32 %v1470, %v1494
    %v1496 = vmul.f32 %v1495, %v179
    %v1498 = vsel %vm234, %v1443, 0
    %1500 = vmatprep.subr.mxu0 0.0
    %1501 = vmatpush1.msra.mxu0 %v1371
    %1502 = vmatprep.subr.mxu0 0.0
    %1503 = vmatpush1.msra.mxu0 %v1372
    %1504 = vmatprep.subr.mxu0 0.0
    %1505 = vmatpush1.msra.mxu0 0.0
    %1506 = vmatprep.subr.mxu0 0.0
    %1507 = vmatpush1.msra.mxu0 0.0
    %1508 = vmatprep.subr.mxu0 0.0
    %1509 = vmatpush1.msra.mxu0 0.0
    %1510 = vmatprep.subr.mxu0 0.0
    %1511 = vmatpush1.msra.mxu0 0.0
    %1512 = vmatprep.subr.mxu0 0.0
    %1513 = vmatpush1.msra.mxu0 0.0
    %1514 = vmatprep.subr.mxu0 0.0
    %1515 = vmatpush1.msra.mxu0 0.0
    %1516 = vmatprep.subr.mxu0 0.0
    %1517 = vmatpush1.msra.mxu0 0.0
    %1518 = vmatprep.subr.mxu0 0.0
    %1519 = vmatpush1.msra.mxu0 0.0
    %1520 = vmatprep.subr.mxu0 0.0
    %1521 = vmatpush1.msra.mxu0 0.0
    %1522 = vmatprep.subr.mxu0 0.0
    %1523 = vmatpush1.msra.mxu0 0.0
    %1524 = vmatprep.subr.mxu0 0.0
    %1525 = vmatpush1.msra.mxu0 0.0
    %1526 = vmatprep.subr.mxu0 0.0
    %1527 = vmatpush1.msra.mxu0 0.0
    %1528 = vmatprep.subr.mxu0 0.0
    %1529 = vmatpush1.msra.mxu0 0.0
    %1530 = vmatprep.subr.mxu0 0.0
    %1531 = vmatpush1.msra.mxu0 0.0
    %1532 = vmatprep.subr.mxu0 0.0
    %1533 = vmatpush1.msra.mxu0 0.0
    %1534 = vmatprep.subr.mxu0 0.0
    %1535 = vmatpush1.msra.mxu0 0.0
    %1536 = vmatprep.subr.mxu0 0.0
    %1537 = vmatpush1.msra.mxu0 0.0
    %1538 = vmatprep.subr.mxu0 0.0
    %1539 = vmatpush1.msra.mxu0 0.0
    %1540 = vmatprep.subr.mxu0 0.0
    %1541 = vmatpush1.msra.mxu0 0.0
    %1542 = vmatprep.subr.mxu0 0.0
    %1543 = vmatpush1.msra.mxu0 0.0
    %1544 = vmatprep.subr.mxu0 0.0
    %1545 = vmatpush1.msra.mxu0 0.0
    %1546 = vmatprep.subr.mxu0 0.0
    %1547 = vmatpush1.msra.mxu0 0.0
    %1548 = vmatprep.subr.mxu0 0.0
    %1549 = vmatpush1.msra.mxu0 0.0
    %1550 = vmatprep.subr.mxu0 0.0
    %1551 = vmatpush1.msra.mxu0 0.0
    %1552 = vmatprep.subr.mxu0 0.0
    %1553 = vmatpush1.msra.mxu0 0.0
    %1554 = vmatprep.subr.mxu0 0.0
    %1555 = vmatpush1.msra.mxu0 0.0
    %1556 = vmatprep.subr.mxu0 0.0
    %1557 = vmatpush1.msra.mxu0 0.0
    %1558 = vmatprep.subr.mxu0 0.0
    %1559 = vmatpush1.msra.mxu0 0.0
    %1560 = vmatprep.subr.mxu0 0.0
    %1561 = vmatpush1.msra.mxu0 0.0
    %1562 = vmatprep.subr.mxu0 0.0
    %1563 = vmatpush1.msra.mxu0 0.0
    %1564 = vmatprep.mubr.f32.mxu0 0.0
    %1565 = vmatmul.mubr.f32.gmra.mrb[0].mxu0 %v1498
    %v1566 = vpop.f32.mrb[0].mxu0
    %v1567 = vadd.f32 0.0, %v1566
    %v1568 = vpop.f32.mrb[0].mxu0
    %1569 = vdwg.mxu0
    %1570 = vst.msk [vmem:[#allocation2] sm:$0x7f] %vm308, %v1567
    %v1571 = vld [vmem:[#allocation2] sm:$0x7f]
    %1572 = vst.msk [vmem:[#allocation3] sm:$0x7f] %vm311, %v1571
    %v1573 = vld [vmem:[#allocation2] sm:$0x7f]
    %1575 = vrot.lane.b32.xlu0 %v1573, 112
    %v1576 = vpop.permute.xlu0 %1575
    %1578 = vst.msk [vmem:[#allocation3 + $0x7] sm:$0x7f] %vm311, %v1576
    %v1579 = vld [vmem:[#allocation2] sm:$0x7f]
    %1581 = vrot.lane.b32.xlu0 %v1579, 96
    %v1582 = vpop.permute.xlu0 %1581
    %1584 = vst.msk [vmem:[#allocation3 + $0xe] sm:$0x7f] %vm311, %v1582
    %v1585 = vld [vmem:[#allocation2] sm:$0x7f]
    %1587 = vrot.lane.b32.xlu0 %v1585, 80
    %v1588 = vpop.permute.xlu0 %1587
    %1590 = vst.msk [vmem:[#allocation3 + $0x15] sm:$0x7f] %vm311, %v1588
    %v1591 = vld [vmem:[#allocation3] sm:$0xff]
    %v1592 = vld [vmem:[#allocation3 + $0x8] sm:$0xff]
    %v1593 = vld [vmem:[#allocation3 + $0x10] sm:$0xff]
    %v1594 = vld [vmem:[#allocation3 + $0x18] sm:$0xf]
    %v1596 = vsel %vm234, %v1496, 0
    %v1599 = vsel %vm234, %v1591, 0
    %v1602 = vsel %vm234, %v1592, 0
    %v1605 = vsel %vm234, %v1593, 0
    %v1608 = vsel %vm234, %v1594, 0
    %1610 = vmatprep.subr.mxu0 0.0
    %1611 = vmatpush1.xpose.msra.mxu0 %v1599
    %1612 = vmatprep.subr.mxu0 0.0
    %1613 = vmatpush1.xpose.msra.mxu0 %v1602
    %1614 = vmatprep.subr.mxu0 0.0
    %1615 = vmatpush1.xpose.msra.mxu0 %v1605
    %1616 = vmatprep.subr.mxu0 0.0
    %1617 = vmatpush1.xpose.msra.mxu0 %v1608
    %1618 = vmatprep.subr.mxu0 0.0
    %1619 = vmatpush1.xpose.msra.mxu0 0.0
    %1620 = vmatprep.subr.mxu0 0.0
    %1621 = vmatpush1.xpose.msra.mxu0 0.0
    %1622 = vmatprep.subr.mxu0 0.0
    %1623 = vmatpush1.xpose.msra.mxu0 0.0
    %1624 = vmatprep.subr.mxu0 0.0
    %1625 = vmatpush1.xpose.msra.mxu0 0.0
    %1626 = vmatprep.subr.mxu0 0.0
    %1627 = vmatpush1.xpose.msra.mxu0 0.0
    %1628 = vmatprep.subr.mxu0 0.0
    %1629 = vmatpush1.xpose.msra.mxu0 0.0
    %1630 = vmatprep.subr.mxu0 0.0
    %1631 = vmatpush1.xpose.msra.mxu0 0.0
    %1632 = vmatprep.subr.mxu0 0.0
    %1633 = vmatpush1.xpose.msra.mxu0 0.0
    %1634 = vmatprep.subr.mxu0 0.0
    %1635 = vmatpush1.xpose.msra.mxu0 0.0
    %1636 = vmatprep.subr.mxu0 0.0
    %1637 = vmatpush1.xpose.msra.mxu0 0.0
    %1638 = vmatprep.subr.mxu0 0.0
    %1639 = vmatpush1.xpose.msra.mxu0 0.0
    %1640 = vmatprep.subr.mxu0 0.0
    %1641 = vmatpush1.xpose.msra.mxu0 0.0
    %1642 = vmatprep.subr.mxu0 0.0
    %1643 = vmatpush1.xpose.msra.mxu0 0.0
    %1644 = vmatprep.subr.mxu0 0.0
    %1645 = vmatpush1.xpose.msra.mxu0 0.0
    %1646 = vmatprep.subr.mxu0 0.0
    %1647 = vmatpush1.xpose.msra.mxu0 0.0
    %1648 = vmatprep.subr.mxu0 0.0
    %1649 = vmatpush1.xpose.msra.mxu0 0.0
    %1650 = vmatprep.subr.mxu0 0.0
    %1651 = vmatpush1.xpose.msra.mxu0 0.0
    %1652 = vmatprep.subr.mxu0 0.0
    %1653 = vmatpush1.xpose.msra.mxu0 0.0
    %1654 = vmatprep.subr.mxu0 0.0
    %1655 = vmatpush1.xpose.msra.mxu0 0.0
    %1656 = vmatprep.subr.mxu0 0.0
    %1657 = vmatpush1.xpose.msra.mxu0 0.0
    %1658 = vmatprep.subr.mxu0 0.0
    %1659 = vmatpush1.xpose.msra.mxu0 0.0
    %1660 = vmatprep.subr.mxu0 0.0
    %1661 = vmatpush1.xpose.msra.mxu0 0.0
    %1662 = vmatprep.subr.mxu0 0.0
    %1663 = vmatpush1.xpose.msra.mxu0 0.0
    %1664 = vmatprep.subr.mxu0 0.0
    %1665 = vmatpush1.xpose.msra.mxu0 0.0
    %1666 = vmatprep.subr.mxu0 0.0
    %1667 = vmatpush1.xpose.msra.mxu0 0.0
    %1668 = vmatprep.subr.mxu0 0.0
    %1669 = vmatpush1.xpose.msra.mxu0 0.0
    %1670 = vmatprep.subr.mxu0 0.0
    %1671 = vmatpush1.xpose.msra.mxu0 0.0
    %1672 = vmatprep.subr.mxu0 0.0
    %1673 = vmatpush1.xpose.msra.mxu0 0.0
    %1674 = vmatprep.mubr.f32.mxu0 0.0
    %1675 = vmatmul.mubr.f32.gmra.mrb[0].mxu0 %v1596
    %v1676 = vpop.f32.mrb[0].mxu0
    %v1677 = vadd.f32 0.0, %v1676
    %v1678 = vpop.f32.mrb[0].mxu0
    %1679 = vdwg.mxu0
    %s1680 = scalar_lea.vmem %s6, 32
    %1681 = vst.msk [vmem:[%s1680] sm:$0x7f] %vm420, %v1677
    %s1682 = sadd.s32 %s95, 5
    %s1683 = sld [smem:[#allocation4 + %s1682]]
    %s1684 = smul.u32 %s1683, 16
    %s1685 = scalar_lea.vmem [#allocation14], %s1684
    %v1686 = vld [vmem:[%s1685] sm:$0xff]
    %v1687 = vld [vmem:[%s1685 + $0x8] sm:$0xff]
    %s1688 = sld [smem:[#allocation8 + %s1682]]
    %s1689 = sld [smem:[#allocation9 + %s1682]]
    %s1690 = sld [smem:[#allocation11 + %s1682]]
    %s1691 = sld [smem:[#allocation12 + %s1682]]
    %s1692 = smul.f32 %s1688, 0.5
    %s1693 = smul.f32 %s1689, 0.5
    %s1694 = smul.f32 %s1690, 0.5
    %s1695 = smul.f32 %s1691, 0.5
    %s1696 = ssub.f32 %s1694, %s1692
    %s1697 = ssub.f32 %s1695, %s1693
    %s1698 = smax.f32 %s1696, 1.0
    %s1699 = smax.f32 %s1697, 1.0
    %v1700 = vrcp.pop 7.0
    %s1701 = vtos %v1700
    %s1702 = smul.f32 %s1699, %s1701
    %v1703 = vrcp.pop 7.0
    %s1704 = vtos %v1703
    %s1705 = smul.f32 %s1698, %s1704
    %v1706 = vstv %s1702
    %v1707 = vmul.f32 %v125, %v1706
    %v1708 = vstv %s1693
    %v1709 = vadd.f32 %v1708, %v1707
    %vm1710 = vcmp.ge.f32.partialorder %v1709, -1.0
    %vm1711 = vcmp.le.f32.partialorder %v1709, 16.0
    %vm1712 = vmand %vm1710, %vm1711
    %v1713 = vmax.f32 %v1709, 0.0
    %v1714 = vfloor.f32 %v1713
    %vm1715 = vcmp.ge.f32.partialorder %v1714, 15.0
    %v1716 = vsel %vm1715, 15.0, %v1714
    %v1717 = vadd.f32 %v1716, 1.0
    %v1718 = vsel %vm1715, 15.0, %v1717
    %v1719 = vsel %vm1715, 15.0, %v1713
    %v1720 = vsub.f32 %v1719, %v1716
    %v1721 = vsub.f32 1.0, %v1720
    %vm1722 = vcmp.eq.f32.partialorder %v124, %v1716
    %v1723 = vsel %vm1722, 1, 0
    %v1724 = vcvt.s32.f32 %v1723
    %v1725 = vmul.f32 %v1721, %v1724
    %vm1726 = vcmp.eq.f32.partialorder %v124, %v1718
    %v1727 = vsel %vm1726, 1, 0
    %v1728 = vcvt.s32.f32 %v1727
    %v1729 = vmul.f32 %v1720, %v1728
    %v1730 = vadd.f32 %v1725, %v1729
    %v1731 = vsel %vm1712, %v1730, 0.0
    %v1732 = vadd.f32 %v1731, 0.0
    %v1733 = vmul.f32 %v153, %v1706
    %v1734 = vadd.f32 %v1708, %v1733
    %vm1735 = vcmp.ge.f32.partialorder %v1734, -1.0
    %vm1736 = vcmp.le.f32.partialorder %v1734, 16.0
    %vm1737 = vmand %vm1735, %vm1736
    %v1738 = vmax.f32 %v1734, 0.0
    %v1739 = vfloor.f32 %v1738
    %vm1740 = vcmp.ge.f32.partialorder %v1739, 15.0
    %v1741 = vsel %vm1740, 15.0, %v1739
    %v1742 = vadd.f32 %v1741, 1.0
    %v1743 = vsel %vm1740, 15.0, %v1742
    %v1744 = vsel %vm1740, 15.0, %v1738
    %v1745 = vsub.f32 %v1744, %v1741
    %v1746 = vsub.f32 1.0, %v1745
    %vm1747 = vcmp.eq.f32.partialorder %v124, %v1741
    %v1748 = vsel %vm1747, 1, 0
    %v1749 = vcvt.s32.f32 %v1748
    %v1750 = vmul.f32 %v1746, %v1749
    %vm1751 = vcmp.eq.f32.partialorder %v124, %v1743
    %v1752 = vsel %vm1751, 1, 0
    %v1753 = vcvt.s32.f32 %v1752
    %v1754 = vmul.f32 %v1745, %v1753
    %v1755 = vadd.f32 %v1750, %v1754
    %v1756 = vsel %vm1737, %v1755, 0.0
    %v1757 = vadd.f32 %v1732, %v1756
    %v1758 = vmul.f32 %v1757, %v179
    %v1759 = vstv %s1705
    %v1760 = vmul.f32 %v125, %v1759
    %v1761 = vstv %s1692
    %v1762 = vadd.f32 %v1761, %v1760
    %vm1763 = vcmp.ge.f32.partialorder %v1762, -1.0
    %vm1764 = vcmp.le.f32.partialorder %v1762, 16.0
    %vm1765 = vmand %vm1763, %vm1764
    %v1766 = vmax.f32 %v1762, 0.0
    %v1767 = vfloor.f32 %v1766
    %vm1768 = vcmp.ge.f32.partialorder %v1767, 15.0
    %v1769 = vsel %vm1768, 15.0, %v1767
    %v1770 = vadd.f32 %v1769, 1.0
    %v1771 = vsel %vm1768, 15.0, %v1770
    %v1772 = vsel %vm1768, 15.0, %v1766
    %v1773 = vsub.f32 %v1772, %v1769
    %v1774 = vsub.f32 1.0, %v1773
    %vm1775 = vcmp.eq.f32.partialorder %v124, %v1769
    %v1776 = vsel %vm1775, 1, 0
    %v1777 = vcvt.s32.f32 %v1776
    %v1778 = vmul.f32 %v1774, %v1777
    %vm1779 = vcmp.eq.f32.partialorder %v124, %v1771
    %v1780 = vsel %vm1779, 1, 0
    %v1781 = vcvt.s32.f32 %v1780
    %v1782 = vmul.f32 %v1773, %v1781
    %v1783 = vadd.f32 %v1778, %v1782
    %v1784 = vsel %vm1765, %v1783, 0.0
    %v1785 = vadd.f32 %v1784, 0.0
    %v1786 = vmul.f32 %v153, %v1759
    %v1787 = vadd.f32 %v1761, %v1786
    %vm1788 = vcmp.ge.f32.partialorder %v1787, -1.0
    %vm1789 = vcmp.le.f32.partialorder %v1787, 16.0
    %vm1790 = vmand %vm1788, %vm1789
    %v1791 = vmax.f32 %v1787, 0.0
    %v1792 = vfloor.f32 %v1791
    %vm1793 = vcmp.ge.f32.partialorder %v1792, 15.0
    %v1794 = vsel %vm1793, 15.0, %v1792
    %v1795 = vadd.f32 %v1794, 1.0
    %v1796 = vsel %vm1793, 15.0, %v1795
    %v1797 = vsel %vm1793, 15.0, %v1791
    %v1798 = vsub.f32 %v1797, %v1794
    %v1799 = vsub.f32 1.0, %v1798
    %vm1800 = vcmp.eq.f32.partialorder %v124, %v1794
    %v1801 = vsel %vm1800, 1, 0
    %v1802 = vcvt.s32.f32 %v1801
    %v1803 = vmul.f32 %v1799, %v1802
    %vm1804 = vcmp.eq.f32.partialorder %v124, %v1796
    %v1805 = vsel %vm1804, 1, 0
    %v1806 = vcvt.s32.f32 %v1805
    %v1807 = vmul.f32 %v1798, %v1806
    %v1808 = vadd.f32 %v1803, %v1807
    %v1809 = vsel %vm1790, %v1808, 0.0
    %v1810 = vadd.f32 %v1785, %v1809
    %v1811 = vmul.f32 %v1810, %v179
    %v1813 = vsel %vm234, %v1758, 0
    %1815 = vmatprep.subr.mxu0 0.0
    %1816 = vmatpush1.msra.mxu0 %v1686
    %1817 = vmatprep.subr.mxu0 0.0
    %1818 = vmatpush1.msra.mxu0 %v1687
    %1819 = vmatprep.subr.mxu0 0.0
    %1820 = vmatpush1.msra.mxu0 0.0
    %1821 = vmatprep.subr.mxu0 0.0
    %1822 = vmatpush1.msra.mxu0 0.0
    %1823 = vmatprep.subr.mxu0 0.0
    %1824 = vmatpush1.msra.mxu0 0.0
    %1825 = vmatprep.subr.mxu0 0.0
    %1826 = vmatpush1.msra.mxu0 0.0
    %1827 = vmatprep.subr.mxu0 0.0
    %1828 = vmatpush1.msra.mxu0 0.0
    %1829 = vmatprep.subr.mxu0 0.0
    %1830 = vmatpush1.msra.mxu0 0.0
    %1831 = vmatprep.subr.mxu0 0.0
    %1832 = vmatpush1.msra.mxu0 0.0
    %1833 = vmatprep.subr.mxu0 0.0
    %1834 = vmatpush1.msra.mxu0 0.0
    %1835 = vmatprep.subr.mxu0 0.0
    %1836 = vmatpush1.msra.mxu0 0.0
    %1837 = vmatprep.subr.mxu0 0.0
    %1838 = vmatpush1.msra.mxu0 0.0
    %1839 = vmatprep.subr.mxu0 0.0
    %1840 = vmatpush1.msra.mxu0 0.0
    %1841 = vmatprep.subr.mxu0 0.0
    %1842 = vmatpush1.msra.mxu0 0.0
    %1843 = vmatprep.subr.mxu0 0.0
    %1844 = vmatpush1.msra.mxu0 0.0
    %1845 = vmatprep.subr.mxu0 0.0
    %1846 = vmatpush1.msra.mxu0 0.0
    %1847 = vmatprep.subr.mxu0 0.0
    %1848 = vmatpush1.msra.mxu0 0.0
    %1849 = vmatprep.subr.mxu0 0.0
    %1850 = vmatpush1.msra.mxu0 0.0
    %1851 = vmatprep.subr.mxu0 0.0
    %1852 = vmatpush1.msra.mxu0 0.0
    %1853 = vmatprep.subr.mxu0 0.0
    %1854 = vmatpush1.msra.mxu0 0.0
    %1855 = vmatprep.subr.mxu0 0.0
    %1856 = vmatpush1.msra.mxu0 0.0
    %1857 = vmatprep.subr.mxu0 0.0
    %1858 = vmatpush1.msra.mxu0 0.0
    %1859 = vmatprep.subr.mxu0 0.0
    %1860 = vmatpush1.msra.mxu0 0.0
    %1861 = vmatprep.subr.mxu0 0.0
    %1862 = vmatpush1.msra.mxu0 0.0
    %1863 = vmatprep.subr.mxu0 0.0
    %1864 = vmatpush1.msra.mxu0 0.0
    %1865 = vmatprep.subr.mxu0 0.0
    %1866 = vmatpush1.msra.mxu0 0.0
    %1867 = vmatprep.subr.mxu0 0.0
    %1868 = vmatpush1.msra.mxu0 0.0
    %1869 = vmatprep.subr.mxu0 0.0
    %1870 = vmatpush1.msra.mxu0 0.0
    %1871 = vmatprep.subr.mxu0 0.0
    %1872 = vmatpush1.msra.mxu0 0.0
    %1873 = vmatprep.subr.mxu0 0.0
    %1874 = vmatpush1.msra.mxu0 0.0
    %1875 = vmatprep.subr.mxu0 0.0
    %1876 = vmatpush1.msra.mxu0 0.0
    %1877 = vmatprep.subr.mxu0 0.0
    %1878 = vmatpush1.msra.mxu0 0.0
    %1879 = vmatprep.mubr.f32.mxu0 0.0
    %1880 = vmatmul.mubr.f32.gmra.mrb[0].mxu0 %v1813
    %v1881 = vpop.f32.mrb[0].mxu0
    %v1882 = vadd.f32 0.0, %v1881
    %v1883 = vpop.f32.mrb[0].mxu0
    %1884 = vdwg.mxu0
    %1885 = vst.msk [vmem:[#allocation2] sm:$0x7f] %vm308, %v1882
    %v1886 = vld [vmem:[#allocation2] sm:$0x7f]
    %1887 = vst.msk [vmem:[#allocation3] sm:$0x7f] %vm311, %v1886
    %v1888 = vld [vmem:[#allocation2] sm:$0x7f]
    %1890 = vrot.lane.b32.xlu0 %v1888, 112
    %v1891 = vpop.permute.xlu0 %1890
    %1893 = vst.msk [vmem:[#allocation3 + $0x7] sm:$0x7f] %vm311, %v1891
    %v1894 = vld [vmem:[#allocation2] sm:$0x7f]
    %1896 = vrot.lane.b32.xlu0 %v1894, 96
    %v1897 = vpop.permute.xlu0 %1896
    %1899 = vst.msk [vmem:[#allocation3 + $0xe] sm:$0x7f] %vm311, %v1897
    %v1900 = vld [vmem:[#allocation2] sm:$0x7f]
    %1902 = vrot.lane.b32.xlu0 %v1900, 80
    %v1903 = vpop.permute.xlu0 %1902
    %1905 = vst.msk [vmem:[#allocation3 + $0x15] sm:$0x7f] %vm311, %v1903
    %v1906 = vld [vmem:[#allocation3] sm:$0xff]
    %v1907 = vld [vmem:[#allocation3 + $0x8] sm:$0xff]
    %v1908 = vld [vmem:[#allocation3 + $0x10] sm:$0xff]
    %v1909 = vld [vmem:[#allocation3 + $0x18] sm:$0xf]
    %v1911 = vsel %vm234, %v1811, 0
    %v1914 = vsel %vm234, %v1906, 0
    %v1917 = vsel %vm234, %v1907, 0
    %v1920 = vsel %vm234, %v1908, 0
    %v1923 = vsel %vm234, %v1909, 0
    %1925 = vmatprep.subr.mxu0 0.0
    %1926 = vmatpush1.xpose.msra.mxu0 %v1914
    %1927 = vmatprep.subr.mxu0 0.0
    %1928 = vmatpush1.xpose.msra.mxu0 %v1917
    %1929 = vmatprep.subr.mxu0 0.0
    %1930 = vmatpush1.xpose.msra.mxu0 %v1920
    %1931 = vmatprep.subr.mxu0 0.0
    %1932 = vmatpush1.xpose.msra.mxu0 %v1923
    %1933 = vmatprep.subr.mxu0 0.0
    %1934 = vmatpush1.xpose.msra.mxu0 0.0
    %1935 = vmatprep.subr.mxu0 0.0
    %1936 = vmatpush1.xpose.msra.mxu0 0.0
    %1937 = vmatprep.subr.mxu0 0.0
    %1938 = vmatpush1.xpose.msra.mxu0 0.0
    %1939 = vmatprep.subr.mxu0 0.0
    %1940 = vmatpush1.xpose.msra.mxu0 0.0
    %1941 = vmatprep.subr.mxu0 0.0
    %1942 = vmatpush1.xpose.msra.mxu0 0.0
    %1943 = vmatprep.subr.mxu0 0.0
    %1944 = vmatpush1.xpose.msra.mxu0 0.0
    %1945 = vmatprep.subr.mxu0 0.0
    %1946 = vmatpush1.xpose.msra.mxu0 0.0
    %1947 = vmatprep.subr.mxu0 0.0
    %1948 = vmatpush1.xpose.msra.mxu0 0.0
    %1949 = vmatprep.subr.mxu0 0.0
    %1950 = vmatpush1.xpose.msra.mxu0 0.0
    %1951 = vmatprep.subr.mxu0 0.0
    %1952 = vmatpush1.xpose.msra.mxu0 0.0
    %1953 = vmatprep.subr.mxu0 0.0
    %1954 = vmatpush1.xpose.msra.mxu0 0.0
    %1955 = vmatprep.subr.mxu0 0.0
    %1956 = vmatpush1.xpose.msra.mxu0 0.0
    %1957 = vmatprep.subr.mxu0 0.0
    %1958 = vmatpush1.xpose.msra.mxu0 0.0
    %1959 = vmatprep.subr.mxu0 0.0
    %1960 = vmatpush1.xpose.msra.mxu0 0.0
    %1961 = vmatprep.subr.mxu0 0.0
    %1962 = vmatpush1.xpose.msra.mxu0 0.0
    %1963 = vmatprep.subr.mxu0 0.0
    %1964 = vmatpush1.xpose.msra.mxu0 0.0
    %1965 = vmatprep.subr.mxu0 0.0
    %1966 = vmatpush1.xpose.msra.mxu0 0.0
    %1967 = vmatprep.subr.mxu0 0.0
    %1968 = vmatpush1.xpose.msra.mxu0 0.0
    %1969 = vmatprep.subr.mxu0 0.0
    %1970 = vmatpush1.xpose.msra.mxu0 0.0
    %1971 = vmatprep.subr.mxu0 0.0
    %1972 = vmatpush1.xpose.msra.mxu0 0.0
    %1973 = vmatprep.subr.mxu0 0.0
    %1974 = vmatpush1.xpose.msra.mxu0 0.0
    %1975 = vmatprep.subr.mxu0 0.0
    %1976 = vmatpush1.xpose.msra.mxu0 0.0
    %1977 = vmatprep.subr.mxu0 0.0
    %1978 = vmatpush1.xpose.msra.mxu0 0.0
    %1979 = vmatprep.subr.mxu0 0.0
    %1980 = vmatpush1.xpose.msra.mxu0 0.0
    %1981 = vmatprep.subr.mxu0 0.0
    %1982 = vmatpush1.xpose.msra.mxu0 0.0
    %1983 = vmatprep.subr.mxu0 0.0
    %1984 = vmatpush1.xpose.msra.mxu0 0.0
    %1985 = vmatprep.subr.mxu0 0.0
    %1986 = vmatpush1.xpose.msra.mxu0 0.0
    %1987 = vmatprep.subr.mxu0 0.0
    %1988 = vmatpush1.xpose.msra.mxu0 0.0
    %1989 = vmatprep.mubr.f32.mxu0 0.0
    %1990 = vmatmul.mubr.f32.gmra.mrb[0].mxu0 %v1911
    %v1991 = vpop.f32.mrb[0].mxu0
    %v1992 = vadd.f32 0.0, %v1991
    %v1993 = vpop.f32.mrb[0].mxu0
    %1994 = vdwg.mxu0
    %s1995 = scalar_lea.vmem %s6, 40
    %1996 = vst.msk [vmem:[%s1995] sm:$0x7f] %vm420, %v1992
    %s1997 = sadd.s32 %s95, 6
    %s1998 = sld [smem:[#allocation4 + %s1997]]
    %s1999 = smul.u32 %s1998, 16
    %s2000 = scalar_lea.vmem [#allocation14], %s1999
    %v2001 = vld [vmem:[%s2000] sm:$0xff]
    %v2002 = vld [vmem:[%s2000 + $0x8] sm:$0xff]
    %s2003 = sld [smem:[#allocation8 + %s1997]]
    %s2004 = sld [smem:[#allocation9 + %s1997]]
    %s2005 = sld [smem:[#allocation11 + %s1997]]
    %s2006 = sld [smem:[#allocation12 + %s1997]]
    %s2007 = smul.f32 %s2003, 0.5
    %s2008 = smul.f32 %s2004, 0.5
    %s2009 = smul.f32 %s2005, 0.5
    %s2010 = smul.f32 %s2006, 0.5
    %s2011 = ssub.f32 %s2009, %s2007
    %s2012 = ssub.f32 %s2010, %s2008
    %s2013 = smax.f32 %s2011, 1.0
    %s2014 = smax.f32 %s2012, 1.0
    %v2015 = vrcp.pop 7.0
    %s2016 = vtos %v2015
    %s2017 = smul.f32 %s2014, %s2016
    %v2018 = vrcp.pop 7.0
    %s2019 = vtos %v2018
    %s2020 = smul.f32 %s2013, %s2019
    %v2021 = vstv %s2017
    %v2022 = vmul.f32 %v125, %v2021
    %v2023 = vstv %s2008
    %v2024 = vadd.f32 %v2023, %v2022
    %vm2025 = vcmp.ge.f32.partialorder %v2024, -1.0
    %vm2026 = vcmp.le.f32.partialorder %v2024, 16.0
    %vm2027 = vmand %vm2025, %vm2026
    %v2028 = vmax.f32 %v2024, 0.0
    %v2029 = vfloor.f32 %v2028
    %vm2030 = vcmp.ge.f32.partialorder %v2029, 15.0
    %v2031 = vsel %vm2030, 15.0, %v2029
    %v2032 = vadd.f32 %v2031, 1.0
    %v2033 = vsel %vm2030, 15.0, %v2032
    %v2034 = vsel %vm2030, 15.0, %v2028
    %v2035 = vsub.f32 %v2034, %v2031
    %v2036 = vsub.f32 1.0, %v2035
    %vm2037 = vcmp.eq.f32.partialorder %v124, %v2031
    %v2038 = vsel %vm2037, 1, 0
    %v2039 = vcvt.s32.f32 %v2038
    %v2040 = vmul.f32 %v2036, %v2039
    %vm2041 = vcmp.eq.f32.partialorder %v124, %v2033
    %v2042 = vsel %vm2041, 1, 0
    %v2043 = vcvt.s32.f32 %v2042
    %v2044 = vmul.f32 %v2035, %v2043
    %v2045 = vadd.f32 %v2040, %v2044
    %v2046 = vsel %vm2027, %v2045, 0.0
    %v2047 = vadd.f32 %v2046, 0.0
    %v2048 = vmul.f32 %v153, %v2021
    %v2049 = vadd.f32 %v2023, %v2048
    %vm2050 = vcmp.ge.f32.partialorder %v2049, -1.0
    %vm2051 = vcmp.le.f32.partialorder %v2049, 16.0
    %vm2052 = vmand %vm2050, %vm2051
    %v2053 = vmax.f32 %v2049, 0.0
    %v2054 = vfloor.f32 %v2053
    %vm2055 = vcmp.ge.f32.partialorder %v2054, 15.0
    %v2056 = vsel %vm2055, 15.0, %v2054
    %v2057 = vadd.f32 %v2056, 1.0
    %v2058 = vsel %vm2055, 15.0, %v2057
    %v2059 = vsel %vm2055, 15.0, %v2053
    %v2060 = vsub.f32 %v2059, %v2056
    %v2061 = vsub.f32 1.0, %v2060
    %vm2062 = vcmp.eq.f32.partialorder %v124, %v2056
    %v2063 = vsel %vm2062, 1, 0
    %v2064 = vcvt.s32.f32 %v2063
    %v2065 = vmul.f32 %v2061, %v2064
    %vm2066 = vcmp.eq.f32.partialorder %v124, %v2058
    %v2067 = vsel %vm2066, 1, 0
    %v2068 = vcvt.s32.f32 %v2067
    %v2069 = vmul.f32 %v2060, %v2068
    %v2070 = vadd.f32 %v2065, %v2069
    %v2071 = vsel %vm2052, %v2070, 0.0
    %v2072 = vadd.f32 %v2047, %v2071
    %v2073 = vmul.f32 %v2072, %v179
    %v2074 = vstv %s2020
    %v2075 = vmul.f32 %v125, %v2074
    %v2076 = vstv %s2007
    %v2077 = vadd.f32 %v2076, %v2075
    %vm2078 = vcmp.ge.f32.partialorder %v2077, -1.0
    %vm2079 = vcmp.le.f32.partialorder %v2077, 16.0
    %vm2080 = vmand %vm2078, %vm2079
    %v2081 = vmax.f32 %v2077, 0.0
    %v2082 = vfloor.f32 %v2081
    %vm2083 = vcmp.ge.f32.partialorder %v2082, 15.0
    %v2084 = vsel %vm2083, 15.0, %v2082
    %v2085 = vadd.f32 %v2084, 1.0
    %v2086 = vsel %vm2083, 15.0, %v2085
    %v2087 = vsel %vm2083, 15.0, %v2081
    %v2088 = vsub.f32 %v2087, %v2084
    %v2089 = vsub.f32 1.0, %v2088
    %vm2090 = vcmp.eq.f32.partialorder %v124, %v2084
    %v2091 = vsel %vm2090, 1, 0
    %v2092 = vcvt.s32.f32 %v2091
    %v2093 = vmul.f32 %v2089, %v2092
    %vm2094 = vcmp.eq.f32.partialorder %v124, %v2086
    %v2095 = vsel %vm2094, 1, 0
    %v2096 = vcvt.s32.f32 %v2095
    %v2097 = vmul.f32 %v2088, %v2096
    %v2098 = vadd.f32 %v2093, %v2097
    %v2099 = vsel %vm2080, %v2098, 0.0
    %v2100 = vadd.f32 %v2099, 0.0
    %v2101 = vmul.f32 %v153, %v2074
    %v2102 = vadd.f32 %v2076, %v2101
    %vm2103 = vcmp.ge.f32.partialorder %v2102, -1.0
    %vm2104 = vcmp.le.f32.partialorder %v2102, 16.0
    %vm2105 = vmand %vm2103, %vm2104
    %v2106 = vmax.f32 %v2102, 0.0
    %v2107 = vfloor.f32 %v2106
    %vm2108 = vcmp.ge.f32.partialorder %v2107, 15.0
    %v2109 = vsel %vm2108, 15.0, %v2107
    %v2110 = vadd.f32 %v2109, 1.0
    %v2111 = vsel %vm2108, 15.0, %v2110
    %v2112 = vsel %vm2108, 15.0, %v2106
    %v2113 = vsub.f32 %v2112, %v2109
    %v2114 = vsub.f32 1.0, %v2113
    %vm2115 = vcmp.eq.f32.partialorder %v124, %v2109
    %v2116 = vsel %vm2115, 1, 0
    %v2117 = vcvt.s32.f32 %v2116
    %v2118 = vmul.f32 %v2114, %v2117
    %vm2119 = vcmp.eq.f32.partialorder %v124, %v2111
    %v2120 = vsel %vm2119, 1, 0
    %v2121 = vcvt.s32.f32 %v2120
    %v2122 = vmul.f32 %v2113, %v2121
    %v2123 = vadd.f32 %v2118, %v2122
    %v2124 = vsel %vm2105, %v2123, 0.0
    %v2125 = vadd.f32 %v2100, %v2124
    %v2126 = vmul.f32 %v2125, %v179
    %v2128 = vsel %vm234, %v2073, 0
    %2130 = vmatprep.subr.mxu0 0.0
    %2131 = vmatpush1.msra.mxu0 %v2001
    %2132 = vmatprep.subr.mxu0 0.0
    %2133 = vmatpush1.msra.mxu0 %v2002
    %2134 = vmatprep.subr.mxu0 0.0
    %2135 = vmatpush1.msra.mxu0 0.0
    %2136 = vmatprep.subr.mxu0 0.0
    %2137 = vmatpush1.msra.mxu0 0.0
    %2138 = vmatprep.subr.mxu0 0.0
    %2139 = vmatpush1.msra.mxu0 0.0
    %2140 = vmatprep.subr.mxu0 0.0
    %2141 = vmatpush1.msra.mxu0 0.0
    %2142 = vmatprep.subr.mxu0 0.0
    %2143 = vmatpush1.msra.mxu0 0.0
    %2144 = vmatprep.subr.mxu0 0.0
    %2145 = vmatpush1.msra.mxu0 0.0
    %2146 = vmatprep.subr.mxu0 0.0
    %2147 = vmatpush1.msra.mxu0 0.0
    %2148 = vmatprep.subr.mxu0 0.0
    %2149 = vmatpush1.msra.mxu0 0.0
    %2150 = vmatprep.subr.mxu0 0.0
    %2151 = vmatpush1.msra.mxu0 0.0
    %2152 = vmatprep.subr.mxu0 0.0
    %2153 = vmatpush1.msra.mxu0 0.0
    %2154 = vmatprep.subr.mxu0 0.0
    %2155 = vmatpush1.msra.mxu0 0.0
    %2156 = vmatprep.subr.mxu0 0.0
    %2157 = vmatpush1.msra.mxu0 0.0
    %2158 = vmatprep.subr.mxu0 0.0
    %2159 = vmatpush1.msra.mxu0 0.0
    %2160 = vmatprep.subr.mxu0 0.0
    %2161 = vmatpush1.msra.mxu0 0.0
    %2162 = vmatprep.subr.mxu0 0.0
    %2163 = vmatpush1.msra.mxu0 0.0
    %2164 = vmatprep.subr.mxu0 0.0
    %2165 = vmatpush1.msra.mxu0 0.0
    %2166 = vmatprep.subr.mxu0 0.0
    %2167 = vmatpush1.msra.mxu0 0.0
    %2168 = vmatprep.subr.mxu0 0.0
    %2169 = vmatpush1.msra.mxu0 0.0
    %2170 = vmatprep.subr.mxu0 0.0
    %2171 = vmatpush1.msra.mxu0 0.0
    %2172 = vmatprep.subr.mxu0 0.0
    %2173 = vmatpush1.msra.mxu0 0.0
    %2174 = vmatprep.subr.mxu0 0.0
    %2175 = vmatpush1.msra.mxu0 0.0
    %2176 = vmatprep.subr.mxu0 0.0
    %2177 = vmatpush1.msra.mxu0 0.0
    %2178 = vmatprep.subr.mxu0 0.0
    %2179 = vmatpush1.msra.mxu0 0.0
    %2180 = vmatprep.subr.mxu0 0.0
    %2181 = vmatpush1.msra.mxu0 0.0
    %2182 = vmatprep.subr.mxu0 0.0
    %2183 = vmatpush1.msra.mxu0 0.0
    %2184 = vmatprep.subr.mxu0 0.0
    %2185 = vmatpush1.msra.mxu0 0.0
    %2186 = vmatprep.subr.mxu0 0.0
    %2187 = vmatpush1.msra.mxu0 0.0
    %2188 = vmatprep.subr.mxu0 0.0
    %2189 = vmatpush1.msra.mxu0 0.0
    %2190 = vmatprep.subr.mxu0 0.0
    %2191 = vmatpush1.msra.mxu0 0.0
    %2192 = vmatprep.subr.mxu0 0.0
    %2193 = vmatpush1.msra.mxu0 0.0
    %2194 = vmatprep.mubr.f32.mxu0 0.0
    %2195 = vmatmul.mubr.f32.gmra.mrb[0].mxu0 %v2128
    %v2196 = vpop.f32.mrb[0].mxu0
    %v2197 = vadd.f32 0.0, %v2196
    %v2198 = vpop.f32.mrb[0].mxu0
    %2199 = vdwg.mxu0
    %2200 = vst.msk [vmem:[#allocation2] sm:$0x7f] %vm308, %v2197
    %v2201 = vld [vmem:[#allocation2] sm:$0x7f]
    %2202 = vst.msk [vmem:[#allocation3] sm:$0x7f] %vm311, %v2201
    %v2203 = vld [vmem:[#allocation2] sm:$0x7f]
    %2205 = vrot.lane.b32.xlu0 %v2203, 112
    %v2206 = vpop.permute.xlu0 %2205
    %2208 = vst.msk [vmem:[#allocation3 + $0x7] sm:$0x7f] %vm311, %v2206
    %v2209 = vld [vmem:[#allocation2] sm:$0x7f]
    %2211 = vrot.lane.b32.xlu0 %v2209, 96
    %v2212 = vpop.permute.xlu0 %2211
    %2214 = vst.msk [vmem:[#allocation3 + $0xe] sm:$0x7f] %vm311, %v2212
    %v2215 = vld [vmem:[#allocation2] sm:$0x7f]
    %2217 = vrot.lane.b32.xlu0 %v2215, 80
    %v2218 = vpop.permute.xlu0 %2217
    %2220 = vst.msk [vmem:[#allocation3 + $0x15] sm:$0x7f] %vm311, %v2218
    %v2221 = vld [vmem:[#allocation3] sm:$0xff]
    %v2222 = vld [vmem:[#allocation3 + $0x8] sm:$0xff]
    %v2223 = vld [vmem:[#allocation3 + $0x10] sm:$0xff]
    %v2224 = vld [vmem:[#allocation3 + $0x18] sm:$0xf]
    %v2226 = vsel %vm234, %v2126, 0
    %v2229 = vsel %vm234, %v2221, 0
    %v2232 = vsel %vm234, %v2222, 0
    %v2235 = vsel %vm234, %v2223, 0
    %v2238 = vsel %vm234, %v2224, 0
    %2240 = vmatprep.subr.mxu0 0.0
    %2241 = vmatpush1.xpose.msra.mxu0 %v2229
    %2242 = vmatprep.subr.mxu0 0.0
    %2243 = vmatpush1.xpose.msra.mxu0 %v2232
    %2244 = vmatprep.subr.mxu0 0.0
    %2245 = vmatpush1.xpose.msra.mxu0 %v2235
    %2246 = vmatprep.subr.mxu0 0.0
    %2247 = vmatpush1.xpose.msra.mxu0 %v2238
    %2248 = vmatprep.subr.mxu0 0.0
    %2249 = vmatpush1.xpose.msra.mxu0 0.0
    %2250 = vmatprep.subr.mxu0 0.0
    %2251 = vmatpush1.xpose.msra.mxu0 0.0
    %2252 = vmatprep.subr.mxu0 0.0
    %2253 = vmatpush1.xpose.msra.mxu0 0.0
    %2254 = vmatprep.subr.mxu0 0.0
    %2255 = vmatpush1.xpose.msra.mxu0 0.0
    %2256 = vmatprep.subr.mxu0 0.0
    %2257 = vmatpush1.xpose.msra.mxu0 0.0
    %2258 = vmatprep.subr.mxu0 0.0
    %2259 = vmatpush1.xpose.msra.mxu0 0.0
    %2260 = vmatprep.subr.mxu0 0.0
    %2261 = vmatpush1.xpose.msra.mxu0 0.0
    %2262 = vmatprep.subr.mxu0 0.0
    %2263 = vmatpush1.xpose.msra.mxu0 0.0
    %2264 = vmatprep.subr.mxu0 0.0
    %2265 = vmatpush1.xpose.msra.mxu0 0.0
    %2266 = vmatprep.subr.mxu0 0.0
    %2267 = vmatpush1.xpose.msra.mxu0 0.0
    %2268 = vmatprep.subr.mxu0 0.0
    %2269 = vmatpush1.xpose.msra.mxu0 0.0
    %2270 = vmatprep.subr.mxu0 0.0
    %2271 = vmatpush1.xpose.msra.mxu0 0.0
    %2272 = vmatprep.subr.mxu0 0.0
    %2273 = vmatpush1.xpose.msra.mxu0 0.0
    %2274 = vmatprep.subr.mxu0 0.0
    %2275 = vmatpush1.xpose.msra.mxu0 0.0
    %2276 = vmatprep.subr.mxu0 0.0
    %2277 = vmatpush1.xpose.msra.mxu0 0.0
    %2278 = vmatprep.subr.mxu0 0.0
    %2279 = vmatpush1.xpose.msra.mxu0 0.0
    %2280 = vmatprep.subr.mxu0 0.0
    %2281 = vmatpush1.xpose.msra.mxu0 0.0
    %2282 = vmatprep.subr.mxu0 0.0
    %2283 = vmatpush1.xpose.msra.mxu0 0.0
    %2284 = vmatprep.subr.mxu0 0.0
    %2285 = vmatpush1.xpose.msra.mxu0 0.0
    %2286 = vmatprep.subr.mxu0 0.0
    %2287 = vmatpush1.xpose.msra.mxu0 0.0
    %2288 = vmatprep.subr.mxu0 0.0
    %2289 = vmatpush1.xpose.msra.mxu0 0.0
    %2290 = vmatprep.subr.mxu0 0.0
    %2291 = vmatpush1.xpose.msra.mxu0 0.0
    %2292 = vmatprep.subr.mxu0 0.0
    %2293 = vmatpush1.xpose.msra.mxu0 0.0
    %2294 = vmatprep.subr.mxu0 0.0
    %2295 = vmatpush1.xpose.msra.mxu0 0.0
    %2296 = vmatprep.subr.mxu0 0.0
    %2297 = vmatpush1.xpose.msra.mxu0 0.0
    %2298 = vmatprep.subr.mxu0 0.0
    %2299 = vmatpush1.xpose.msra.mxu0 0.0
    %2300 = vmatprep.subr.mxu0 0.0
    %2301 = vmatpush1.xpose.msra.mxu0 0.0
    %2302 = vmatprep.subr.mxu0 0.0
    %2303 = vmatpush1.xpose.msra.mxu0 0.0
    %2304 = vmatprep.mubr.f32.mxu0 0.0
    %2305 = vmatmul.mubr.f32.gmra.mrb[0].mxu0 %v2226
    %v2306 = vpop.f32.mrb[0].mxu0
    %v2307 = vadd.f32 0.0, %v2306
    %v2308 = vpop.f32.mrb[0].mxu0
    %2309 = vdwg.mxu0
    %s2310 = scalar_lea.vmem %s6, 48
    %2311 = vst.msk [vmem:[%s2310] sm:$0x7f] %vm420, %v2307
    %s2312 = sadd.s32 %s95, 7
    %s2313 = sld [smem:[#allocation4 + %s2312]]
    %s2314 = smul.u32 %s2313, 16
    %s2315 = scalar_lea.vmem [#allocation14], %s2314
    %v2316 = vld [vmem:[%s2315] sm:$0xff]
    %v2317 = vld [vmem:[%s2315 + $0x8] sm:$0xff]
    %s2318 = sld [smem:[#allocation8 + %s2312]]
    %s2319 = sld [smem:[#allocation9 + %s2312]]
    %s2320 = sld [smem:[#allocation11 + %s2312]]
    %s2321 = sld [smem:[#allocation12 + %s2312]]
    %s2322 = smul.f32 %s2318, 0.5
    %s2323 = smul.f32 %s2319, 0.5
    %s2324 = smul.f32 %s2320, 0.5
    %s2325 = smul.f32 %s2321, 0.5
    %s2326 = ssub.f32 %s2324, %s2322
    %s2327 = ssub.f32 %s2325, %s2323
    %s2328 = smax.f32 %s2326, 1.0
    %s2329 = smax.f32 %s2327, 1.0
    %v2330 = vrcp.pop 7.0
    %s2331 = vtos %v2330
    %s2332 = smul.f32 %s2329, %s2331
    %v2333 = vrcp.pop 7.0
    %s2334 = vtos %v2333
    %s2335 = smul.f32 %s2328, %s2334
    %v2336 = vstv %s2332
    %v2337 = vmul.f32 %v125, %v2336
    %v2338 = vstv %s2323
    %v2339 = vadd.f32 %v2338, %v2337
    %vm2340 = vcmp.ge.f32.partialorder %v2339, -1.0
    %vm2341 = vcmp.le.f32.partialorder %v2339, 16.0
    %vm2342 = vmand %vm2340, %vm2341
    %v2343 = vmax.f32 %v2339, 0.0
    %v2344 = vfloor.f32 %v2343
    %vm2345 = vcmp.ge.f32.partialorder %v2344, 15.0
    %v2346 = vsel %vm2345, 15.0, %v2344
    %v2347 = vadd.f32 %v2346, 1.0
    %v2348 = vsel %vm2345, 15.0, %v2347
    %v2349 = vsel %vm2345, 15.0, %v2343
    %v2350 = vsub.f32 %v2349, %v2346
    %v2351 = vsub.f32 1.0, %v2350
    %vm2352 = vcmp.eq.f32.partialorder %v124, %v2346
    %v2353 = vsel %vm2352, 1, 0
    %v2354 = vcvt.s32.f32 %v2353
    %v2355 = vmul.f32 %v2351, %v2354
    %vm2356 = vcmp.eq.f32.partialorder %v124, %v2348
    %v2357 = vsel %vm2356, 1, 0
    %v2358 = vcvt.s32.f32 %v2357
    %v2359 = vmul.f32 %v2350, %v2358
    %v2360 = vadd.f32 %v2355, %v2359
    %v2361 = vsel %vm2342, %v2360, 0.0
    %v2362 = vadd.f32 %v2361, 0.0
    %v2363 = vmul.f32 %v153, %v2336
    %v2364 = vadd.f32 %v2338, %v2363
    %vm2365 = vcmp.ge.f32.partialorder %v2364, -1.0
    %vm2366 = vcmp.le.f32.partialorder %v2364, 16.0
    %vm2367 = vmand %vm2365, %vm2366
    %v2368 = vmax.f32 %v2364, 0.0
    %v2369 = vfloor.f32 %v2368
    %vm2370 = vcmp.ge.f32.partialorder %v2369, 15.0
    %v2371 = vsel %vm2370, 15.0, %v2369
    %v2372 = vadd.f32 %v2371, 1.0
    %v2373 = vsel %vm2370, 15.0, %v2372
    %v2374 = vsel %vm2370, 15.0, %v2368
    %v2375 = vsub.f32 %v2374, %v2371
    %v2376 = vsub.f32 1.0, %v2375
    %vm2377 = vcmp.eq.f32.partialorder %v124, %v2371
    %v2378 = vsel %vm2377, 1, 0
    %v2379 = vcvt.s32.f32 %v2378
    %v2380 = vmul.f32 %v2376, %v2379
    %vm2381 = vcmp.eq.f32.partialorder %v124, %v2373
    %v2382 = vsel %vm2381, 1, 0
    %v2383 = vcvt.s32.f32 %v2382
    %v2384 = vmul.f32 %v2375, %v2383
    %v2385 = vadd.f32 %v2380, %v2384
    %v2386 = vsel %vm2367, %v2385, 0.0
    %v2387 = vadd.f32 %v2362, %v2386
    %v2388 = vmul.f32 %v2387, %v179
    %v2389 = vstv %s2335
    %v2390 = vmul.f32 %v125, %v2389
    %v2391 = vstv %s2322
    %v2392 = vadd.f32 %v2391, %v2390
    %vm2393 = vcmp.ge.f32.partialorder %v2392, -1.0
    %vm2394 = vcmp.le.f32.partialorder %v2392, 16.0
    %vm2395 = vmand %vm2393, %vm2394
    %v2396 = vmax.f32 %v2392, 0.0
    %v2397 = vfloor.f32 %v2396
    %vm2398 = vcmp.ge.f32.partialorder %v2397, 15.0
    %v2399 = vsel %vm2398, 15.0, %v2397
    %v2400 = vadd.f32 %v2399, 1.0
    %v2401 = vsel %vm2398, 15.0, %v2400
    %v2402 = vsel %vm2398, 15.0, %v2396
    %v2403 = vsub.f32 %v2402, %v2399
    %v2404 = vsub.f32 1.0, %v2403
    %vm2405 = vcmp.eq.f32.partialorder %v124, %v2399
    %v2406 = vsel %vm2405, 1, 0
    %v2407 = vcvt.s32.f32 %v2406
    %v2408 = vmul.f32 %v2404, %v2407
    %vm2409 = vcmp.eq.f32.partialorder %v124, %v2401
    %v2410 = vsel %vm2409, 1, 0
    %v2411 = vcvt.s32.f32 %v2410
    %v2412 = vmul.f32 %v2403, %v2411
    %v2413 = vadd.f32 %v2408, %v2412
    %v2414 = vsel %vm2395, %v2413, 0.0
    %v2415 = vadd.f32 %v2414, 0.0
    %v2416 = vmul.f32 %v153, %v2389
    %v2417 = vadd.f32 %v2391, %v2416
    %vm2418 = vcmp.ge.f32.partialorder %v2417, -1.0
    %vm2419 = vcmp.le.f32.partialorder %v2417, 16.0
    %vm2420 = vmand %vm2418, %vm2419
    %v2421 = vmax.f32 %v2417, 0.0
    %v2422 = vfloor.f32 %v2421
    %vm2423 = vcmp.ge.f32.partialorder %v2422, 15.0
    %v2424 = vsel %vm2423, 15.0, %v2422
    %v2425 = vadd.f32 %v2424, 1.0
    %v2426 = vsel %vm2423, 15.0, %v2425
    %v2427 = vsel %vm2423, 15.0, %v2421
    %v2428 = vsub.f32 %v2427, %v2424
    %v2429 = vsub.f32 1.0, %v2428
    %vm2430 = vcmp.eq.f32.partialorder %v124, %v2424
    %v2431 = vsel %vm2430, 1, 0
    %v2432 = vcvt.s32.f32 %v2431
    %v2433 = vmul.f32 %v2429, %v2432
    %vm2434 = vcmp.eq.f32.partialorder %v124, %v2426
    %v2435 = vsel %vm2434, 1, 0
    %v2436 = vcvt.s32.f32 %v2435
    %v2437 = vmul.f32 %v2428, %v2436
    %v2438 = vadd.f32 %v2433, %v2437
    %v2439 = vsel %vm2420, %v2438, 0.0
    %v2440 = vadd.f32 %v2415, %v2439
    %v2441 = vmul.f32 %v2440, %v179
    %v2443 = vsel %vm234, %v2388, 0
    %2445 = vmatprep.subr.mxu0 0.0
    %2446 = vmatpush1.msra.mxu0 %v2316
    %2447 = vmatprep.subr.mxu0 0.0
    %2448 = vmatpush1.msra.mxu0 %v2317
    %2449 = vmatprep.subr.mxu0 0.0
    %2450 = vmatpush1.msra.mxu0 0.0
    %2451 = vmatprep.subr.mxu0 0.0
    %2452 = vmatpush1.msra.mxu0 0.0
    %2453 = vmatprep.subr.mxu0 0.0
    %2454 = vmatpush1.msra.mxu0 0.0
    %2455 = vmatprep.subr.mxu0 0.0
    %2456 = vmatpush1.msra.mxu0 0.0
    %2457 = vmatprep.subr.mxu0 0.0
    %2458 = vmatpush1.msra.mxu0 0.0
    %2459 = vmatprep.subr.mxu0 0.0
    %2460 = vmatpush1.msra.mxu0 0.0
    %2461 = vmatprep.subr.mxu0 0.0
    %2462 = vmatpush1.msra.mxu0 0.0
    %2463 = vmatprep.subr.mxu0 0.0
    %2464 = vmatpush1.msra.mxu0 0.0
    %2465 = vmatprep.subr.mxu0 0.0
    %2466 = vmatpush1.msra.mxu0 0.0
    %2467 = vmatprep.subr.mxu0 0.0
    %2468 = vmatpush1.msra.mxu0 0.0
    %2469 = vmatprep.subr.mxu0 0.0
    %2470 = vmatpush1.msra.mxu0 0.0
    %2471 = vmatprep.subr.mxu0 0.0
    %2472 = vmatpush1.msra.mxu0 0.0
    %2473 = vmatprep.subr.mxu0 0.0
    %2474 = vmatpush1.msra.mxu0 0.0
    %2475 = vmatprep.subr.mxu0 0.0
    %2476 = vmatpush1.msra.mxu0 0.0
    %2477 = vmatprep.subr.mxu0 0.0
    %2478 = vmatpush1.msra.mxu0 0.0
    %2479 = vmatprep.subr.mxu0 0.0
    %2480 = vmatpush1.msra.mxu0 0.0
    %2481 = vmatprep.subr.mxu0 0.0
    %2482 = vmatpush1.msra.mxu0 0.0
    %2483 = vmatprep.subr.mxu0 0.0
    %2484 = vmatpush1.msra.mxu0 0.0
    %2485 = vmatprep.subr.mxu0 0.0
    %2486 = vmatpush1.msra.mxu0 0.0
    %2487 = vmatprep.subr.mxu0 0.0
    %2488 = vmatpush1.msra.mxu0 0.0
    %2489 = vmatprep.subr.mxu0 0.0
    %2490 = vmatpush1.msra.mxu0 0.0
    %2491 = vmatprep.subr.mxu0 0.0
    %2492 = vmatpush1.msra.mxu0 0.0
    %2493 = vmatprep.subr.mxu0 0.0
    %2494 = vmatpush1.msra.mxu0 0.0
    %2495 = vmatprep.subr.mxu0 0.0
    %2496 = vmatpush1.msra.mxu0 0.0
    %2497 = vmatprep.subr.mxu0 0.0
    %2498 = vmatpush1.msra.mxu0 0.0
    %2499 = vmatprep.subr.mxu0 0.0
    %2500 = vmatpush1.msra.mxu0 0.0
    %2501 = vmatprep.subr.mxu0 0.0
    %2502 = vmatpush1.msra.mxu0 0.0
    %2503 = vmatprep.subr.mxu0 0.0
    %2504 = vmatpush1.msra.mxu0 0.0
    %2505 = vmatprep.subr.mxu0 0.0
    %2506 = vmatpush1.msra.mxu0 0.0
    %2507 = vmatprep.subr.mxu0 0.0
    %2508 = vmatpush1.msra.mxu0 0.0
    %2509 = vmatprep.mubr.f32.mxu0 0.0
    %2510 = vmatmul.mubr.f32.gmra.mrb[0].mxu0 %v2443
    %v2511 = vpop.f32.mrb[0].mxu0
    %v2512 = vadd.f32 0.0, %v2511
    %v2513 = vpop.f32.mrb[0].mxu0
    %2514 = vdwg.mxu0
    %2515 = vst.msk [vmem:[#allocation2] sm:$0x7f] %vm308, %v2512
    %v2516 = vld [vmem:[#allocation2] sm:$0x7f]
    %2517 = vst.msk [vmem:[#allocation3] sm:$0x7f] %vm311, %v2516
    %v2518 = vld [vmem:[#allocation2] sm:$0x7f]
    %2520 = vrot.lane.b32.xlu0 %v2518, 112
    %v2521 = vpop.permute.xlu0 %2520
    %2523 = vst.msk [vmem:[#allocation3 + $0x7] sm:$0x7f] %vm311, %v2521
    %v2524 = vld [vmem:[#allocation2] sm:$0x7f]
    %2526 = vrot.lane.b32.xlu0 %v2524, 96
    %v2527 = vpop.permute.xlu0 %2526
    %2529 = vst.msk [vmem:[#allocation3 + $0xe] sm:$0x7f] %vm311, %v2527
    %v2530 = vld [vmem:[#allocation2] sm:$0x7f]
    %2532 = vrot.lane.b32.xlu0 %v2530, 80
    %v2533 = vpop.permute.xlu0 %2532
    %2535 = vst.msk [vmem:[#allocation3 + $0x15] sm:$0x7f] %vm311, %v2533
    %v2536 = vld [vmem:[#allocation3] sm:$0xff]
    %v2537 = vld [vmem:[#allocation3 + $0x8] sm:$0xff]
    %v2538 = vld [vmem:[#allocation3 + $0x10] sm:$0xff]
    %v2539 = vld [vmem:[#allocation3 + $0x18] sm:$0xf]
    %v2541 = vsel %vm234, %v2441, 0
    %v2544 = vsel %vm234, %v2536, 0
    %v2547 = vsel %vm234, %v2537, 0
    %v2550 = vsel %vm234, %v2538, 0
    %v2553 = vsel %vm234, %v2539, 0
    %2555 = vmatprep.subr.mxu0 0.0
    %2556 = vmatpush1.xpose.msra.mxu0 %v2544
    %2557 = vmatprep.subr.mxu0 0.0
    %2558 = vmatpush1.xpose.msra.mxu0 %v2547
    %2559 = vmatprep.subr.mxu0 0.0
    %2560 = vmatpush1.xpose.msra.mxu0 %v2550
    %2561 = vmatprep.subr.mxu0 0.0
    %2562 = vmatpush1.xpose.msra.mxu0 %v2553
    %2563 = vmatprep.subr.mxu0 0.0
    %2564 = vmatpush1.xpose.msra.mxu0 0.0
    %2565 = vmatprep.subr.mxu0 0.0
    %2566 = vmatpush1.xpose.msra.mxu0 0.0
    %2567 = vmatprep.subr.mxu0 0.0
    %2568 = vmatpush1.xpose.msra.mxu0 0.0
    %2569 = vmatprep.subr.mxu0 0.0
    %2570 = vmatpush1.xpose.msra.mxu0 0.0
    %2571 = vmatprep.subr.mxu0 0.0
    %2572 = vmatpush1.xpose.msra.mxu0 0.0
    %2573 = vmatprep.subr.mxu0 0.0
    %2574 = vmatpush1.xpose.msra.mxu0 0.0
    %2575 = vmatprep.subr.mxu0 0.0
    %2576 = vmatpush1.xpose.msra.mxu0 0.0
    %2577 = vmatprep.subr.mxu0 0.0
    %2578 = vmatpush1.xpose.msra.mxu0 0.0
    %2579 = vmatprep.subr.mxu0 0.0
    %2580 = vmatpush1.xpose.msra.mxu0 0.0
    %2581 = vmatprep.subr.mxu0 0.0
    %2582 = vmatpush1.xpose.msra.mxu0 0.0
    %2583 = vmatprep.subr.mxu0 0.0
    %2584 = vmatpush1.xpose.msra.mxu0 0.0
    %2585 = vmatprep.subr.mxu0 0.0
    %2586 = vmatpush1.xpose.msra.mxu0 0.0
    %2587 = vmatprep.subr.mxu0 0.0
    %2588 = vmatpush1.xpose.msra.mxu0 0.0
    %2589 = vmatprep.subr.mxu0 0.0
    %2590 = vmatpush1.xpose.msra.mxu0 0.0
    %2591 = vmatprep.subr.mxu0 0.0
    %2592 = vmatpush1.xpose.msra.mxu0 0.0
    %2593 = vmatprep.subr.mxu0 0.0
    %2594 = vmatpush1.xpose.msra.mxu0 0.0
    %2595 = vmatprep.subr.mxu0 0.0
    %2596 = vmatpush1.xpose.msra.mxu0 0.0
    %2597 = vmatprep.subr.mxu0 0.0
    %2598 = vmatpush1.xpose.msra.mxu0 0.0
    %2599 = vmatprep.subr.mxu0 0.0
    %2600 = vmatpush1.xpose.msra.mxu0 0.0
    %2601 = vmatprep.subr.mxu0 0.0
    %2602 = vmatpush1.xpose.msra.mxu0 0.0
    %2603 = vmatprep.subr.mxu0 0.0
    %2604 = vmatpush1.xpose.msra.mxu0 0.0
    %2605 = vmatprep.subr.mxu0 0.0
    %2606 = vmatpush1.xpose.msra.mxu0 0.0
    %2607 = vmatprep.subr.mxu0 0.0
    %2608 = vmatpush1.xpose.msra.mxu0 0.0
    %2609 = vmatprep.subr.mxu0 0.0
    %2610 = vmatpush1.xpose.msra.mxu0 0.0
    %2611 = vmatprep.subr.mxu0 0.0
    %2612 = vmatpush1.xpose.msra.mxu0 0.0
    %2613 = vmatprep.subr.mxu0 0.0
    %2614 = vmatpush1.xpose.msra.mxu0 0.0
    %2615 = vmatprep.subr.mxu0 0.0
    %2616 = vmatpush1.xpose.msra.mxu0 0.0
    %2617 = vmatprep.subr.mxu0 0.0
    %2618 = vmatpush1.xpose.msra.mxu0 0.0
    %2619 = vmatprep.mubr.f32.mxu0 0.0
    %2620 = vmatmul.mubr.f32.gmra.mrb[0].mxu0 %v2541
    %v2621 = vpop.f32.mrb[0].mxu0
    %v2622 = vadd.f32 0.0, %v2621
    %v2623 = vpop.f32.mrb[0].mxu0
    %2624 = vdwg.mxu0
    %s2625 = scalar_lea.vmem %s6, 56
    %2626 = vst.msk [vmem:[%s2625] sm:$0x7f] %vm420, %v2622
    // Predicated region
    $region50: #{tpu_custom_call.1} parent=1 // pred_check
      _
    $region51: #{tpu_custom_call.1} parent=1 // pred_check_branch
      %2628 = sbr.rel (0) target = $region53
    $region52: #{tpu_custom_call.1} parent=1 // pred_region
      _
    $region53: #{tpu_custom_call.1} parent=1 // pred_fallthru
      _
    // Predicated region
    $region54: #{tpu_custom_call.1} parent=1 // pred_check
      _
    $region55: #{tpu_custom_call.1} parent=1 // pred_check_branch
      %2630 = sbr.rel (0) target = $region57
    $region56: #{tpu_custom_call.1} parent=1 // pred_region
      _
    $region57: #{tpu_custom_call.1} parent=1 // pred_fallthru
      _
    %2631 = vsyncpa [#allocation5], 1
    %2632 = vsyncpa [#allocation6], 1
    %2633 = vsyncpa [#allocation7], 1
    %2634 = vsyncpa [#allocation10], 1
    %2635 = vsyncpa [#allocation13], 1

</llo_original>
